<compile_context>
chip_gen: v7x
topology: tpu7x:2x2x1
jax: 0.10.0
libtpu: 0.0.40
codegen_flags: <defaults>
</compile_context>

<pallas_src>
import re

import jax
import jax.numpy as jnp
from jax.experimental import pallas as pl
from jax.experimental.pallas import tpu as pltpu

_MIB = 1 << 20


# --------------------------------------------------------------------------
# Hardware heuristics
# --------------------------------------------------------------------------
def _round_up(x, m):
    return ((x + m - 1) // m) * m


def _tpu_generation():
    try:
        kind = jax.devices()[0].device_kind.lower()
    except Exception:
        return 0
    m = re.search(r"(\d+)", kind)
    return int(m.group(1)) if m else 0


def _vmem_capacity_bytes(gen):
    try:
        cap = int(pltpu.get_tpu_info().vmem_capacity_bytes)
        if cap > 0:
            return cap
    except Exception:
        pass
    # Conservative fallbacks: 128 MiB for v2..v6, 64 MiB otherwise (v7x/unknown).
    return 128 * _MIB if 2 <= gen <= 6 else 64 * _MIB


def _vmem_limit_bytes(gen):
    cap = _vmem_capacity_bytes(gen)
    if gen >= 7:
        return min(int(cap * 0.65), 44 * _MIB)   # 64 MiB/TC parts: leave headroom
    return min(int(cap * 0.75), 96 * _MIB)       # 128 MiB parts: use most of it


def _default_dtypes():
    """(hbm storage dtype for the big slabs, elementwise compute dtype)."""
    gen = _tpu_generation()
    if gen >= 6:
        return jnp.bfloat16, jnp.bfloat16   # bf16 VPU/EUP available
    if gen == 5:
        return jnp.bfloat16, jnp.float32    # halve HBM bytes, compute in f32
    return jnp.float32, jnp.float32


def _pick_t_chunk(t_pad):
    if t_pad <= 512:
        return t_pad
    for c in (512, 384, 256, 128):
        if t_pad % c == 0:
            return c
    return t_pad   # unreachable: t_pad is a multiple of 128


def _pick_b_tile(b, t_pad, t_chunk, n, enc_itemsize, compute_itemsize, gen,
                 vmem_limit):
    """Batch tile: multiple of 8, sized from the actual per-step VMEM use
    (double-buffered blocks + live chunk temporaries)."""
    budget = int(vmem_limit * 0.80)                  # headroom for Mosaic scratch
    per_row = (
        2 * (2 * t_pad * n * enc_itemsize)           # enc_out + enc_feat, x2 buffers
        + 2 * (4 * t_pad * 4)                        # mask/cov in + attn/cov out (f32)
        + 2 * (2 * n * 4)                            # s_t_hat + c_t blocks
        + 4 * t_chunk * n * compute_itemsize         # live chunk temps (att,e,e*v,prod)
        + 4 * t_pad * 4                              # scores / exp / attn f32 temps
    )
    fixed = 2 * (n * n + 3 * n) * 4 + 2 * _MIB       # resident weights + slack
    avail = max(budget - fixed, 0)
    bt = (avail // max(per_row, 1)) // 8 * 8
    bt = min(int(bt), 256, _round_up(b, 8))
    if gen >= 7 and b > 8:
        # Guarantee >=2 grid steps so "parallel" shards across the 2 TensorCores.
        bt = min(bt, _round_up(-(-b // 2), 8))
    # TODO(synk): extremely long T could still overflow with 8 rows; that needs
    # a second grid axis over T (not implemented) — clamp to the minimum tile.
    bt = max(8, bt)
    return int(bt)


# --------------------------------------------------------------------------
# Kernel
# --------------------------------------------------------------------------
def _make_attention_kernel(t_pad, t_chunk, compute_dtype):
    n_chunks = t_pad // t_chunk
    f32 = jnp.float32

    def kernel(s_ref,         # (bt, 2H)     f32
               enc_out_ref,   # (bt, T, 2H)  enc_dtype
               enc_feat_ref,  # (bt, T, 2H)  enc_dtype
               mask_ref,      # (bt, T)      f32
               cov_ref,       # (bt, T)      f32
               wdp_ref,       # (2H, 2H)     decode_proj W^T  (VMEM-resident)
               bdp_ref,       # (1, 2H)      decode_proj bias
               v_ref,         # (1, 2H)      v weight
               wc_ref,        # (1, 2H)      W_c weight
               c_t_ref,       # out (bt, 2H) f32
               attn_ref,      # out (bt, T)  f32
               cov_out_ref):  # out (bt, T)  f32
        # dec_fea = decode_proj(s_t_hat): small (bt,2H)x(2H,2H) f32 MXU matmul.
        dec_fea = jnp.dot(s_ref[...], wdp_ref[...],
                          preferred_element_type=f32) + bdp_ref[...]
        # Hoist tiny-weight casts/broadcast shapes once.
        dec_fea_c = dec_fea.astype(compute_dtype)[:, None, :]     # (bt,1,n)
        v_b = v_ref[...].astype(compute_dtype)[None]              # (1,1,n)
        wc_b = wc_ref[...].astype(compute_dtype)[None]            # (1,1,n)

        # ---- pass 1: scores, chunked over T --------------------------------
        # Only (bt, t_chunk, n) temporaries are live; the elementwise chain
        # runs in compute_dtype (bf16 on v6e/v7x), the lane reduction
        # accumulates in f32.  Scores are stashed in the attn output block.
        # n_chunks is a small static count, so the Python loop unrolls at
        # trace time.
        for ci in range(n_chunks):
            sl = pl.ds(ci * t_chunk, t_chunk)
            cov_c = cov_ref[:, sl].astype(compute_dtype)          # (bt, tc)
            att = (enc_feat_ref[:, sl, :].astype(compute_dtype)
                   + dec_fea_c
                   + cov_c[:, :, None] * wc_b)                    # (bt, tc, n)
            e = jnp.tanh(att)
            attn_ref[:, sl] = jnp.sum(e * v_b, axis=-1, dtype=f32)

        # ---- fused masked softmax on the small (bt, t_pad) f32 block --------
        # softmax(scores)*mask renormalized == exp(scores-m)*mask renormalized
        # (the plain softmax denominator cancels), so one reduction + one exact
        # divide suffice.  All-zero mask rows divide by zero, matching PyTorch.
        scores = attn_ref[...]
        m = jnp.max(scores, axis=-1, keepdims=True)
        p = jnp.exp(scores - m) * mask_ref[...]
        attn = p / jnp.sum(p, axis=-1, keepdims=True)
        attn_ref[...] = attn

        # ---- pass 2: c_t = sum_t attn_t * h_t, chunked ----------------------
        # VPU multiply + sublane reduce with f32 accumulation (avoids bt tiny
        # M=1 MXU matmuls with near-zero systolic utilization).
        c_t_ref[...] = jnp.zeros_like(c_t_ref)
        for ci in range(n_chunks):
            sl = pl.ds(ci * t_chunk, t_chunk)
            a_c = attn_ref[:, sl].astype(compute_dtype)           # (bt, tc)
            prod = a_c[:, :, None] * enc_out_ref[:, sl, :].astype(compute_dtype)
            c_t_ref[...] += jnp.sum(prod, axis=1, dtype=f32)

        cov_out_ref[...] = cov_ref[...] + attn_ref[...]

    return kernel


# --------------------------------------------------------------------------
# Wrapper
# --------------------------------------------------------------------------
def prepare_attention_inputs(encoder_outputs, encoder_feature, enc_padding_mask,
                             enc_dtype=None, compute_dtype=None, b_tile=None):
    """Pad / cast the per-sequence encoder tensors ONCE, outside the decode
    loop.  The returned dict is reused by every attention_forward call."""
    f32 = jnp.float32
    b, t_k, n = encoder_outputs.shape
    d_enc, d_cmp = _default_dtypes()
    enc_dtype = d_enc if enc_dtype is None else enc_dtype
    compute_dtype = d_cmp if compute_dtype is None else compute_dtype
    gen = _tpu_generation()

    t_pad = _round_up(t_k, 128)          # lane-dense stores, (8,128) tiling
    t_chunk = _pick_t_chunk(t_pad)
    vmem_limit = _vmem_limit_bytes(gen)
    if b_tile is None:
        b_tile = _pick_b_tile(b, t_pad, t_chunk, n,
                              jnp.dtype(enc_dtype).itemsize,
                              jnp.dtype(compute_dtype).itemsize,
                              gen, vmem_limit)
    b_pad = _round_up(b, b_tile)

    def pad_bt(x):
        pads = [(0, b_pad - b), (0, t_pad - t_k)] + [(0, 0)] * (x.ndim - 2)
        return jnp.pad(x, pads)

    enc_out_p = pad_bt(encoder_outputs.astype(enc_dtype))
    enc_feat_p = pad_bt(encoder_feature.reshape(b, t_k, n).astype(enc_dtype))
    mask_p = pad_bt(enc_padding_mask.astype(f32))
    if b_pad > b:
        # One live column in the (discarded) padded batch rows keeps the fused
        # softmax normalization finite there.
        mask_p = mask_p.at[b:, 0].set(1.0)

    return dict(enc_out_p=enc_out_p, enc_feat_p=enc_feat_p, mask_p=mask_p,
                b=int(b), t_k=int(t_k), n=int(n),
                b_pad=int(b_pad), t_pad=int(t_pad),
                b_tile=int(b_tile), t_chunk=int(t_chunk),
                enc_dtype=enc_dtype, compute_dtype=compute_dtype,
                vmem_limit=int(vmem_limit))


def attention_forward(params, s_t_hat, encoder_outputs=None,
                      encoder_feature=None, enc_padding_mask=None,
                      coverage=None, is_coverage=True,
                      enc_dtype=None, compute_dtype=None, b_tile=None,
                      prepared=None):
    f32 = jnp.float32
    if prepared is None:
        prepared = prepare_attention_inputs(encoder_outputs, encoder_feature,
                                            enc_padding_mask, enc_dtype,
                                            compute_dtype, b_tile)
    b, t_k, n = prepared["b"], prepared["t_k"], prepared["n"]
    b_pad, t_pad = prepared["b_pad"], prepared["t_pad"]
    b_tile, t_chunk = prepared["b_tile"], prepared["t_chunk"]
    enc_dt, cmp_dt = prepared["enc_dtype"], prepared["compute_dtype"]
    enc_out_p = prepared["enc_out_p"]
    enc_feat_p = prepared["enc_feat_p"]
    mask_p = prepared["mask_p"]

    s_p = jnp.pad(s_t_hat.astype(f32), ((0, b_pad - b), (0, 0)))

    # PyTorch nn.Linear convention W:(out,in), y = x @ W.T + b -> pre-transpose.
    wdp_t = params["decode_proj_w"].astype(f32).T                 # (2H, 2H)
    bdp = params["decode_proj_b"].astype(f32).reshape(1, n)
    v_w = params["v_w"].astype(f32).reshape(1, n)
    if is_coverage:
        wc = params["W_c_w"].astype(f32).reshape(1, n)            # (2H,1)->(1,2H)
        cov_p = jnp.pad(coverage.astype(f32).reshape(b, t_k),
                        ((0, b_pad - b), (0, t_pad - t_k)))
    else:
        wc = jnp.zeros((1, n), f32)
        cov_p = jnp.zeros((b_pad, t_pad), f32)

    kernel = _make_attention_kernel(t_pad, t_chunk, cmp_dt)

    grid = (b_pad // b_tile,)
    row2 = lambda i: (i, 0)
    row3 = lambda i: (i, 0, 0)
    const2 = lambda i: (0, 0)

    in_specs = [
        pl.BlockSpec((b_tile, n), row2),           # s_t_hat
        pl.BlockSpec((b_tile, t_pad, n), row3),    # encoder_outputs
        pl.BlockSpec((b_tile, t_pad, n), row3),    # encoder_feature
        pl.BlockSpec((b_tile, t_pad), row2),       # enc_padding_mask
        pl.BlockSpec((b_tile, t_pad), row2),       # coverage
        pl.BlockSpec((n, n), const2),              # decode_proj W^T (resident)
        pl.BlockSpec((1, n), const2),              # decode_proj bias
        pl.BlockSpec((1, n), const2),              # v weight
        pl.BlockSpec((1, n), const2),              # W_c weight
    ]
    out_specs = (
        pl.BlockSpec((b_tile, n), row2),           # c_t
        pl.BlockSpec((b_tile, t_pad), row2),       # attn_dist
        pl.BlockSpec((b_tile, t_pad), row2),       # coverage_out
    )
    out_shape = (
        jax.ShapeDtypeStruct((b_pad, n), f32),
        jax.ShapeDtypeStruct((b_pad, t_pad), f32),
        jax.ShapeDtypeStruct((b_pad, t_pad), f32),
    )

    enc_itemsize = jnp.dtype(enc_dt).itemsize
    bytes_accessed = (2 * b_pad * t_pad * n * enc_itemsize          # two slabs
                      + (4 * b_pad * t_pad + 3 * b_pad * n) * 4     # small io
                      + (n * n + 3 * n) * 4)                        # weights
    cost = pl.CostEstimate(
        flops=int(2 * b_pad * n * n + 8 * b_pad * t_pad * n),
        transcendentals=int(b_pad * t_pad * n),
        bytes_accessed=int(bytes_accessed),
    )

    c_t, attn, cov_out = pl.pallas_call(
        kernel,
        out_shape=out_shape,
        grid=grid,
        in_specs=in_specs,
        out_specs=out_specs,
        input_output_aliases={4: 2},   # coverage buffer reused for coverage_out
        compiler_params=pltpu.CompilerParams(
            dimension_semantics=("parallel",),
            vmem_limit_bytes=int(prepared["vmem_limit"]),
        ),
        cost_estimate=cost,
    )(s_p, enc_out_p, enc_feat_p, mask_p, cov_p, wdp_t, bdp, v_w, wc)

    c_t = c_t[:b]
    attn = attn[:b, :t_k]
    # torch returns the passed coverage unchanged when is_coverage=False.
    cov_out = cov_out[:b, :t_k] if is_coverage else coverage
    return c_t, attn, cov_out


# --------------------------------------------------------------------------
# Pure-JAX reference (mirror of the PyTorch forward) + self-test
# --------------------------------------------------------------------------
def _reference_forward(params, s_t_hat, encoder_outputs, encoder_feature,
                       enc_padding_mask, coverage, is_coverage=True):
    b, t_k, n = encoder_outputs.shape
    dec_fea = s_t_hat @ params["decode_proj_w"].T + params["decode_proj_b"]
    att_features = encoder_feature.reshape(b, t_k, n) + dec_fea[:, None, :]
    if is_coverage:
        cov_feat = coverage.reshape(b, t_k, 1) * params["W_c_w"].reshape(1, 1, n)
        att_features = att_features + cov_feat
    e = jnp.tanh(att_features)
    scores = jnp.einsum('btn,n->bt', e, params["v_w"].reshape(n))
    attn_ = jax.nn.softmax(scores, axis=1) * enc_padding_mask
    attn = attn_ / attn_.sum(1, keepdims=True)
    c_t = jnp.einsum('bt,btn->bn', attn, encoder_outputs)
    cov_out = coverage.reshape(b, t_k) + attn if is_coverage else coverage
    return c_t, attn, cov_out


def _make_case(key, B, T, H):
    N = 2 * H
    k = jax.random.split(key, 8)
    params = {
        "decode_proj_w": 0.1 * jax.random.normal(k[0], (N, N), jnp.float32),
        "decode_proj_b": 0.1 * jax.random.normal(k[1], (N,), jnp.float32),
        "v_w":           0.1 * jax.random.normal(k[2], (1, N), jnp.float32),
        "W_c_w":         0.1 * jax.random.normal(k[3], (N, 1), jnp.float32),
    }
    s_t_hat = jax.random.normal(k[4], (B, N), jnp.float32)
    enc_out = jax.random.normal(k[5], (B, T, N), jnp.float32)
    enc_feat = jax.random.normal(k[6], (B * T, N), jnp.float32)
    mask = (jax.random.uniform(k[7], (B, T)) > 0.2).astype(jnp.float32)
    mask = mask.at[:, 0].set(1.0)            # never an all-zero mask row
    coverage = jnp.zeros((B, T), jnp.float32)
    return params, s_t_hat, enc_out, enc_feat, mask, coverage


if __name__ == "__main__":
    f32 = jnp.float32

    # ---- Test 1: tiny shapes, f32 end-to-end, two decode steps reusing the
    # prepared (padded) encoder slabs -----------------------------------------
    params, s0, enc_out, enc_feat, mask, cov0 = _make_case(
        jax.random.PRNGKey(0), B=2, T=8, H=16)
    s1 = s0 + 0.25

    prepared = prepare_attention_inputs(enc_out, enc_feat, mask,
                                        enc_dtype=f32, compute_dtype=f32)

    @jax.jit
    def step(p, s, cov):
        return attention_forward(p, s, coverage=cov, is_coverage=True,
                                 prepared=prepared)

    c_a, attn_a, cov_a = step(params, s0, cov0)
    c_b, attn_b, cov_b = step(params, s1, cov_a)       # second decode step
    jax.block_until_ready((c_b, attn_b, cov_b))

    c_ar, attn_ar, cov_ar = _reference_forward(params, s0, enc_out, enc_feat,
                                               mask, cov0, True)
    c_br, attn_br, cov_br = _reference_forward(params, s1, enc_out, enc_feat,
                                               mask, cov_ar, True)
    tol = dict(atol=1e-3, rtol=1e-3)
    assert c_b.shape == (2, 32) and attn_b.shape == (2, 8) and cov_b.shape == (2, 8)
    assert jnp.allclose(c_a, c_ar, **tol) and jnp.allclose(c_b, c_br, **tol), \
        "c_t mismatch (f32)"
    assert jnp.allclose(attn_a, attn_ar, **tol) and jnp.allclose(attn_b, attn_br, **tol), \
        "attn mismatch (f32)"
    assert jnp.allclose(cov_a, cov_ar, **tol) and jnp.allclose(cov_b, cov_br, **tol), \
        "coverage mismatch (f32)"

    # ---- Test 2: larger shapes exercising T-chunking + batch tiling with the
    # device-default dtypes (bf16 slabs/compute on v6e/v7x) --------------------
    params2, s2, enc_out2, enc_feat2, mask2, _ = _make_case(
        jax.random.PRNGKey(1), B=16, T=1000, H=64)
    cov2 = 0.05 * jax.random.uniform(jax.random.PRNGKey(2), (16, 1000), f32)

    prepared2 = prepare_attention_inputs(enc_out2, enc_feat2, mask2)

    @jax.jit
    def step2(p, s, cov):
        return attention_forward(p, s, coverage=cov, is_coverage=True,
                                 prepared=prepared2)

    c2, attn2, cov_o2 = step2(params2, s2, cov2)
    jax.block_until_ready((c2, attn2, cov_o2))

    # Reference uses the same (possibly bf16-rounded) encoder slabs; remaining
    # deltas are the bf16 elementwise chain and summation order.
    enc_dt2 = prepared2["enc_dtype"]
    eo_r = enc_out2.astype(enc_dt2).astype(f32)
    ef_r = enc_feat2.astype(enc_dt2).astype(f32)
    c2_r, attn2_r, cov2_r = _reference_forward(params2, s2, eo_r, ef_r,
                                               mask2, cov2, True)
    loose = dict(atol=1e-2, rtol=5e-2)
    assert c2.shape == (16, 128) and attn2.shape == (16, 1000)
    assert jnp.allclose(c2, c2_r, **loose), "c_t mismatch (large)"
    assert jnp.allclose(attn2, attn2_r, **loose), "attn mismatch (large)"
    assert jnp.allclose(cov_o2, cov2_r, **loose), "coverage mismatch (large)"
    # attention rows must be proper masked, renormalized distributions
    assert jnp.allclose(attn2.sum(axis=1), 1.0, atol=1e-3), "attn rows not normalized"
    assert float(jnp.max(jnp.abs(attn2 * (1.0 - mask2)))) < 1e-6, "mask violated"

    print("KERNEL_OK")
</pallas_src>

<mosaic_0001>
module attributes {stable_mosaic.version = 11 : i64} {
  func.func @kernel(%arg0: i32, %arg1: memref<8x32xf32, #tpu.memory_space<vmem>>, %arg2: memref<8x128x32xf32, #tpu.memory_space<vmem>>, %arg3: memref<8x128x32xf32, #tpu.memory_space<vmem>>, %arg4: memref<8x128xf32, #tpu.memory_space<vmem>>, %arg5: memref<8x128xf32, #tpu.memory_space<vmem>>, %arg6: memref<32x32xf32, #tpu.memory_space<vmem>>, %arg7: memref<1x32xf32, #tpu.memory_space<vmem>>, %arg8: memref<1x32xf32, #tpu.memory_space<vmem>>, %arg9: memref<1x32xf32, #tpu.memory_space<vmem>>, %arg10: memref<8x32xf32, #tpu.memory_space<vmem>>, %arg11: memref<8x128xf32, #tpu.memory_space<vmem>>, %arg12: memref<8x128xf32, #tpu.memory_space<vmem>>) attributes {dimension_semantics = [#tpu.dimension_semantics<parallel>], iteration_bounds = array<i64: 1>, scalar_prefetch = 0 : i64, scratch_operands = 0 : i64, tpu.core_type = #tpu.core_type<tc>, window_params = [{transform_indices = @transform_0, window_bounds = array<i64: 8, 32>}, {transform_indices = @transform_1, window_bounds = array<i64: 8, 128, 32>}, {transform_indices = @transform_2, window_bounds = array<i64: 8, 128, 32>}, {transform_indices = @transform_3, window_bounds = array<i64: 8, 128>}, {transform_indices = @transform_4, window_bounds = array<i64: 8, 128>}, {pipeline_mode = #tpu.pipeline_mode<synchronous>, transform_indices = @transform_5, window_bounds = array<i64: 32, 32>}, {pipeline_mode = #tpu.pipeline_mode<synchronous>, transform_indices = @transform_6, window_bounds = array<i64: 1, 32>}, {pipeline_mode = #tpu.pipeline_mode<synchronous>, transform_indices = @transform_7, window_bounds = array<i64: 1, 32>}, {pipeline_mode = #tpu.pipeline_mode<synchronous>, transform_indices = @transform_8, window_bounds = array<i64: 1, 32>}, {transform_indices = @transform_9, window_bounds = array<i64: 8, 32>}, {transform_indices = @transform_10, window_bounds = array<i64: 8, 128>}, {transform_indices = @transform_11, window_bounds = array<i64: 8, 128>}]} {
    %c0 = arith.constant 0 : index
    %c0_0 = arith.constant 0 : index
    %0 = vector.load %arg1[%c0, %c0_0] : memref<8x32xf32, #tpu.memory_space<vmem>>, vector<8x32xf32>
    %c0_1 = arith.constant 0 : index
    %c0_2 = arith.constant 0 : index
    %1 = vector.load %arg6[%c0_1, %c0_2] : memref<32x32xf32, #tpu.memory_space<vmem>>, vector<32x32xf32>
    %cst = arith.constant dense<0.000000e+00> : vector<8x32xf32>
    %2 = tpu.matmul %0, %1, %cst {dimension_numbers = #tpu.dot_dimension_numbers<[1], [0], [0], [1], [0, 0, 1, 1], [], []>} : vector<8x32xf32>, vector<32x32xf32>, vector<8x32xf32> -> vector<8x32xf32>
    %c0_3 = arith.constant 0 : index
    %c0_4 = arith.constant 0 : index
    %3 = vector.load %arg7[%c0_3, %c0_4] : memref<1x32xf32, #tpu.memory_space<vmem>>, vector<1x32xf32>
    %4 = vector.broadcast %3 : vector<1x32xf32> to vector<8x32xf32>
    %5 = arith.addf %2, %4 : vector<8x32xf32>
    %6 = vector.shape_cast %5 : vector<8x32xf32> to vector<8x1x32xf32>
    %c0_5 = arith.constant 0 : index
    %c0_6 = arith.constant 0 : index
    %7 = vector.load %arg8[%c0_5, %c0_6] : memref<1x32xf32, #tpu.memory_space<vmem>>, vector<1x32xf32>
    %8 = vector.shape_cast %7 : vector<1x32xf32> to vector<1x1x32xf32>
    %c0_7 = arith.constant 0 : index
    %c0_8 = arith.constant 0 : index
    %9 = vector.load %arg9[%c0_7, %c0_8] : memref<1x32xf32, #tpu.memory_space<vmem>>, vector<1x32xf32>
    %10 = vector.shape_cast %9 : vector<1x32xf32> to vector<1x1x32xf32>
    %c0_9 = arith.constant 0 : index
    %c0_10 = arith.constant 0 : index
    %11 = vector.load %arg5[%c0_9, %c0_10] : memref<8x128xf32, #tpu.memory_space<vmem>>, vector<8x128xf32>
    %c0_11 = arith.constant 0 : index
    %c0_12 = arith.constant 0 : index
    %c0_13 = arith.constant 0 : index
    %12 = vector.load %arg3[%c0_11, %c0_12, %c0_13] : memref<8x128x32xf32, #tpu.memory_space<vmem>>, vector<8x128x32xf32>
    %13 = vector.broadcast %6 : vector<8x1x32xf32> to vector<8x128x32xf32>
    %14 = arith.addf %12, %13 : vector<8x128x32xf32>
    %15 = vector.shape_cast %11 : vector<8x128xf32> to vector<8x128x1xf32>
    %16 = vector.broadcast %15 : vector<8x128x1xf32> to vector<8x128x32xf32>
    %17 = vector.broadcast %10 : vector<1x1x32xf32> to vector<8x128x32xf32>
    %18 = arith.mulf %16, %17 : vector<8x128x32xf32>
    %19 = arith.addf %14, %18 : vector<8x128x32xf32>
    %20 = math.tanh %19 : vector<8x128x32xf32>
    %21 = vector.broadcast %8 : vector<1x1x32xf32> to vector<8x128x32xf32>
    %22 = arith.mulf %20, %21 : vector<8x128x32xf32>
    %cst_14 = arith.constant dense<0.000000e+00> : vector<8x128xf32>
    %23 = vector.multi_reduction <add>, %22, %cst_14 [2] : vector<8x128x32xf32> to vector<8x128xf32>
    %c0_15 = arith.constant 0 : index
    %c0_16 = arith.constant 0 : index
    %24 = vector.load %arg11[%c0_15, %c0_16] : memref<8x128xf32, #tpu.memory_space<vmem>>, vector<8x128xf32>
    tpu.vector_store %arg11[%c0_15, %c0_16], %23 {strides = array<i32>} : memref<8x128xf32, #tpu.memory_space<vmem>>, vector<8x128xf32>,
    %c0_17 = arith.constant 0 : index
    %c0_18 = arith.constant 0 : index
    %25 = vector.load %arg11[%c0_17, %c0_18] : memref<8x128xf32, #tpu.memory_space<vmem>>, vector<8x128xf32>
    %cst_19 = arith.constant dense<0xFF800000> : vector<8xf32>
    %26 = vector.multi_reduction <maximumf>, %25, %cst_19 [1] : vector<8x128xf32> to vector<8xf32>
    %27 = vector.shape_cast %26 : vector<8xf32> to vector<8x1xf32>
    %28 = vector.broadcast %27 : vector<8x1xf32> to vector<8x128xf32>
    %29 = arith.subf %25, %28 : vector<8x128xf32>
    %30 = math.exp %29 : vector<8x128xf32>
    %c0_20 = arith.constant 0 : index
    %c0_21 = arith.constant 0 : index
    %31 = vector.load %arg4[%c0_20, %c0_21] : memref<8x128xf32, #tpu.memory_space<vmem>>, vector<8x128xf32>
    %32 = arith.mulf %30, %31 : vector<8x128xf32>
    %cst_22 = arith.constant dense<0.000000e+00> : vector<8xf32>
    %33 = vector.multi_reduction <add>, %32, %cst_22 [1] : vector<8x128xf32> to vector<8xf32>
    %34 = vector.shape_cast %33 : vector<8xf32> to vector<8x1xf32>
    %35 = vector.broadcast %34 : vector<8x1xf32> to vector<8x128xf32>
    %36 = arith.divf %32, %35 : vector<8x128xf32>
    %c0_23 = arith.constant 0 : index
    %c0_24 = arith.constant 0 : index
    %37 = vector.load %arg11[%c0_23, %c0_24] : memref<8x128xf32, #tpu.memory_space<vmem>>, vector<8x128xf32>
    tpu.vector_store %arg11[%c0_23, %c0_24], %36 {strides = array<i32>} : memref<8x128xf32, #tpu.memory_space<vmem>>, vector<8x128xf32>,
    %cst_25 = arith.constant 0.000000e+00 : f32
    %38 = vector.broadcast %cst_25 : f32 to vector<8x32xf32>
    %c0_26 = arith.constant 0 : index
    %c0_27 = arith.constant 0 : index
    %39 = vector.load %arg10[%c0_26, %c0_27] : memref<8x32xf32, #tpu.memory_space<vmem>>, vector<8x32xf32>
    tpu.vector_store %arg10[%c0_26, %c0_27], %38 {strides = array<i32>} : memref<8x32xf32, #tpu.memory_space<vmem>>, vector<8x32xf32>,
    %c0_28 = arith.constant 0 : index
    %c0_29 = arith.constant 0 : index
    %40 = vector.load %arg11[%c0_28, %c0_29] : memref<8x128xf32, #tpu.memory_space<vmem>>, vector<8x128xf32>
    %41 = vector.shape_cast %40 : vector<8x128xf32> to vector<8x128x1xf32>
    %c0_30 = arith.constant 0 : index
    %c0_31 = arith.constant 0 : index
    %c0_32 = arith.constant 0 : index
    %42 = vector.load %arg2[%c0_30, %c0_31, %c0_32] : memref<8x128x32xf32, #tpu.memory_space<vmem>>, vector<8x128x32xf32>
    %43 = vector.broadcast %41 : vector<8x128x1xf32> to vector<8x128x32xf32>
    %44 = arith.mulf %43, %42 : vector<8x128x32xf32>
    %c0_33 = arith.constant 0 : index
    %c0_34 = arith.constant 0 : index
    %45 = vector.load %arg10[%c0_33, %c0_34] : memref<8x32xf32, #tpu.memory_space<vmem>>, vector<8x32xf32>
    %cst_35 = arith.constant dense<0.000000e+00> : vector<8x32xf32>
    %46 = vector.multi_reduction <add>, %44, %cst_35 [1] : vector<8x128x32xf32> to vector<8x32xf32>
    %47 = arith.addf %45, %46 : vector<8x32xf32>
    %c0_36 = arith.constant 0 : index
    %c0_37 = arith.constant 0 : index
    %48 = vector.load %arg10[%c0_36, %c0_37] : memref<8x32xf32, #tpu.memory_space<vmem>>, vector<8x32xf32>
    tpu.vector_store %arg10[%c0_36, %c0_37], %47 {strides = array<i32>} : memref<8x32xf32, #tpu.memory_space<vmem>>, vector<8x32xf32>,
    %c0_38 = arith.constant 0 : index
    %c0_39 = arith.constant 0 : index
    %49 = vector.load %arg5[%c0_38, %c0_39] : memref<8x128xf32, #tpu.memory_space<vmem>>, vector<8x128xf32>
    %c0_40 = arith.constant 0 : index
    %c0_41 = arith.constant 0 : index
    %50 = vector.load %arg11[%c0_40, %c0_41] : memref<8x128xf32, #tpu.memory_space<vmem>>, vector<8x128xf32>
    %51 = arith.addf %49, %50 : vector<8x128xf32>
    %c0_42 = arith.constant 0 : index
    %c0_43 = arith.constant 0 : index
    %52 = vector.load %arg12[%c0_42, %c0_43] : memref<8x128xf32, #tpu.memory_space<vmem>>, vector<8x128xf32>
    tpu.vector_store %arg12[%c0_42, %c0_43], %51 {strides = array<i32>} : memref<8x128xf32, #tpu.memory_space<vmem>>, vector<8x128xf32>,
    return
  }
  func.func @transform_0(%arg0: i32) -> (i32, i32) {
    %c0_i32 = arith.constant 0 : i32
    %c0_i32_0 = arith.constant 0 : i32
    return %arg0, %c0_i32 : i32, i32
  }
  func.func @transform_1(%arg0: i32) -> (i32, i32, i32) {
    %c0_i32 = arith.constant 0 : i32
    %c0_i32_0 = arith.constant 0 : i32
    %c0_i32_1 = arith.constant 0 : i32
    return %arg0, %c0_i32, %c0_i32_0 : i32, i32, i32
  }
  func.func @transform_2(%arg0: i32) -> (i32, i32, i32) {
    %c0_i32 = arith.constant 0 : i32
    %c0_i32_0 = arith.constant 0 : i32
    %c0_i32_1 = arith.constant 0 : i32
    return %arg0, %c0_i32, %c0_i32_0 : i32, i32, i32
  }
  func.func @transform_3(%arg0: i32) -> (i32, i32) {
    %c0_i32 = arith.constant 0 : i32
    %c0_i32_0 = arith.constant 0 : i32
    return %arg0, %c0_i32 : i32, i32
  }
  func.func @transform_4(%arg0: i32) -> (i32, i32) {
    %c0_i32 = arith.constant 0 : i32
    %c0_i32_0 = arith.constant 0 : i32
    return %arg0, %c0_i32 : i32, i32
  }
  func.func @transform_5(%arg0: i32) -> (i32, i32) {
    %c0_i32 = arith.constant 0 : i32
    %c0_i32_0 = arith.constant 0 : i32
    %c0_i32_1 = arith.constant 0 : i32
    return %c0_i32, %c0_i32_0 : i32, i32
  }
  func.func @transform_6(%arg0: i32) -> (i32, i32) {
    %c0_i32 = arith.constant 0 : i32
    %c0_i32_0 = arith.constant 0 : i32
    %c0_i32_1 = arith.constant 0 : i32
    return %c0_i32, %c0_i32_0 : i32, i32
  }
  func.func @transform_7(%arg0: i32) -> (i32, i32) {
    %c0_i32 = arith.constant 0 : i32
    %c0_i32_0 = arith.constant 0 : i32
    %c0_i32_1 = arith.constant 0 : i32
    return %c0_i32, %c0_i32_0 : i32, i32
  }
  func.func @transform_8(%arg0: i32) -> (i32, i32) {
    %c0_i32 = arith.constant 0 : i32
    %c0_i32_0 = arith.constant 0 : i32
    %c0_i32_1 = arith.constant 0 : i32
    return %c0_i32, %c0_i32_0 : i32, i32
  }
  func.func @transform_9(%arg0: i32) -> (i32, i32) {
    %c0_i32 = arith.constant 0 : i32
    %c0_i32_0 = arith.constant 0 : i32
    return %arg0, %c0_i32 : i32, i32
  }
  func.func @transform_10(%arg0: i32) -> (i32, i32) {
    %c0_i32 = arith.constant 0 : i32
    %c0_i32_0 = arith.constant 0 : i32
    return %arg0, %c0_i32 : i32, i32
  }
  func.func @transform_11(%arg0: i32) -> (i32, i32) {
    %c0_i32 = arith.constant 0 : i32
    %c0_i32_0 = arith.constant 0 : i32
    return %arg0, %c0_i32 : i32, i32
  }
}

</mosaic_0001>

<llo_original>
// kernel: step.1
$region0: #{step.1}
  #allocation0 [shape = 'u32[]', space=smem, size = 0x4, offset = 0x4, fixed_abs, tag = 'smem constant byte address 0x4 - core index']
  #allocation1 [shape = 'u32[144,128]{1,0:T(1,128)}', space=vmem, size = 0x12000, scoped, tag = 'internal scratch']
  %s0 = inlined_call_operand.vmem [shape: f32[8,32], index: 0, kind: input, shape index: {}]
  %s1 = inlined_call_operand.hbm [shape: f32[8,128,32], index: 1, kind: input, shape index: {}]
  %s2 = inlined_call_operand.hbm [shape: f32[8,128,32], index: 2, kind: input, shape index: {}]
  %s3 = inlined_call_operand.vmem [shape: f32[8,128], index: 3, kind: input, shape index: {}]
  %s4 = inlined_call_operand.vmem [shape: f32[8,128], index: 4, kind: input, shape index: {}, may-alias: {4,11}]
  %s5 = inlined_call_operand.vmem [shape: f32[32,32], index: 5, kind: input, shape index: {}]
  %s6 = inlined_call_operand.vmem [shape: f32[1,32], index: 6, kind: input, shape index: {}]
  %s7 = inlined_call_operand.vmem [shape: f32[1,32], index: 7, kind: input, shape index: {}]
  %s8 = inlined_call_operand.vmem [shape: f32[1,32], index: 8, kind: input, shape index: {}]
  %s9 = inlined_call_operand.vmem [shape: f32[8,32], index: 9, kind: output, shape index: {0}]
  %s10 = inlined_call_operand.vmem [shape: f32[8,128], index: 10, kind: output, shape index: {1}]
  %s11 = inlined_call_operand.vmem [shape: f32[8,128], index: 11, kind: output, shape index: {2}, may-alias: {4,11}]
  %12 = xla_tuple %s9, %s10, %s11
  %s13 = sld [smem:[#allocation0]]
  $region70: #{step.1} parent=0
    _
  %s15 = ssub.s32 1, %s13
  %s16 = scalar_select 0, %s15, %s13
  $region1: #{step.1} parent=0
    #allocation2 [shape = 'u8[524288]{0}', space=vmem, size = 0x80000, scoped, tag = 'input window, operand 1, single buffered']
    #allocation3 [shape = 's32[1]{0}', space=sflag, size = 0x4, scoped, tag = 'scoped memory for step.1']
    #allocation4 [shape = 'u8[524288]{0}', space=vmem, size = 0x80000, scoped, tag = 'input window, operand 2, single buffered']
    #allocation5 [shape = 's32[1]{0}', space=sflag, size = 0x4, scoped, tag = 'scoped memory for step.1']
    %17 = vsyncpa [#allocation3], 0
    %18 = vsyncpa [#allocation5], 0
    // Predicated region
    $region2: #{step.1} parent=1 // pred_check
      _
    $region3: #{step.1} parent=1 // pred_check_branch
      %20 = sbr.rel (0) target = $region5
    $region4: #{step.1} parent=1 // pred_region
      _
    $region5: #{step.1} parent=1 // pred_fallthru
      _
    // Predicated region
    $region6: #{step.1} parent=1 // pred_check
      _
    $region7: #{step.1} parent=1 // pred_check_branch
      %22 = sbr.rel (0) target = $region9
    $region8: #{step.1} parent=1 // pred_region
      %s24 = ssub.s32 16384, 16384
      %25 = vsyncadd [#allocation3], %s24
      %s26 = sshll.u32 [#allocation2], 4
      %s27 = int_to_ptr.vmem [resolvable:$true] %s26
      %32 = dma.hbm_to_vmem [thread:$0]  %s1, 16384, %s27, [#allocation3], 128, 128, 8
    $region9: #{step.1} parent=1 // pred_fallthru
      _
    // Predicated region
    $region10: #{step.1} parent=1 // pred_check
      _
    $region11: #{step.1} parent=1 // pred_check_branch
      %34 = sbr.rel (0) target = $region13
    $region12: #{step.1} parent=1 // pred_region
      %s36 = ssub.s32 16384, 16384
      %37 = vsyncadd [#allocation5], %s36
      %s38 = sshll.u32 [#allocation4], 4
      %s39 = int_to_ptr.vmem [resolvable:$true] %s38
      %44 = dma.hbm_to_vmem [thread:$0]  %s2, 16384, %s39, [#allocation5], 128, 128, 8
    $region13: #{step.1} parent=1 // pred_fallthru
      _
    // Predicated region
    $region14: #{step.1} parent=1 // pred_check
      _
    $region15: #{step.1} parent=1 // pred_check_branch
      %46 = sbr.rel (0) target = $region17
    $region16: #{step.1} parent=1 // pred_region
      _
    $region17: #{step.1} parent=1 // pred_fallthru
      _
    // Predicated region
    $region18: #{step.1} parent=1 // pred_check
      _
    $region19: #{step.1} parent=1 // pred_check_branch
      %48 = sbr.rel (0) target = $region21
    $region20: #{step.1} parent=1 // pred_region
      _
    $region21: #{step.1} parent=1 // pred_fallthru
      _
    // Predicated region
    $region22: #{step.1} parent=1 // pred_check
      _
    $region23: #{step.1} parent=1 // pred_check_branch
      %50 = sbr.rel (0) target = $region25
    $region24: #{step.1} parent=1 // pred_region
      _
    $region25: #{step.1} parent=1 // pred_fallthru
      _
    // Predicated region
    $region26: #{step.1} parent=1 // pred_check
      _
    $region27: #{step.1} parent=1 // pred_check_branch
      %52 = sbr.rel (0) target = $region29
    $region28: #{step.1} parent=1 // pred_region
      _
    $region29: #{step.1} parent=1 // pred_fallthru
      _
    // Predicated region
    $region30: #{step.1} parent=1 // pred_check
      _
    $region31: #{step.1} parent=1 // pred_check_branch
      %54 = sbr.rel (0) target = $region33
    $region32: #{step.1} parent=1 // pred_region
      _
    $region33: #{step.1} parent=1 // pred_fallthru
      _
    // Predicated region
    $region34: #{step.1} parent=1 // pred_check
      _
    $region35: #{step.1} parent=1 // pred_check_branch
      %56 = sbr.rel (0) target = $region37
    $region36: #{step.1} parent=1 // pred_region
      _
    $region37: #{step.1} parent=1 // pred_fallthru
      _
    // Predicated region
    $region38: #{step.1} parent=1 // pred_check
      _
    $region39: #{step.1} parent=1 // pred_check_branch
      %58 = sbr.rel (0) target = $region41
    $region40: #{step.1} parent=1 // pred_region
      %59 = dma.done [#allocation3], 16384
    $region41: #{step.1} parent=1 // pred_fallthru
      _
    // Predicated region
    $region42: #{step.1} parent=1 // pred_check
      _
    $region43: #{step.1} parent=1 // pred_check_branch
      %61 = sbr.rel (0) target = $region45
    $region44: #{step.1} parent=1 // pred_region
      %62 = dma.done [#allocation5], 16384
    $region45: #{step.1} parent=1 // pred_fallthru
      _
    %v63 = vld [vmem:[%s0] sm:$0xff]
    %v64 = vld [vmem:[%s5] sm:$0xff]
    %v65 = vld [vmem:[%s5 + $0x8] sm:$0xff]
    %v66 = vld [vmem:[%s5 + $0x10] sm:$0xff]
    %v67 = vld [vmem:[%s5 + $0x18] sm:$0xff]
    %v68 = vld [vmem:[%s6] sm:$0x1]
    %v70 = vlaneseq
    %v71 = vshrl.u32 %v70, 7
    %v72 = vsub.s32 0, %v71
    %v73 = vrot.slane %v68, %v72
    %vm75 = vcmask 261120
    %v77 = vsel %vm75, %v63, 0
    %79 = vmatprep.subr.mxu0 0.0
    %80 = vmatpush1.msra.mxu0 %v64
    %81 = vmatprep.subr.mxu0 0.0
    %82 = vmatpush1.msra.mxu0 %v65
    %83 = vmatprep.subr.mxu0 0.0
    %84 = vmatpush1.msra.mxu0 %v66
    %85 = vmatprep.subr.mxu0 0.0
    %86 = vmatpush1.msra.mxu0 %v67
    %87 = vmatprep.subr.mxu0 0.0
    %88 = vmatpush1.msra.mxu0 0.0
    %89 = vmatprep.subr.mxu0 0.0
    %90 = vmatpush1.msra.mxu0 0.0
    %91 = vmatprep.subr.mxu0 0.0
    %92 = vmatpush1.msra.mxu0 0.0
    %93 = vmatprep.subr.mxu0 0.0
    %94 = vmatpush1.msra.mxu0 0.0
    %95 = vmatprep.subr.mxu0 0.0
    %96 = vmatpush1.msra.mxu0 0.0
    %97 = vmatprep.subr.mxu0 0.0
    %98 = vmatpush1.msra.mxu0 0.0
    %99 = vmatprep.subr.mxu0 0.0
    %100 = vmatpush1.msra.mxu0 0.0
    %101 = vmatprep.subr.mxu0 0.0
    %102 = vmatpush1.msra.mxu0 0.0
    %103 = vmatprep.subr.mxu0 0.0
    %104 = vmatpush1.msra.mxu0 0.0
    %105 = vmatprep.subr.mxu0 0.0
    %106 = vmatpush1.msra.mxu0 0.0
    %107 = vmatprep.subr.mxu0 0.0
    %108 = vmatpush1.msra.mxu0 0.0
    %109 = vmatprep.subr.mxu0 0.0
    %110 = vmatpush1.msra.mxu0 0.0
    %111 = vmatprep.subr.mxu0 0.0
    %112 = vmatpush1.msra.mxu0 0.0
    %113 = vmatprep.subr.mxu0 0.0
    %114 = vmatpush1.msra.mxu0 0.0
    %115 = vmatprep.subr.mxu0 0.0
    %116 = vmatpush1.msra.mxu0 0.0
    %117 = vmatprep.subr.mxu0 0.0
    %118 = vmatpush1.msra.mxu0 0.0
    %119 = vmatprep.subr.mxu0 0.0
    %120 = vmatpush1.msra.mxu0 0.0
    %121 = vmatprep.subr.mxu0 0.0
    %122 = vmatpush1.msra.mxu0 0.0
    %123 = vmatprep.subr.mxu0 0.0
    %124 = vmatpush1.msra.mxu0 0.0
    %125 = vmatprep.subr.mxu0 0.0
    %126 = vmatpush1.msra.mxu0 0.0
    %127 = vmatprep.subr.mxu0 0.0
    %128 = vmatpush1.msra.mxu0 0.0
    %129 = vmatprep.subr.mxu0 0.0
    %130 = vmatpush1.msra.mxu0 0.0
    %131 = vmatprep.subr.mxu0 0.0
    %132 = vmatpush1.msra.mxu0 0.0
    %133 = vmatprep.subr.mxu0 0.0
    %134 = vmatpush1.msra.mxu0 0.0
    %135 = vmatprep.subr.mxu0 0.0
    %136 = vmatpush1.msra.mxu0 0.0
    %137 = vmatprep.subr.mxu0 0.0
    %138 = vmatpush1.msra.mxu0 0.0
    %139 = vmatprep.subr.mxu0 0.0
    %140 = vmatpush1.msra.mxu0 0.0
    %141 = vmatprep.subr.mxu0 0.0
    %142 = vmatpush1.msra.mxu0 0.0
    %143 = vmatprep.mubr.f32.mxu0 0.0
    %144 = vmatmul.mubr.f32.gmra.mrb[0].mxu0 %v77
    %v145 = vpop.f32.mrb[0].mxu0
    %v146 = vadd.f32 %v73, %v145
    %v147 = vpop.f32.mrb[0].mxu0
    %148 = vdwg.mxu0
    %v150 = vcombine.high %v146, %v146
    %v152 = vunpack.c.l.s4 1966171168
    %v153 = vunpack.c.0.s8 %v152
    %v154 = vlaneseq
    %v155 = vshrl.u32 %v154, 7
    %v156 = vsub.s32 %v153, %v155
    %v157 = vrot.slane %v146, %v156
    %v159 = vunpack.c.l.s4 1966171168
    %v160 = vunpack.c.0.s8 %v159
    %v161 = vlaneseq
    %v162 = vshrl.u32 %v161, 7
    %v163 = vsub.s32 %v160, %v162
    %v164 = vrot.slane %v150, %v163
    %v165 = vcombine.high %v157, %v157
    %v166 = vcombine.high %v164, %v164
    %v168 = vunpack.c.l.s4 1966171168
    %v169 = vunpack.c.0.s8 %v168
    %v170 = vlaneseq
    %v171 = vshrl.u32 %v170, 7
    %v172 = vsub.s32 %v169, %v171
    %v173 = vrot.slane %v157, %v172
    %v175 = vunpack.c.l.s4 1966171168
    %v176 = vunpack.c.0.s8 %v175
    %v177 = vlaneseq
    %v178 = vshrl.u32 %v177, 7
    %v179 = vsub.s32 %v176, %v178
    %v180 = vrot.slane %v164, %v179
    %v182 = vunpack.c.l.s4 1966171168
    %v183 = vunpack.c.0.s8 %v182
    %v184 = vlaneseq
    %v185 = vshrl.u32 %v184, 7
    %v186 = vsub.s32 %v183, %v185
    %v187 = vrot.slane %v165, %v186
    %v189 = vunpack.c.l.s4 1966171168
    %v190 = vunpack.c.0.s8 %v189
    %v191 = vlaneseq
    %v192 = vshrl.u32 %v191, 7
    %v193 = vsub.s32 %v190, %v192
    %v194 = vrot.slane %v166, %v193
    %v195 = vcombine.high %v173, %v173
    %v196 = vcombine.high %v180, %v180
    %v197 = vcombine.high %v187, %v187
    %v198 = vcombine.high %v194, %v194
    %v199 = vld [vmem:[%s7] sm:$0x1]
    %v200 = vld [vmem:[%s8] sm:$0x1]
    %v201 = vld [vmem:[%s4] sm:$0xff]
    %v202 = vld [vmem:[#allocation4] sm:$0xff]
    %v203 = vld [vmem:[#allocation4 + $0x8] sm:$0xff]
    %v204 = vld [vmem:[#allocation4 + $0x10] sm:$0xff]
    %v205 = vld [vmem:[#allocation4 + $0x18] sm:$0xff]
    %v206 = vld [vmem:[#allocation4 + $0x20] sm:$0xff]
    %v207 = vld [vmem:[#allocation4 + $0x28] sm:$0xff]
    %v208 = vld [vmem:[#allocation4 + $0x30] sm:$0xff]
    %v209 = vld [vmem:[#allocation4 + $0x38] sm:$0xff]
    %v210 = vld [vmem:[#allocation4 + $0x40] sm:$0xff]
    %v211 = vld [vmem:[#allocation4 + $0x48] sm:$0xff]
    %v212 = vld [vmem:[#allocation4 + $0x50] sm:$0xff]
    %v213 = vld [vmem:[#allocation4 + $0x58] sm:$0xff]
    %v214 = vld [vmem:[#allocation4 + $0x60] sm:$0xff]
    %v215 = vld [vmem:[#allocation4 + $0x68] sm:$0xff]
    %v216 = vld [vmem:[#allocation4 + $0x70] sm:$0xff]
    %v217 = vld [vmem:[#allocation4 + $0x78] sm:$0xff]
    %v218 = vld [vmem:[#allocation4 + $0x80] sm:$0xff]
    %v219 = vld [vmem:[#allocation4 + $0x88] sm:$0xff]
    %v220 = vld [vmem:[#allocation4 + $0x90] sm:$0xff]
    %v221 = vld [vmem:[#allocation4 + $0x98] sm:$0xff]
    %v222 = vld [vmem:[#allocation4 + $0xa0] sm:$0xff]
    %v223 = vld [vmem:[#allocation4 + $0xa8] sm:$0xff]
    %v224 = vld [vmem:[#allocation4 + $0xb0] sm:$0xff]
    %v225 = vld [vmem:[#allocation4 + $0xb8] sm:$0xff]
    %v226 = vld [vmem:[#allocation4 + $0xc0] sm:$0xff]
    %v227 = vld [vmem:[#allocation4 + $0xc8] sm:$0xff]
    %v228 = vld [vmem:[#allocation4 + $0xd0] sm:$0xff]
    %v229 = vld [vmem:[#allocation4 + $0xd8] sm:$0xff]
    %v230 = vld [vmem:[#allocation4 + $0xe0] sm:$0xff]
    %v231 = vld [vmem:[#allocation4 + $0xe8] sm:$0xff]
    %v232 = vld [vmem:[#allocation4 + $0xf0] sm:$0xff]
    %v233 = vld [vmem:[#allocation4 + $0xf8] sm:$0xff]
    %v234 = vld [vmem:[#allocation4 + $0x100] sm:$0xff]
    %v235 = vld [vmem:[#allocation4 + $0x108] sm:$0xff]
    %v236 = vld [vmem:[#allocation4 + $0x110] sm:$0xff]
    %v237 = vld [vmem:[#allocation4 + $0x118] sm:$0xff]
    %v238 = vld [vmem:[#allocation4 + $0x120] sm:$0xff]
    %v239 = vld [vmem:[#allocation4 + $0x128] sm:$0xff]
    %v240 = vld [vmem:[#allocation4 + $0x130] sm:$0xff]
    %v241 = vld [vmem:[#allocation4 + $0x138] sm:$0xff]
    %v242 = vld [vmem:[#allocation4 + $0x140] sm:$0xff]
    %v243 = vld [vmem:[#allocation4 + $0x148] sm:$0xff]
    %v244 = vld [vmem:[#allocation4 + $0x150] sm:$0xff]
    %v245 = vld [vmem:[#allocation4 + $0x158] sm:$0xff]
    %v246 = vld [vmem:[#allocation4 + $0x160] sm:$0xff]
    %v247 = vld [vmem:[#allocation4 + $0x168] sm:$0xff]
    %v248 = vld [vmem:[#allocation4 + $0x170] sm:$0xff]
    %v249 = vld [vmem:[#allocation4 + $0x178] sm:$0xff]
    %v250 = vld [vmem:[#allocation4 + $0x180] sm:$0xff]
    %v251 = vld [vmem:[#allocation4 + $0x188] sm:$0xff]
    %v252 = vld [vmem:[#allocation4 + $0x190] sm:$0xff]
    %v253 = vld [vmem:[#allocation4 + $0x198] sm:$0xff]
    %v254 = vld [vmem:[#allocation4 + $0x1a0] sm:$0xff]
    %v255 = vld [vmem:[#allocation4 + $0x1a8] sm:$0xff]
    %v256 = vld [vmem:[#allocation4 + $0x1b0] sm:$0xff]
    %v257 = vld [vmem:[#allocation4 + $0x1b8] sm:$0xff]
    %v258 = vld [vmem:[#allocation4 + $0x1c0] sm:$0xff]
    %v259 = vld [vmem:[#allocation4 + $0x1c8] sm:$0xff]
    %v260 = vld [vmem:[#allocation4 + $0x1d0] sm:$0xff]
    %v261 = vld [vmem:[#allocation4 + $0x1d8] sm:$0xff]
    %v262 = vld [vmem:[#allocation4 + $0x1e0] sm:$0xff]
    %v263 = vld [vmem:[#allocation4 + $0x1e8] sm:$0xff]
    %v264 = vld [vmem:[#allocation4 + $0x1f0] sm:$0xff]
    %v265 = vld [vmem:[#allocation4 + $0x1f8] sm:$0xff]
    %v266 = vld [vmem:[#allocation4 + $0x200] sm:$0xff]
    %v267 = vld [vmem:[#allocation4 + $0x208] sm:$0xff]
    %v268 = vld [vmem:[#allocation4 + $0x210] sm:$0xff]
    %v269 = vld [vmem:[#allocation4 + $0x218] sm:$0xff]
    %v270 = vld [vmem:[#allocation4 + $0x220] sm:$0xff]
    %v271 = vld [vmem:[#allocation4 + $0x228] sm:$0xff]
    %v272 = vld [vmem:[#allocation4 + $0x230] sm:$0xff]
    %v273 = vld [vmem:[#allocation4 + $0x238] sm:$0xff]
    %v274 = vld [vmem:[#allocation4 + $0x240] sm:$0xff]
    %v275 = vld [vmem:[#allocation4 + $0x248] sm:$0xff]
    %v276 = vld [vmem:[#allocation4 + $0x250] sm:$0xff]
    %v277 = vld [vmem:[#allocation4 + $0x258] sm:$0xff]
    %v278 = vld [vmem:[#allocation4 + $0x260] sm:$0xff]
    %v279 = vld [vmem:[#allocation4 + $0x268] sm:$0xff]
    %v280 = vld [vmem:[#allocation4 + $0x270] sm:$0xff]
    %v281 = vld [vmem:[#allocation4 + $0x278] sm:$0xff]
    %v282 = vld [vmem:[#allocation4 + $0x280] sm:$0xff]
    %v283 = vld [vmem:[#allocation4 + $0x288] sm:$0xff]
    %v284 = vld [vmem:[#allocation4 + $0x290] sm:$0xff]
    %v285 = vld [vmem:[#allocation4 + $0x298] sm:$0xff]
    %v286 = vld [vmem:[#allocation4 + $0x2a0] sm:$0xff]
    %v287 = vld [vmem:[#allocation4 + $0x2a8] sm:$0xff]
    %v288 = vld [vmem:[#allocation4 + $0x2b0] sm:$0xff]
    %v289 = vld [vmem:[#allocation4 + $0x2b8] sm:$0xff]
    %v290 = vld [vmem:[#allocation4 + $0x2c0] sm:$0xff]
    %v291 = vld [vmem:[#allocation4 + $0x2c8] sm:$0xff]
    %v292 = vld [vmem:[#allocation4 + $0x2d0] sm:$0xff]
    %v293 = vld [vmem:[#allocation4 + $0x2d8] sm:$0xff]
    %v294 = vld [vmem:[#allocation4 + $0x2e0] sm:$0xff]
    %v295 = vld [vmem:[#allocation4 + $0x2e8] sm:$0xff]
    %v296 = vld [vmem:[#allocation4 + $0x2f0] sm:$0xff]
    %v297 = vld [vmem:[#allocation4 + $0x2f8] sm:$0xff]
    %v298 = vld [vmem:[#allocation4 + $0x300] sm:$0xff]
    %v299 = vld [vmem:[#allocation4 + $0x308] sm:$0xff]
    %v300 = vld [vmem:[#allocation4 + $0x310] sm:$0xff]
    %v301 = vld [vmem:[#allocation4 + $0x318] sm:$0xff]
    %v302 = vld [vmem:[#allocation4 + $0x320] sm:$0xff]
    %v303 = vld [vmem:[#allocation4 + $0x328] sm:$0xff]
    %v304 = vld [vmem:[#allocation4 + $0x330] sm:$0xff]
    %v305 = vld [vmem:[#allocation4 + $0x338] sm:$0xff]
    %v306 = vld [vmem:[#allocation4 + $0x340] sm:$0xff]
    %v307 = vld [vmem:[#allocation4 + $0x348] sm:$0xff]
    %v308 = vld [vmem:[#allocation4 + $0x350] sm:$0xff]
    %v309 = vld [vmem:[#allocation4 + $0x358] sm:$0xff]
    %v310 = vld [vmem:[#allocation4 + $0x360] sm:$0xff]
    %v311 = vld [vmem:[#allocation4 + $0x368] sm:$0xff]
    %v312 = vld [vmem:[#allocation4 + $0x370] sm:$0xff]
    %v313 = vld [vmem:[#allocation4 + $0x378] sm:$0xff]
    %v314 = vld [vmem:[#allocation4 + $0x380] sm:$0xff]
    %v315 = vld [vmem:[#allocation4 + $0x388] sm:$0xff]
    %v316 = vld [vmem:[#allocation4 + $0x390] sm:$0xff]
    %v317 = vld [vmem:[#allocation4 + $0x398] sm:$0xff]
    %v318 = vld [vmem:[#allocation4 + $0x3a0] sm:$0xff]
    %v319 = vld [vmem:[#allocation4 + $0x3a8] sm:$0xff]
    %v320 = vld [vmem:[#allocation4 + $0x3b0] sm:$0xff]
    %v321 = vld [vmem:[#allocation4 + $0x3b8] sm:$0xff]
    %v322 = vld [vmem:[#allocation4 + $0x3c0] sm:$0xff]
    %v323 = vld [vmem:[#allocation4 + $0x3c8] sm:$0xff]
    %v324 = vld [vmem:[#allocation4 + $0x3d0] sm:$0xff]
    %v325 = vld [vmem:[#allocation4 + $0x3d8] sm:$0xff]
    %v326 = vld [vmem:[#allocation4 + $0x3e0] sm:$0xff]
    %v327 = vld [vmem:[#allocation4 + $0x3e8] sm:$0xff]
    %v328 = vld [vmem:[#allocation4 + $0x3f0] sm:$0xff]
    %v329 = vld [vmem:[#allocation4 + $0x3f8] sm:$0xff]
    %v330 = vlaneseq
    %v331 = vshrl.u32 %v330, 7
    %v332 = vsub.s32 0, %v331
    %v333 = vrot.slane %v173, %v332
    %v334 = vlaneseq
    %v335 = vshrl.u32 %v334, 7
    %v336 = vsub.s32 0, %v335
    %v337 = vrot.slane %v187, %v336
    %v338 = vlaneseq
    %v339 = vshrl.u32 %v338, 7
    %v340 = vsub.s32 0, %v339
    %v341 = vrot.slane %v195, %v340
    %v342 = vlaneseq
    %v343 = vshrl.u32 %v342, 7
    %v344 = vsub.s32 0, %v343
    %v345 = vrot.slane %v197, %v344
    %v346 = vlaneseq
    %v347 = vshrl.u32 %v346, 7
    %v348 = vsub.s32 0, %v347
    %v349 = vrot.slane %v180, %v348
    %v350 = vlaneseq
    %v351 = vshrl.u32 %v350, 7
    %v352 = vsub.s32 0, %v351
    %v353 = vrot.slane %v194, %v352
    %v354 = vlaneseq
    %v355 = vshrl.u32 %v354, 7
    %v356 = vsub.s32 0, %v355
    %v357 = vrot.slane %v196, %v356
    %v358 = vlaneseq
    %v359 = vshrl.u32 %v358, 7
    %v360 = vsub.s32 0, %v359
    %v361 = vrot.slane %v198, %v360
    %v370 = vadd.f32 %v202, %v333
    %v371 = vadd.f32 %v203, %v333
    %v372 = vadd.f32 %v204, %v333
    %v373 = vadd.f32 %v205, %v333
    %v374 = vadd.f32 %v206, %v333
    %v375 = vadd.f32 %v207, %v333
    %v376 = vadd.f32 %v208, %v333
    %v377 = vadd.f32 %v209, %v333
    %v378 = vadd.f32 %v210, %v333
    %v379 = vadd.f32 %v211, %v333
    %v380 = vadd.f32 %v212, %v333
    %v381 = vadd.f32 %v213, %v333
    %v382 = vadd.f32 %v214, %v333
    %v383 = vadd.f32 %v215, %v333
    %v384 = vadd.f32 %v216, %v333
    %v385 = vadd.f32 %v217, %v333
    %v386 = vadd.f32 %v218, %v337
    %v387 = vadd.f32 %v219, %v337
    %v388 = vadd.f32 %v220, %v337
    %v389 = vadd.f32 %v221, %v337
    %v390 = vadd.f32 %v222, %v337
    %v391 = vadd.f32 %v223, %v337
    %v392 = vadd.f32 %v224, %v337
    %v393 = vadd.f32 %v225, %v337
    %v394 = vadd.f32 %v226, %v337
    %v395 = vadd.f32 %v227, %v337
    %v396 = vadd.f32 %v228, %v337
    %v397 = vadd.f32 %v229, %v337
    %v398 = vadd.f32 %v230, %v337
    %v399 = vadd.f32 %v231, %v337
    %v400 = vadd.f32 %v232, %v337
    %v401 = vadd.f32 %v233, %v337
    %v402 = vadd.f32 %v234, %v341
    %v403 = vadd.f32 %v235, %v341
    %v404 = vadd.f32 %v236, %v341
    %v405 = vadd.f32 %v237, %v341
    %v406 = vadd.f32 %v238, %v341
    %v407 = vadd.f32 %v239, %v341
    %v408 = vadd.f32 %v240, %v341
    %v409 = vadd.f32 %v241, %v341
    %v410 = vadd.f32 %v242, %v341
    %v411 = vadd.f32 %v243, %v341
    %v412 = vadd.f32 %v244, %v341
    %v413 = vadd.f32 %v245, %v341
    %v414 = vadd.f32 %v246, %v341
    %v415 = vadd.f32 %v247, %v341
    %v416 = vadd.f32 %v248, %v341
    %v417 = vadd.f32 %v249, %v341
    %v418 = vadd.f32 %v250, %v345
    %v419 = vadd.f32 %v251, %v345
    %v420 = vadd.f32 %v252, %v345
    %v421 = vadd.f32 %v253, %v345
    %v422 = vadd.f32 %v254, %v345
    %v423 = vadd.f32 %v255, %v345
    %v424 = vadd.f32 %v256, %v345
    %v425 = vadd.f32 %v257, %v345
    %v426 = vadd.f32 %v258, %v345
    %v427 = vadd.f32 %v259, %v345
    %v428 = vadd.f32 %v260, %v345
    %v429 = vadd.f32 %v261, %v345
    %v430 = vadd.f32 %v262, %v345
    %v431 = vadd.f32 %v263, %v345
    %v432 = vadd.f32 %v264, %v345
    %v433 = vadd.f32 %v265, %v345
    %v434 = vadd.f32 %v266, %v349
    %v435 = vadd.f32 %v267, %v349
    %v436 = vadd.f32 %v268, %v349
    %v437 = vadd.f32 %v269, %v349
    %v438 = vadd.f32 %v270, %v349
    %v439 = vadd.f32 %v271, %v349
    %v440 = vadd.f32 %v272, %v349
    %v441 = vadd.f32 %v273, %v349
    %v442 = vadd.f32 %v274, %v349
    %v443 = vadd.f32 %v275, %v349
    %v444 = vadd.f32 %v276, %v349
    %v445 = vadd.f32 %v277, %v349
    %v446 = vadd.f32 %v278, %v349
    %v447 = vadd.f32 %v279, %v349
    %v448 = vadd.f32 %v280, %v349
    %v449 = vadd.f32 %v281, %v349
    %v450 = vadd.f32 %v282, %v353
    %v451 = vadd.f32 %v283, %v353
    %v452 = vadd.f32 %v284, %v353
    %v453 = vadd.f32 %v285, %v353
    %v454 = vadd.f32 %v286, %v353
    %v455 = vadd.f32 %v287, %v353
    %v456 = vadd.f32 %v288, %v353
    %v457 = vadd.f32 %v289, %v353
    %v458 = vadd.f32 %v290, %v353
    %v459 = vadd.f32 %v291, %v353
    %v460 = vadd.f32 %v292, %v353
    %v461 = vadd.f32 %v293, %v353
    %v462 = vadd.f32 %v294, %v353
    %v463 = vadd.f32 %v295, %v353
    %v464 = vadd.f32 %v296, %v353
    %v465 = vadd.f32 %v297, %v353
    %v466 = vadd.f32 %v298, %v357
    %v467 = vadd.f32 %v299, %v357
    %v468 = vadd.f32 %v300, %v357
    %v469 = vadd.f32 %v301, %v357
    %v470 = vadd.f32 %v302, %v357
    %v471 = vadd.f32 %v303, %v357
    %v472 = vadd.f32 %v304, %v357
    %v473 = vadd.f32 %v305, %v357
    %v474 = vadd.f32 %v306, %v357
    %v475 = vadd.f32 %v307, %v357
    %v476 = vadd.f32 %v308, %v357
    %v477 = vadd.f32 %v309, %v357
    %v478 = vadd.f32 %v310, %v357
    %v479 = vadd.f32 %v311, %v357
    %v480 = vadd.f32 %v312, %v357
    %v481 = vadd.f32 %v313, %v357
    %v482 = vadd.f32 %v314, %v361
    %v483 = vadd.f32 %v315, %v361
    %v484 = vadd.f32 %v316, %v361
    %v485 = vadd.f32 %v317, %v361
    %v486 = vadd.f32 %v318, %v361
    %v487 = vadd.f32 %v319, %v361
    %v488 = vadd.f32 %v320, %v361
    %v489 = vadd.f32 %v321, %v361
    %v490 = vadd.f32 %v322, %v361
    %v491 = vadd.f32 %v323, %v361
    %v492 = vadd.f32 %v324, %v361
    %v493 = vadd.f32 %v325, %v361
    %v494 = vadd.f32 %v326, %v361
    %v495 = vadd.f32 %v327, %v361
    %v496 = vadd.f32 %v328, %v361
    %v497 = vadd.f32 %v329, %v361
    %v498 = vlaneseq
    %v499 = vshrl.u32 %v498, 7
    %v500 = vsub.s32 0, %v499
    %v501 = vrot.slane %v201, %v500
    %503 = vbcast.lane.b32.xlu0 %v501, 256
    %v504 = vpop.permute.xlu0 %503
    %s506 = sor.u32 256, 8
    %507 = vbcast.lane.b32.xlu0 %v501, %s506
    %v508 = vpop.permute.xlu0 %507
    %s510 = sor.u32 256, 16
    %511 = vbcast.lane.b32.xlu0 %v501, %s510
    %v512 = vpop.permute.xlu0 %511
    %s514 = sor.u32 256, 24
    %515 = vbcast.lane.b32.xlu0 %v501, %s514
    %v516 = vpop.permute.xlu0 %515
    %s518 = sor.u32 256, 32
    %519 = vbcast.lane.b32.xlu0 %v501, %s518
    %v520 = vpop.permute.xlu0 %519
    %s522 = sor.u32 256, 40
    %523 = vbcast.lane.b32.xlu0 %v501, %s522
    %v524 = vpop.permute.xlu0 %523
    %s526 = sor.u32 256, 48
    %527 = vbcast.lane.b32.xlu0 %v501, %s526
    %v528 = vpop.permute.xlu0 %527
    %s530 = sor.u32 256, 56
    %531 = vbcast.lane.b32.xlu0 %v501, %s530
    %v532 = vpop.permute.xlu0 %531
    %s534 = sor.u32 256, 64
    %535 = vbcast.lane.b32.xlu0 %v501, %s534
    %v536 = vpop.permute.xlu0 %535
    %s538 = sor.u32 256, 72
    %539 = vbcast.lane.b32.xlu0 %v501, %s538
    %v540 = vpop.permute.xlu0 %539
    %s542 = sor.u32 256, 80
    %543 = vbcast.lane.b32.xlu0 %v501, %s542
    %v544 = vpop.permute.xlu0 %543
    %s546 = sor.u32 256, 88
    %547 = vbcast.lane.b32.xlu0 %v501, %s546
    %v548 = vpop.permute.xlu0 %547
    %s550 = sor.u32 256, 96
    %551 = vbcast.lane.b32.xlu0 %v501, %s550
    %v552 = vpop.permute.xlu0 %551
    %s554 = sor.u32 256, 104
    %555 = vbcast.lane.b32.xlu0 %v501, %s554
    %v556 = vpop.permute.xlu0 %555
    %s558 = sor.u32 256, 112
    %559 = vbcast.lane.b32.xlu0 %v501, %s558
    %v560 = vpop.permute.xlu0 %559
    %s562 = sor.u32 256, 120
    %563 = vbcast.lane.b32.xlu0 %v501, %s562
    %v564 = vpop.permute.xlu0 %563
    %v565 = vlaneseq
    %v566 = vshrl.u32 %v565, 7
    %v567 = vsub.s32 1, %v566
    %v568 = vrot.slane %v201, %v567
    %570 = vbcast.lane.b32.xlu0 %v568, 256
    %v571 = vpop.permute.xlu0 %570
    %s573 = sor.u32 256, 8
    %574 = vbcast.lane.b32.xlu0 %v568, %s573
    %v575 = vpop.permute.xlu0 %574
    %s577 = sor.u32 256, 16
    %578 = vbcast.lane.b32.xlu0 %v568, %s577
    %v579 = vpop.permute.xlu0 %578
    %s581 = sor.u32 256, 24
    %582 = vbcast.lane.b32.xlu0 %v568, %s581
    %v583 = vpop.permute.xlu0 %582
    %s585 = sor.u32 256, 32
    %586 = vbcast.lane.b32.xlu0 %v568, %s585
    %v587 = vpop.permute.xlu0 %586
    %s589 = sor.u32 256, 40
    %590 = vbcast.lane.b32.xlu0 %v568, %s589
    %v591 = vpop.permute.xlu0 %590
    %s593 = sor.u32 256, 48
    %594 = vbcast.lane.b32.xlu0 %v568, %s593
    %v595 = vpop.permute.xlu0 %594
    %s597 = sor.u32 256, 56
    %598 = vbcast.lane.b32.xlu0 %v568, %s597
    %v599 = vpop.permute.xlu0 %598
    %s601 = sor.u32 256, 64
    %602 = vbcast.lane.b32.xlu0 %v568, %s601
    %v603 = vpop.permute.xlu0 %602
    %s605 = sor.u32 256, 72
    %606 = vbcast.lane.b32.xlu0 %v568, %s605
    %v607 = vpop.permute.xlu0 %606
    %s609 = sor.u32 256, 80
    %610 = vbcast.lane.b32.xlu0 %v568, %s609
    %v611 = vpop.permute.xlu0 %610
    %s613 = sor.u32 256, 88
    %614 = vbcast.lane.b32.xlu0 %v568, %s613
    %v615 = vpop.permute.xlu0 %614
    %s617 = sor.u32 256, 96
    %618 = vbcast.lane.b32.xlu0 %v568, %s617
    %v619 = vpop.permute.xlu0 %618
    %s621 = sor.u32 256, 104
    %622 = vbcast.lane.b32.xlu0 %v568, %s621
    %v623 = vpop.permute.xlu0 %622
    %s625 = sor.u32 256, 112
    %626 = vbcast.lane.b32.xlu0 %v568, %s625
    %v627 = vpop.permute.xlu0 %626
    %s629 = sor.u32 256, 120
    %630 = vbcast.lane.b32.xlu0 %v568, %s629
    %v631 = vpop.permute.xlu0 %630
    %v632 = vlaneseq
    %v633 = vshrl.u32 %v632, 7
    %v634 = vsub.s32 2, %v633
    %v635 = vrot.slane %v201, %v634
    %637 = vbcast.lane.b32.xlu0 %v635, 256
    %v638 = vpop.permute.xlu0 %637
    %s640 = sor.u32 256, 8
    %641 = vbcast.lane.b32.xlu0 %v635, %s640
    %v642 = vpop.permute.xlu0 %641
    %s644 = sor.u32 256, 16
    %645 = vbcast.lane.b32.xlu0 %v635, %s644
    %v646 = vpop.permute.xlu0 %645
    %s648 = sor.u32 256, 24
    %649 = vbcast.lane.b32.xlu0 %v635, %s648
    %v650 = vpop.permute.xlu0 %649
    %s652 = sor.u32 256, 32
    %653 = vbcast.lane.b32.xlu0 %v635, %s652
    %v654 = vpop.permute.xlu0 %653
    %s656 = sor.u32 256, 40
    %657 = vbcast.lane.b32.xlu0 %v635, %s656
    %v658 = vpop.permute.xlu0 %657
    %s660 = sor.u32 256, 48
    %661 = vbcast.lane.b32.xlu0 %v635, %s660
    %v662 = vpop.permute.xlu0 %661
    %s664 = sor.u32 256, 56
    %665 = vbcast.lane.b32.xlu0 %v635, %s664
    %v666 = vpop.permute.xlu0 %665
    %s668 = sor.u32 256, 64
    %669 = vbcast.lane.b32.xlu0 %v635, %s668
    %v670 = vpop.permute.xlu0 %669
    %s672 = sor.u32 256, 72
    %673 = vbcast.lane.b32.xlu0 %v635, %s672
    %v674 = vpop.permute.xlu0 %673
    %s676 = sor.u32 256, 80
    %677 = vbcast.lane.b32.xlu0 %v635, %s676
    %v678 = vpop.permute.xlu0 %677
    %s680 = sor.u32 256, 88
    %681 = vbcast.lane.b32.xlu0 %v635, %s680
    %v682 = vpop.permute.xlu0 %681
    %s684 = sor.u32 256, 96
    %685 = vbcast.lane.b32.xlu0 %v635, %s684
    %v686 = vpop.permute.xlu0 %685
    %s688 = sor.u32 256, 104
    %689 = vbcast.lane.b32.xlu0 %v635, %s688
    %v690 = vpop.permute.xlu0 %689
    %s692 = sor.u32 256, 112
    %693 = vbcast.lane.b32.xlu0 %v635, %s692
    %v694 = vpop.permute.xlu0 %693
    %s696 = sor.u32 256, 120
    %697 = vbcast.lane.b32.xlu0 %v635, %s696
    %v698 = vpop.permute.xlu0 %697
    %v699 = vlaneseq
    %v700 = vshrl.u32 %v699, 7
    %v701 = vsub.s32 3, %v700
    %v702 = vrot.slane %v201, %v701
    %704 = vbcast.lane.b32.xlu0 %v702, 256
    %v705 = vpop.permute.xlu0 %704
    %s707 = sor.u32 256, 8
    %708 = vbcast.lane.b32.xlu0 %v702, %s707
    %v709 = vpop.permute.xlu0 %708
    %s711 = sor.u32 256, 16
    %712 = vbcast.lane.b32.xlu0 %v702, %s711
    %v713 = vpop.permute.xlu0 %712
    %s715 = sor.u32 256, 24
    %716 = vbcast.lane.b32.xlu0 %v702, %s715
    %v717 = vpop.permute.xlu0 %716
    %s719 = sor.u32 256, 32
    %720 = vbcast.lane.b32.xlu0 %v702, %s719
    %v721 = vpop.permute.xlu0 %720
    %s723 = sor.u32 256, 40
    %724 = vbcast.lane.b32.xlu0 %v702, %s723
    %v725 = vpop.permute.xlu0 %724
    %s727 = sor.u32 256, 48
    %728 = vbcast.lane.b32.xlu0 %v702, %s727
    %v729 = vpop.permute.xlu0 %728
    %s731 = sor.u32 256, 56
    %732 = vbcast.lane.b32.xlu0 %v702, %s731
    %v733 = vpop.permute.xlu0 %732
    %s735 = sor.u32 256, 64
    %736 = vbcast.lane.b32.xlu0 %v702, %s735
    %v737 = vpop.permute.xlu0 %736
    %s739 = sor.u32 256, 72
    %740 = vbcast.lane.b32.xlu0 %v702, %s739
    %v741 = vpop.permute.xlu0 %740
    %s743 = sor.u32 256, 80
    %744 = vbcast.lane.b32.xlu0 %v702, %s743
    %v745 = vpop.permute.xlu0 %744
    %s747 = sor.u32 256, 88
    %748 = vbcast.lane.b32.xlu0 %v702, %s747
    %v749 = vpop.permute.xlu0 %748
    %s751 = sor.u32 256, 96
    %752 = vbcast.lane.b32.xlu0 %v702, %s751
    %v753 = vpop.permute.xlu0 %752
    %s755 = sor.u32 256, 104
    %756 = vbcast.lane.b32.xlu0 %v702, %s755
    %v757 = vpop.permute.xlu0 %756
    %s759 = sor.u32 256, 112
    %760 = vbcast.lane.b32.xlu0 %v702, %s759
    %v761 = vpop.permute.xlu0 %760
    %s763 = sor.u32 256, 120
    %764 = vbcast.lane.b32.xlu0 %v702, %s763
    %v765 = vpop.permute.xlu0 %764
    %v766 = vlaneseq
    %v767 = vshrl.u32 %v766, 7
    %v768 = vsub.s32 4, %v767
    %v769 = vrot.slane %v201, %v768
    %771 = vbcast.lane.b32.xlu0 %v769, 256
    %v772 = vpop.permute.xlu0 %771
    %s774 = sor.u32 256, 8
    %775 = vbcast.lane.b32.xlu0 %v769, %s774
    %v776 = vpop.permute.xlu0 %775
    %s778 = sor.u32 256, 16
    %779 = vbcast.lane.b32.xlu0 %v769, %s778
    %v780 = vpop.permute.xlu0 %779
    %s782 = sor.u32 256, 24
    %783 = vbcast.lane.b32.xlu0 %v769, %s782
    %v784 = vpop.permute.xlu0 %783
    %s786 = sor.u32 256, 32
    %787 = vbcast.lane.b32.xlu0 %v769, %s786
    %v788 = vpop.permute.xlu0 %787
    %s790 = sor.u32 256, 40
    %791 = vbcast.lane.b32.xlu0 %v769, %s790
    %v792 = vpop.permute.xlu0 %791
    %s794 = sor.u32 256, 48
    %795 = vbcast.lane.b32.xlu0 %v769, %s794
    %v796 = vpop.permute.xlu0 %795
    %s798 = sor.u32 256, 56
    %799 = vbcast.lane.b32.xlu0 %v769, %s798
    %v800 = vpop.permute.xlu0 %799
    %s802 = sor.u32 256, 64
    %803 = vbcast.lane.b32.xlu0 %v769, %s802
    %v804 = vpop.permute.xlu0 %803
    %s806 = sor.u32 256, 72
    %807 = vbcast.lane.b32.xlu0 %v769, %s806
    %v808 = vpop.permute.xlu0 %807
    %s810 = sor.u32 256, 80
    %811 = vbcast.lane.b32.xlu0 %v769, %s810
    %v812 = vpop.permute.xlu0 %811
    %s814 = sor.u32 256, 88
    %815 = vbcast.lane.b32.xlu0 %v769, %s814
    %v816 = vpop.permute.xlu0 %815
    %s818 = sor.u32 256, 96
    %819 = vbcast.lane.b32.xlu0 %v769, %s818
    %v820 = vpop.permute.xlu0 %819
    %s822 = sor.u32 256, 104
    %823 = vbcast.lane.b32.xlu0 %v769, %s822
    %v824 = vpop.permute.xlu0 %823
    %s826 = sor.u32 256, 112
    %827 = vbcast.lane.b32.xlu0 %v769, %s826
    %v828 = vpop.permute.xlu0 %827
    %s830 = sor.u32 256, 120
    %831 = vbcast.lane.b32.xlu0 %v769, %s830
    %v832 = vpop.permute.xlu0 %831
    %v833 = vlaneseq
    %v834 = vshrl.u32 %v833, 7
    %v835 = vsub.s32 5, %v834
    %v836 = vrot.slane %v201, %v835
    %838 = vbcast.lane.b32.xlu0 %v836, 256
    %v839 = vpop.permute.xlu0 %838
    %s841 = sor.u32 256, 8
    %842 = vbcast.lane.b32.xlu0 %v836, %s841
    %v843 = vpop.permute.xlu0 %842
    %s845 = sor.u32 256, 16
    %846 = vbcast.lane.b32.xlu0 %v836, %s845
    %v847 = vpop.permute.xlu0 %846
    %s849 = sor.u32 256, 24
    %850 = vbcast.lane.b32.xlu0 %v836, %s849
    %v851 = vpop.permute.xlu0 %850
    %s853 = sor.u32 256, 32
    %854 = vbcast.lane.b32.xlu0 %v836, %s853
    %v855 = vpop.permute.xlu0 %854
    %s857 = sor.u32 256, 40
    %858 = vbcast.lane.b32.xlu0 %v836, %s857
    %v859 = vpop.permute.xlu0 %858
    %s861 = sor.u32 256, 48
    %862 = vbcast.lane.b32.xlu0 %v836, %s861
    %v863 = vpop.permute.xlu0 %862
    %s865 = sor.u32 256, 56
    %866 = vbcast.lane.b32.xlu0 %v836, %s865
    %v867 = vpop.permute.xlu0 %866
    %s869 = sor.u32 256, 64
    %870 = vbcast.lane.b32.xlu0 %v836, %s869
    %v871 = vpop.permute.xlu0 %870
    %s873 = sor.u32 256, 72
    %874 = vbcast.lane.b32.xlu0 %v836, %s873
    %v875 = vpop.permute.xlu0 %874
    %s877 = sor.u32 256, 80
    %878 = vbcast.lane.b32.xlu0 %v836, %s877
    %v879 = vpop.permute.xlu0 %878
    %s881 = sor.u32 256, 88
    %882 = vbcast.lane.b32.xlu0 %v836, %s881
    %v883 = vpop.permute.xlu0 %882
    %s885 = sor.u32 256, 96
    %886 = vbcast.lane.b32.xlu0 %v836, %s885
    %v887 = vpop.permute.xlu0 %886
    %s889 = sor.u32 256, 104
    %890 = vbcast.lane.b32.xlu0 %v836, %s889
    %v891 = vpop.permute.xlu0 %890
    %s893 = sor.u32 256, 112
    %894 = vbcast.lane.b32.xlu0 %v836, %s893
    %v895 = vpop.permute.xlu0 %894
    %s897 = sor.u32 256, 120
    %898 = vbcast.lane.b32.xlu0 %v836, %s897
    %v899 = vpop.permute.xlu0 %898
    %v900 = vlaneseq
    %v901 = vshrl.u32 %v900, 7
    %v902 = vsub.s32 6, %v901
    %v903 = vrot.slane %v201, %v902
    %905 = vbcast.lane.b32.xlu0 %v903, 256
    %v906 = vpop.permute.xlu0 %905
    %s908 = sor.u32 256, 8
    %909 = vbcast.lane.b32.xlu0 %v903, %s908
    %v910 = vpop.permute.xlu0 %909
    %s912 = sor.u32 256, 16
    %913 = vbcast.lane.b32.xlu0 %v903, %s912
    %v914 = vpop.permute.xlu0 %913
    %s916 = sor.u32 256, 24
    %917 = vbcast.lane.b32.xlu0 %v903, %s916
    %v918 = vpop.permute.xlu0 %917
    %s920 = sor.u32 256, 32
    %921 = vbcast.lane.b32.xlu0 %v903, %s920
    %v922 = vpop.permute.xlu0 %921
    %s924 = sor.u32 256, 40
    %925 = vbcast.lane.b32.xlu0 %v903, %s924
    %v926 = vpop.permute.xlu0 %925
    %s928 = sor.u32 256, 48
    %929 = vbcast.lane.b32.xlu0 %v903, %s928
    %v930 = vpop.permute.xlu0 %929
    %s932 = sor.u32 256, 56
    %933 = vbcast.lane.b32.xlu0 %v903, %s932
    %v934 = vpop.permute.xlu0 %933
    %s936 = sor.u32 256, 64
    %937 = vbcast.lane.b32.xlu0 %v903, %s936
    %v938 = vpop.permute.xlu0 %937
    %s940 = sor.u32 256, 72
    %941 = vbcast.lane.b32.xlu0 %v903, %s940
    %v942 = vpop.permute.xlu0 %941
    %s944 = sor.u32 256, 80
    %945 = vbcast.lane.b32.xlu0 %v903, %s944
    %v946 = vpop.permute.xlu0 %945
    %s948 = sor.u32 256, 88
    %949 = vbcast.lane.b32.xlu0 %v903, %s948
    %v950 = vpop.permute.xlu0 %949
    %s952 = sor.u32 256, 96
    %953 = vbcast.lane.b32.xlu0 %v903, %s952
    %v954 = vpop.permute.xlu0 %953
    %s956 = sor.u32 256, 104
    %957 = vbcast.lane.b32.xlu0 %v903, %s956
    %v958 = vpop.permute.xlu0 %957
    %s960 = sor.u32 256, 112
    %961 = vbcast.lane.b32.xlu0 %v903, %s960
    %v962 = vpop.permute.xlu0 %961
    %s964 = sor.u32 256, 120
    %965 = vbcast.lane.b32.xlu0 %v903, %s964
    %v966 = vpop.permute.xlu0 %965
    %v967 = vlaneseq
    %v968 = vshrl.u32 %v967, 7
    %v969 = vsub.s32 7, %v968
    %v970 = vrot.slane %v201, %v969
    %972 = vbcast.lane.b32.xlu0 %v970, 256
    %v973 = vpop.permute.xlu0 %972
    %s975 = sor.u32 256, 8
    %976 = vbcast.lane.b32.xlu0 %v970, %s975
    %v977 = vpop.permute.xlu0 %976
    %s979 = sor.u32 256, 16
    %980 = vbcast.lane.b32.xlu0 %v970, %s979
    %v981 = vpop.permute.xlu0 %980
    %s983 = sor.u32 256, 24
    %984 = vbcast.lane.b32.xlu0 %v970, %s983
    %v985 = vpop.permute.xlu0 %984
    %s987 = sor.u32 256, 32
    %988 = vbcast.lane.b32.xlu0 %v970, %s987
    %v989 = vpop.permute.xlu0 %988
    %s991 = sor.u32 256, 40
    %992 = vbcast.lane.b32.xlu0 %v970, %s991
    %v993 = vpop.permute.xlu0 %992
    %s995 = sor.u32 256, 48
    %996 = vbcast.lane.b32.xlu0 %v970, %s995
    %v997 = vpop.permute.xlu0 %996
    %s999 = sor.u32 256, 56
    %1000 = vbcast.lane.b32.xlu0 %v970, %s999
    %v1001 = vpop.permute.xlu0 %1000
    %s1003 = sor.u32 256, 64
    %1004 = vbcast.lane.b32.xlu0 %v970, %s1003
    %v1005 = vpop.permute.xlu0 %1004
    %s1007 = sor.u32 256, 72
    %1008 = vbcast.lane.b32.xlu0 %v970, %s1007
    %v1009 = vpop.permute.xlu0 %1008
    %s1011 = sor.u32 256, 80
    %1012 = vbcast.lane.b32.xlu0 %v970, %s1011
    %v1013 = vpop.permute.xlu0 %1012
    %s1015 = sor.u32 256, 88
    %1016 = vbcast.lane.b32.xlu0 %v970, %s1015
    %v1017 = vpop.permute.xlu0 %1016
    %s1019 = sor.u32 256, 96
    %1020 = vbcast.lane.b32.xlu0 %v970, %s1019
    %v1021 = vpop.permute.xlu0 %1020
    %s1023 = sor.u32 256, 104
    %1024 = vbcast.lane.b32.xlu0 %v970, %s1023
    %v1025 = vpop.permute.xlu0 %1024
    %s1027 = sor.u32 256, 112
    %1028 = vbcast.lane.b32.xlu0 %v970, %s1027
    %v1029 = vpop.permute.xlu0 %1028
    %s1031 = sor.u32 256, 120
    %1032 = vbcast.lane.b32.xlu0 %v970, %s1031
    %v1033 = vpop.permute.xlu0 %1032
    %v1035 = vlaneseq
    %v1036 = vshrl.u32 %v1035, 7
    %v1037 = vsub.s32 0, %v1036
    %v1038 = vrot.slane %v200, %v1037
    %v1040 = vmul.f32 %v504, %v1038
    %v1041 = vmul.f32 %v508, %v1038
    %v1042 = vmul.f32 %v512, %v1038
    %v1043 = vmul.f32 %v516, %v1038
    %v1044 = vmul.f32 %v520, %v1038
    %v1045 = vmul.f32 %v524, %v1038
    %v1046 = vmul.f32 %v528, %v1038
    %v1047 = vmul.f32 %v532, %v1038
    %v1048 = vmul.f32 %v536, %v1038
    %v1049 = vmul.f32 %v540, %v1038
    %v1050 = vmul.f32 %v544, %v1038
    %v1051 = vmul.f32 %v548, %v1038
    %v1052 = vmul.f32 %v552, %v1038
    %v1053 = vmul.f32 %v556, %v1038
    %v1054 = vmul.f32 %v560, %v1038
    %v1055 = vmul.f32 %v564, %v1038
    %v1056 = vmul.f32 %v571, %v1038
    %v1057 = vmul.f32 %v575, %v1038
    %v1058 = vmul.f32 %v579, %v1038
    %v1059 = vmul.f32 %v583, %v1038
    %v1060 = vmul.f32 %v587, %v1038
    %v1061 = vmul.f32 %v591, %v1038
    %v1062 = vmul.f32 %v595, %v1038
    %v1063 = vmul.f32 %v599, %v1038
    %v1064 = vmul.f32 %v603, %v1038
    %v1065 = vmul.f32 %v607, %v1038
    %v1066 = vmul.f32 %v611, %v1038
    %v1067 = vmul.f32 %v615, %v1038
    %v1068 = vmul.f32 %v619, %v1038
    %v1069 = vmul.f32 %v623, %v1038
    %v1070 = vmul.f32 %v627, %v1038
    %v1071 = vmul.f32 %v631, %v1038
    %v1072 = vmul.f32 %v638, %v1038
    %v1073 = vmul.f32 %v642, %v1038
    %v1074 = vmul.f32 %v646, %v1038
    %v1075 = vmul.f32 %v650, %v1038
    %v1076 = vmul.f32 %v654, %v1038
    %v1077 = vmul.f32 %v658, %v1038
    %v1078 = vmul.f32 %v662, %v1038
    %v1079 = vmul.f32 %v666, %v1038
    %v1080 = vmul.f32 %v670, %v1038
    %v1081 = vmul.f32 %v674, %v1038
    %v1082 = vmul.f32 %v678, %v1038
    %v1083 = vmul.f32 %v682, %v1038
    %v1084 = vmul.f32 %v686, %v1038
    %v1085 = vmul.f32 %v690, %v1038
    %v1086 = vmul.f32 %v694, %v1038
    %v1087 = vmul.f32 %v698, %v1038
    %v1088 = vmul.f32 %v705, %v1038
    %v1089 = vmul.f32 %v709, %v1038
    %v1090 = vmul.f32 %v713, %v1038
    %v1091 = vmul.f32 %v717, %v1038
    %v1092 = vmul.f32 %v721, %v1038
    %v1093 = vmul.f32 %v725, %v1038
    %v1094 = vmul.f32 %v729, %v1038
    %v1095 = vmul.f32 %v733, %v1038
    %v1096 = vmul.f32 %v737, %v1038
    %v1097 = vmul.f32 %v741, %v1038
    %v1098 = vmul.f32 %v745, %v1038
    %v1099 = vmul.f32 %v749, %v1038
    %v1100 = vmul.f32 %v753, %v1038
    %v1101 = vmul.f32 %v757, %v1038
    %v1102 = vmul.f32 %v761, %v1038
    %v1103 = vmul.f32 %v765, %v1038
    %v1104 = vmul.f32 %v772, %v1038
    %v1105 = vmul.f32 %v776, %v1038
    %v1106 = vmul.f32 %v780, %v1038
    %v1107 = vmul.f32 %v784, %v1038
    %v1108 = vmul.f32 %v788, %v1038
    %v1109 = vmul.f32 %v792, %v1038
    %v1110 = vmul.f32 %v796, %v1038
    %v1111 = vmul.f32 %v800, %v1038
    %v1112 = vmul.f32 %v804, %v1038
    %v1113 = vmul.f32 %v808, %v1038
    %v1114 = vmul.f32 %v812, %v1038
    %v1115 = vmul.f32 %v816, %v1038
    %v1116 = vmul.f32 %v820, %v1038
    %v1117 = vmul.f32 %v824, %v1038
    %v1118 = vmul.f32 %v828, %v1038
    %v1119 = vmul.f32 %v832, %v1038
    %v1120 = vmul.f32 %v839, %v1038
    %v1121 = vmul.f32 %v843, %v1038
    %v1122 = vmul.f32 %v847, %v1038
    %v1123 = vmul.f32 %v851, %v1038
    %v1124 = vmul.f32 %v855, %v1038
    %v1125 = vmul.f32 %v859, %v1038
    %v1126 = vmul.f32 %v863, %v1038
    %v1127 = vmul.f32 %v867, %v1038
    %v1128 = vmul.f32 %v871, %v1038
    %v1129 = vmul.f32 %v875, %v1038
    %v1130 = vmul.f32 %v879, %v1038
    %v1131 = vmul.f32 %v883, %v1038
    %v1132 = vmul.f32 %v887, %v1038
    %v1133 = vmul.f32 %v891, %v1038
    %v1134 = vmul.f32 %v895, %v1038
    %v1135 = vmul.f32 %v899, %v1038
    %v1136 = vmul.f32 %v906, %v1038
    %v1137 = vmul.f32 %v910, %v1038
    %v1138 = vmul.f32 %v914, %v1038
    %v1139 = vmul.f32 %v918, %v1038
    %v1140 = vmul.f32 %v922, %v1038
    %v1141 = vmul.f32 %v926, %v1038
    %v1142 = vmul.f32 %v930, %v1038
    %v1143 = vmul.f32 %v934, %v1038
    %v1144 = vmul.f32 %v938, %v1038
    %v1145 = vmul.f32 %v942, %v1038
    %v1146 = vmul.f32 %v946, %v1038
    %v1147 = vmul.f32 %v950, %v1038
    %v1148 = vmul.f32 %v954, %v1038
    %v1149 = vmul.f32 %v958, %v1038
    %v1150 = vmul.f32 %v962, %v1038
    %v1151 = vmul.f32 %v966, %v1038
    %v1152 = vmul.f32 %v973, %v1038
    %v1153 = vmul.f32 %v977, %v1038
    %v1154 = vmul.f32 %v981, %v1038
    %v1155 = vmul.f32 %v985, %v1038
    %v1156 = vmul.f32 %v989, %v1038
    %v1157 = vmul.f32 %v993, %v1038
    %v1158 = vmul.f32 %v997, %v1038
    %v1159 = vmul.f32 %v1001, %v1038
    %v1160 = vmul.f32 %v1005, %v1038
    %v1161 = vmul.f32 %v1009, %v1038
    %v1162 = vmul.f32 %v1013, %v1038
    %v1163 = vmul.f32 %v1017, %v1038
    %v1164 = vmul.f32 %v1021, %v1038
    %v1165 = vmul.f32 %v1025, %v1038
    %v1166 = vmul.f32 %v1029, %v1038
    %v1167 = vmul.f32 %v1033, %v1038
    %v1168 = vadd.f32 %v370, %v1040
    %v1169 = vadd.f32 %v371, %v1041
    %v1170 = vadd.f32 %v372, %v1042
    %v1171 = vadd.f32 %v373, %v1043
    %v1172 = vadd.f32 %v374, %v1044
    %v1173 = vadd.f32 %v375, %v1045
    %v1174 = vadd.f32 %v376, %v1046
    %v1175 = vadd.f32 %v377, %v1047
    %v1176 = vadd.f32 %v378, %v1048
    %v1177 = vadd.f32 %v379, %v1049
    %v1178 = vadd.f32 %v380, %v1050
    %v1179 = vadd.f32 %v381, %v1051
    %v1180 = vadd.f32 %v382, %v1052
    %v1181 = vadd.f32 %v383, %v1053
    %v1182 = vadd.f32 %v384, %v1054
    %v1183 = vadd.f32 %v385, %v1055
    %v1184 = vadd.f32 %v386, %v1056
    %v1185 = vadd.f32 %v387, %v1057
    %v1186 = vadd.f32 %v388, %v1058
    %v1187 = vadd.f32 %v389, %v1059
    %v1188 = vadd.f32 %v390, %v1060
    %v1189 = vadd.f32 %v391, %v1061
    %v1190 = vadd.f32 %v392, %v1062
    %v1191 = vadd.f32 %v393, %v1063
    %v1192 = vadd.f32 %v394, %v1064
    %v1193 = vadd.f32 %v395, %v1065
    %v1194 = vadd.f32 %v396, %v1066
    %v1195 = vadd.f32 %v397, %v1067
    %v1196 = vadd.f32 %v398, %v1068
    %v1197 = vadd.f32 %v399, %v1069
    %v1198 = vadd.f32 %v400, %v1070
    %v1199 = vadd.f32 %v401, %v1071
    %v1200 = vadd.f32 %v402, %v1072
    %v1201 = vadd.f32 %v403, %v1073
    %v1202 = vadd.f32 %v404, %v1074
    %v1203 = vadd.f32 %v405, %v1075
    %v1204 = vadd.f32 %v406, %v1076
    %v1205 = vadd.f32 %v407, %v1077
    %v1206 = vadd.f32 %v408, %v1078
    %v1207 = vadd.f32 %v409, %v1079
    %v1208 = vadd.f32 %v410, %v1080
    %v1209 = vadd.f32 %v411, %v1081
    %v1210 = vadd.f32 %v412, %v1082
    %v1211 = vadd.f32 %v413, %v1083
    %v1212 = vadd.f32 %v414, %v1084
    %v1213 = vadd.f32 %v415, %v1085
    %v1214 = vadd.f32 %v416, %v1086
    %v1215 = vadd.f32 %v417, %v1087
    %v1216 = vadd.f32 %v418, %v1088
    %v1217 = vadd.f32 %v419, %v1089
    %v1218 = vadd.f32 %v420, %v1090
    %v1219 = vadd.f32 %v421, %v1091
    %v1220 = vadd.f32 %v422, %v1092
    %v1221 = vadd.f32 %v423, %v1093
    %v1222 = vadd.f32 %v424, %v1094
    %v1223 = vadd.f32 %v425, %v1095
    %v1224 = vadd.f32 %v426, %v1096
    %v1225 = vadd.f32 %v427, %v1097
    %v1226 = vadd.f32 %v428, %v1098
    %v1227 = vadd.f32 %v429, %v1099
    %v1228 = vadd.f32 %v430, %v1100
    %v1229 = vadd.f32 %v431, %v1101
    %v1230 = vadd.f32 %v432, %v1102
    %v1231 = vadd.f32 %v433, %v1103
    %v1232 = vadd.f32 %v434, %v1104
    %v1233 = vadd.f32 %v435, %v1105
    %v1234 = vadd.f32 %v436, %v1106
    %v1235 = vadd.f32 %v437, %v1107
    %v1236 = vadd.f32 %v438, %v1108
    %v1237 = vadd.f32 %v439, %v1109
    %v1238 = vadd.f32 %v440, %v1110
    %v1239 = vadd.f32 %v441, %v1111
    %v1240 = vadd.f32 %v442, %v1112
    %v1241 = vadd.f32 %v443, %v1113
    %v1242 = vadd.f32 %v444, %v1114
    %v1243 = vadd.f32 %v445, %v1115
    %v1244 = vadd.f32 %v446, %v1116
    %v1245 = vadd.f32 %v447, %v1117
    %v1246 = vadd.f32 %v448, %v1118
    %v1247 = vadd.f32 %v449, %v1119
    %v1248 = vadd.f32 %v450, %v1120
    %v1249 = vadd.f32 %v451, %v1121
    %v1250 = vadd.f32 %v452, %v1122
    %v1251 = vadd.f32 %v453, %v1123
    %v1252 = vadd.f32 %v454, %v1124
    %v1253 = vadd.f32 %v455, %v1125
    %v1254 = vadd.f32 %v456, %v1126
    %v1255 = vadd.f32 %v457, %v1127
    %v1256 = vadd.f32 %v458, %v1128
    %v1257 = vadd.f32 %v459, %v1129
    %v1258 = vadd.f32 %v460, %v1130
    %v1259 = vadd.f32 %v461, %v1131
    %v1260 = vadd.f32 %v462, %v1132
    %v1261 = vadd.f32 %v463, %v1133
    %v1262 = vadd.f32 %v464, %v1134
    %v1263 = vadd.f32 %v465, %v1135
    %v1264 = vadd.f32 %v466, %v1136
    %v1265 = vadd.f32 %v467, %v1137
    %v1266 = vadd.f32 %v468, %v1138
    %v1267 = vadd.f32 %v469, %v1139
    %v1268 = vadd.f32 %v470, %v1140
    %v1269 = vadd.f32 %v471, %v1141
    %v1270 = vadd.f32 %v472, %v1142
    %v1271 = vadd.f32 %v473, %v1143
    %v1272 = vadd.f32 %v474, %v1144
    %v1273 = vadd.f32 %v475, %v1145
    %v1274 = vadd.f32 %v476, %v1146
    %v1275 = vadd.f32 %v477, %v1147
    %v1276 = vadd.f32 %v478, %v1148
    %v1277 = vadd.f32 %v479, %v1149
    %v1278 = vadd.f32 %v480, %v1150
    %v1279 = vadd.f32 %v481, %v1151
    %v1280 = vadd.f32 %v482, %v1152
    %v1281 = vadd.f32 %v483, %v1153
    %v1282 = vadd.f32 %v484, %v1154
    %v1283 = vadd.f32 %v485, %v1155
    %v1284 = vadd.f32 %v486, %v1156
    %v1285 = vadd.f32 %v487, %v1157
    %v1286 = vadd.f32 %v488, %v1158
    %v1287 = vadd.f32 %v489, %v1159
    %v1288 = vadd.f32 %v490, %v1160
    %v1289 = vadd.f32 %v491, %v1161
    %v1290 = vadd.f32 %v492, %v1162
    %v1291 = vadd.f32 %v493, %v1163
    %v1292 = vadd.f32 %v494, %v1164
    %v1293 = vadd.f32 %v495, %v1165
    %v1294 = vadd.f32 %v496, %v1166
    %v1295 = vadd.f32 %v497, %v1167
    %v1296 = vtanh.pop %v1168
    %v1297 = vtanh.pop %v1169
    %v1298 = vtanh.pop %v1170
    %v1299 = vtanh.pop %v1171
    %v1300 = vtanh.pop %v1172
    %v1301 = vtanh.pop %v1173
    %v1302 = vtanh.pop %v1174
    %v1303 = vtanh.pop %v1175
    %v1304 = vtanh.pop %v1176
    %v1305 = vtanh.pop %v1177
    %v1306 = vtanh.pop %v1178
    %v1307 = vtanh.pop %v1179
    %v1308 = vtanh.pop %v1180
    %v1309 = vtanh.pop %v1181
    %v1310 = vtanh.pop %v1182
    %v1311 = vtanh.pop %v1183
    %v1312 = vtanh.pop %v1184
    %v1313 = vtanh.pop %v1185
    %v1314 = vtanh.pop %v1186
    %v1315 = vtanh.pop %v1187
    %v1316 = vtanh.pop %v1188
    %v1317 = vtanh.pop %v1189
    %v1318 = vtanh.pop %v1190
    %v1319 = vtanh.pop %v1191
    %v1320 = vtanh.pop %v1192
    %v1321 = vtanh.pop %v1193
    %v1322 = vtanh.pop %v1194
    %v1323 = vtanh.pop %v1195
    %v1324 = vtanh.pop %v1196
    %v1325 = vtanh.pop %v1197
    %v1326 = vtanh.pop %v1198
    %v1327 = vtanh.pop %v1199
    %v1328 = vtanh.pop %v1200
    %v1329 = vtanh.pop %v1201
    %v1330 = vtanh.pop %v1202
    %v1331 = vtanh.pop %v1203
    %v1332 = vtanh.pop %v1204
    %v1333 = vtanh.pop %v1205
    %v1334 = vtanh.pop %v1206
    %v1335 = vtanh.pop %v1207
    %v1336 = vtanh.pop %v1208
    %v1337 = vtanh.pop %v1209
    %v1338 = vtanh.pop %v1210
    %v1339 = vtanh.pop %v1211
    %v1340 = vtanh.pop %v1212
    %v1341 = vtanh.pop %v1213
    %v1342 = vtanh.pop %v1214
    %v1343 = vtanh.pop %v1215
    %v1344 = vtanh.pop %v1216
    %v1345 = vtanh.pop %v1217
    %v1346 = vtanh.pop %v1218
    %v1347 = vtanh.pop %v1219
    %v1348 = vtanh.pop %v1220
    %v1349 = vtanh.pop %v1221
    %v1350 = vtanh.pop %v1222
    %v1351 = vtanh.pop %v1223
    %v1352 = vtanh.pop %v1224
    %v1353 = vtanh.pop %v1225
    %v1354 = vtanh.pop %v1226
    %v1355 = vtanh.pop %v1227
    %v1356 = vtanh.pop %v1228
    %v1357 = vtanh.pop %v1229
    %v1358 = vtanh.pop %v1230
    %v1359 = vtanh.pop %v1231
    %v1360 = vtanh.pop %v1232
    %v1361 = vtanh.pop %v1233
    %v1362 = vtanh.pop %v1234
    %v1363 = vtanh.pop %v1235
    %v1364 = vtanh.pop %v1236
    %v1365 = vtanh.pop %v1237
    %v1366 = vtanh.pop %v1238
    %v1367 = vtanh.pop %v1239
    %v1368 = vtanh.pop %v1240
    %v1369 = vtanh.pop %v1241
    %v1370 = vtanh.pop %v1242
    %v1371 = vtanh.pop %v1243
    %v1372 = vtanh.pop %v1244
    %v1373 = vtanh.pop %v1245
    %v1374 = vtanh.pop %v1246
    %v1375 = vtanh.pop %v1247
    %v1376 = vtanh.pop %v1248
    %v1377 = vtanh.pop %v1249
    %v1378 = vtanh.pop %v1250
    %v1379 = vtanh.pop %v1251
    %v1380 = vtanh.pop %v1252
    %v1381 = vtanh.pop %v1253
    %v1382 = vtanh.pop %v1254
    %v1383 = vtanh.pop %v1255
    %v1384 = vtanh.pop %v1256
    %v1385 = vtanh.pop %v1257
    %v1386 = vtanh.pop %v1258
    %v1387 = vtanh.pop %v1259
    %v1388 = vtanh.pop %v1260
    %v1389 = vtanh.pop %v1261
    %v1390 = vtanh.pop %v1262
    %v1391 = vtanh.pop %v1263
    %v1392 = vtanh.pop %v1264
    %v1393 = vtanh.pop %v1265
    %v1394 = vtanh.pop %v1266
    %v1395 = vtanh.pop %v1267
    %v1396 = vtanh.pop %v1268
    %v1397 = vtanh.pop %v1269
    %v1398 = vtanh.pop %v1270
    %v1399 = vtanh.pop %v1271
    %v1400 = vtanh.pop %v1272
    %v1401 = vtanh.pop %v1273
    %v1402 = vtanh.pop %v1274
    %v1403 = vtanh.pop %v1275
    %v1404 = vtanh.pop %v1276
    %v1405 = vtanh.pop %v1277
    %v1406 = vtanh.pop %v1278
    %v1407 = vtanh.pop %v1279
    %v1408 = vtanh.pop %v1280
    %v1409 = vtanh.pop %v1281
    %v1410 = vtanh.pop %v1282
    %v1411 = vtanh.pop %v1283
    %v1412 = vtanh.pop %v1284
    %v1413 = vtanh.pop %v1285
    %v1414 = vtanh.pop %v1286
    %v1415 = vtanh.pop %v1287
    %v1416 = vtanh.pop %v1288
    %v1417 = vtanh.pop %v1289
    %v1418 = vtanh.pop %v1290
    %v1419 = vtanh.pop %v1291
    %v1420 = vtanh.pop %v1292
    %v1421 = vtanh.pop %v1293
    %v1422 = vtanh.pop %v1294
    %v1423 = vtanh.pop %v1295
    %v1425 = vlaneseq
    %v1426 = vshrl.u32 %v1425, 7
    %v1427 = vsub.s32 0, %v1426
    %v1428 = vrot.slane %v199, %v1427
    %v1430 = vmul.f32 %v1296, %v1428
    %v1431 = vmul.f32 %v1297, %v1428
    %v1432 = vmul.f32 %v1298, %v1428
    %v1433 = vmul.f32 %v1299, %v1428
    %v1434 = vmul.f32 %v1300, %v1428
    %v1435 = vmul.f32 %v1301, %v1428
    %v1436 = vmul.f32 %v1302, %v1428
    %v1437 = vmul.f32 %v1303, %v1428
    %v1438 = vmul.f32 %v1304, %v1428
    %v1439 = vmul.f32 %v1305, %v1428
    %v1440 = vmul.f32 %v1306, %v1428
    %v1441 = vmul.f32 %v1307, %v1428
    %v1442 = vmul.f32 %v1308, %v1428
    %v1443 = vmul.f32 %v1309, %v1428
    %v1444 = vmul.f32 %v1310, %v1428
    %v1445 = vmul.f32 %v1311, %v1428
    %v1446 = vmul.f32 %v1312, %v1428
    %v1447 = vmul.f32 %v1313, %v1428
    %v1448 = vmul.f32 %v1314, %v1428
    %v1449 = vmul.f32 %v1315, %v1428
    %v1450 = vmul.f32 %v1316, %v1428
    %v1451 = vmul.f32 %v1317, %v1428
    %v1452 = vmul.f32 %v1318, %v1428
    %v1453 = vmul.f32 %v1319, %v1428
    %v1454 = vmul.f32 %v1320, %v1428
    %v1455 = vmul.f32 %v1321, %v1428
    %v1456 = vmul.f32 %v1322, %v1428
    %v1457 = vmul.f32 %v1323, %v1428
    %v1458 = vmul.f32 %v1324, %v1428
    %v1459 = vmul.f32 %v1325, %v1428
    %v1460 = vmul.f32 %v1326, %v1428
    %v1461 = vmul.f32 %v1327, %v1428
    %v1462 = vmul.f32 %v1328, %v1428
    %v1463 = vmul.f32 %v1329, %v1428
    %v1464 = vmul.f32 %v1330, %v1428
    %v1465 = vmul.f32 %v1331, %v1428
    %v1466 = vmul.f32 %v1332, %v1428
    %v1467 = vmul.f32 %v1333, %v1428
    %v1468 = vmul.f32 %v1334, %v1428
    %v1469 = vmul.f32 %v1335, %v1428
    %v1470 = vmul.f32 %v1336, %v1428
    %v1471 = vmul.f32 %v1337, %v1428
    %v1472 = vmul.f32 %v1338, %v1428
    %v1473 = vmul.f32 %v1339, %v1428
    %v1474 = vmul.f32 %v1340, %v1428
    %v1475 = vmul.f32 %v1341, %v1428
    %v1476 = vmul.f32 %v1342, %v1428
    %v1477 = vmul.f32 %v1343, %v1428
    %v1478 = vmul.f32 %v1344, %v1428
    %v1479 = vmul.f32 %v1345, %v1428
    %v1480 = vmul.f32 %v1346, %v1428
    %v1481 = vmul.f32 %v1347, %v1428
    %v1482 = vmul.f32 %v1348, %v1428
    %v1483 = vmul.f32 %v1349, %v1428
    %v1484 = vmul.f32 %v1350, %v1428
    %v1485 = vmul.f32 %v1351, %v1428
    %v1486 = vmul.f32 %v1352, %v1428
    %v1487 = vmul.f32 %v1353, %v1428
    %v1488 = vmul.f32 %v1354, %v1428
    %v1489 = vmul.f32 %v1355, %v1428
    %v1490 = vmul.f32 %v1356, %v1428
    %v1491 = vmul.f32 %v1357, %v1428
    %v1492 = vmul.f32 %v1358, %v1428
    %v1493 = vmul.f32 %v1359, %v1428
    %v1494 = vmul.f32 %v1360, %v1428
    %v1495 = vmul.f32 %v1361, %v1428
    %v1496 = vmul.f32 %v1362, %v1428
    %v1497 = vmul.f32 %v1363, %v1428
    %v1498 = vmul.f32 %v1364, %v1428
    %v1499 = vmul.f32 %v1365, %v1428
    %v1500 = vmul.f32 %v1366, %v1428
    %v1501 = vmul.f32 %v1367, %v1428
    %v1502 = vmul.f32 %v1368, %v1428
    %v1503 = vmul.f32 %v1369, %v1428
    %v1504 = vmul.f32 %v1370, %v1428
    %v1505 = vmul.f32 %v1371, %v1428
    %v1506 = vmul.f32 %v1372, %v1428
    %v1507 = vmul.f32 %v1373, %v1428
    %v1508 = vmul.f32 %v1374, %v1428
    %v1509 = vmul.f32 %v1375, %v1428
    %v1510 = vmul.f32 %v1376, %v1428
    %v1511 = vmul.f32 %v1377, %v1428
    %v1512 = vmul.f32 %v1378, %v1428
    %v1513 = vmul.f32 %v1379, %v1428
    %v1514 = vmul.f32 %v1380, %v1428
    %v1515 = vmul.f32 %v1381, %v1428
    %v1516 = vmul.f32 %v1382, %v1428
    %v1517 = vmul.f32 %v1383, %v1428
    %v1518 = vmul.f32 %v1384, %v1428
    %v1519 = vmul.f32 %v1385, %v1428
    %v1520 = vmul.f32 %v1386, %v1428
    %v1521 = vmul.f32 %v1387, %v1428
    %v1522 = vmul.f32 %v1388, %v1428
    %v1523 = vmul.f32 %v1389, %v1428
    %v1524 = vmul.f32 %v1390, %v1428
    %v1525 = vmul.f32 %v1391, %v1428
    %v1526 = vmul.f32 %v1392, %v1428
    %v1527 = vmul.f32 %v1393, %v1428
    %v1528 = vmul.f32 %v1394, %v1428
    %v1529 = vmul.f32 %v1395, %v1428
    %v1530 = vmul.f32 %v1396, %v1428
    %v1531 = vmul.f32 %v1397, %v1428
    %v1532 = vmul.f32 %v1398, %v1428
    %v1533 = vmul.f32 %v1399, %v1428
    %v1534 = vmul.f32 %v1400, %v1428
    %v1535 = vmul.f32 %v1401, %v1428
    %v1536 = vmul.f32 %v1402, %v1428
    %v1537 = vmul.f32 %v1403, %v1428
    %v1538 = vmul.f32 %v1404, %v1428
    %v1539 = vmul.f32 %v1405, %v1428
    %v1540 = vmul.f32 %v1406, %v1428
    %v1541 = vmul.f32 %v1407, %v1428
    %v1542 = vmul.f32 %v1408, %v1428
    %v1543 = vmul.f32 %v1409, %v1428
    %v1544 = vmul.f32 %v1410, %v1428
    %v1545 = vmul.f32 %v1411, %v1428
    %v1546 = vmul.f32 %v1412, %v1428
    %v1547 = vmul.f32 %v1413, %v1428
    %v1548 = vmul.f32 %v1414, %v1428
    %v1549 = vmul.f32 %v1415, %v1428
    %v1550 = vmul.f32 %v1416, %v1428
    %v1551 = vmul.f32 %v1417, %v1428
    %v1552 = vmul.f32 %v1418, %v1428
    %v1553 = vmul.f32 %v1419, %v1428
    %v1554 = vmul.f32 %v1420, %v1428
    %v1555 = vmul.f32 %v1421, %v1428
    %v1556 = vmul.f32 %v1422, %v1428
    %v1557 = vmul.f32 %v1423, %v1428
    %v1558 = vsel %vm75, %v1430, 0.0
    %1559 = vadd.xlane.f32.xlu0 %v1558
    %v1560 = vpop.xlane.xlu0 %1559
    %v1561 = vsel %vm75, %v1431, 0.0
    %1562 = vadd.xlane.f32.xlu0 %v1561
    %v1563 = vpop.xlane.xlu0 %1562
    %v1564 = vsel %vm75, %v1432, 0.0
    %1565 = vadd.xlane.f32.xlu0 %v1564
    %v1566 = vpop.xlane.xlu0 %1565
    %v1567 = vsel %vm75, %v1433, 0.0
    %1568 = vadd.xlane.f32.xlu0 %v1567
    %v1569 = vpop.xlane.xlu0 %1568
    %v1570 = vsel %vm75, %v1434, 0.0
    %1571 = vadd.xlane.f32.xlu0 %v1570
    %v1572 = vpop.xlane.xlu0 %1571
    %v1573 = vsel %vm75, %v1435, 0.0
    %1574 = vadd.xlane.f32.xlu0 %v1573
    %v1575 = vpop.xlane.xlu0 %1574
    %v1576 = vsel %vm75, %v1436, 0.0
    %1577 = vadd.xlane.f32.xlu0 %v1576
    %v1578 = vpop.xlane.xlu0 %1577
    %v1579 = vsel %vm75, %v1437, 0.0
    %1580 = vadd.xlane.f32.xlu0 %v1579
    %v1581 = vpop.xlane.xlu0 %1580
    %v1582 = vsel %vm75, %v1438, 0.0
    %1583 = vadd.xlane.f32.xlu0 %v1582
    %v1584 = vpop.xlane.xlu0 %1583
    %v1585 = vsel %vm75, %v1439, 0.0
    %1586 = vadd.xlane.f32.xlu0 %v1585
    %v1587 = vpop.xlane.xlu0 %1586
    %v1588 = vsel %vm75, %v1440, 0.0
    %1589 = vadd.xlane.f32.xlu0 %v1588
    %v1590 = vpop.xlane.xlu0 %1589
    %v1591 = vsel %vm75, %v1441, 0.0
    %1592 = vadd.xlane.f32.xlu0 %v1591
    %v1593 = vpop.xlane.xlu0 %1592
    %v1594 = vsel %vm75, %v1442, 0.0
    %1595 = vadd.xlane.f32.xlu0 %v1594
    %v1596 = vpop.xlane.xlu0 %1595
    %v1597 = vsel %vm75, %v1443, 0.0
    %1598 = vadd.xlane.f32.xlu0 %v1597
    %v1599 = vpop.xlane.xlu0 %1598
    %v1600 = vsel %vm75, %v1444, 0.0
    %1601 = vadd.xlane.f32.xlu0 %v1600
    %v1602 = vpop.xlane.xlu0 %1601
    %v1603 = vsel %vm75, %v1445, 0.0
    %1604 = vadd.xlane.f32.xlu0 %v1603
    %v1605 = vpop.xlane.xlu0 %1604
    %v1606 = vsel %vm75, %v1446, 0.0
    %1607 = vadd.xlane.f32.xlu0 %v1606
    %v1608 = vpop.xlane.xlu0 %1607
    %v1609 = vsel %vm75, %v1447, 0.0
    %1610 = vadd.xlane.f32.xlu0 %v1609
    %v1611 = vpop.xlane.xlu0 %1610
    %v1612 = vsel %vm75, %v1448, 0.0
    %1613 = vadd.xlane.f32.xlu0 %v1612
    %v1614 = vpop.xlane.xlu0 %1613
    %v1615 = vsel %vm75, %v1449, 0.0
    %1616 = vadd.xlane.f32.xlu0 %v1615
    %v1617 = vpop.xlane.xlu0 %1616
    %v1618 = vsel %vm75, %v1450, 0.0
    %1619 = vadd.xlane.f32.xlu0 %v1618
    %v1620 = vpop.xlane.xlu0 %1619
    %v1621 = vsel %vm75, %v1451, 0.0
    %1622 = vadd.xlane.f32.xlu0 %v1621
    %v1623 = vpop.xlane.xlu0 %1622
    %v1624 = vsel %vm75, %v1452, 0.0
    %1625 = vadd.xlane.f32.xlu0 %v1624
    %v1626 = vpop.xlane.xlu0 %1625
    %v1627 = vsel %vm75, %v1453, 0.0
    %1628 = vadd.xlane.f32.xlu0 %v1627
    %v1629 = vpop.xlane.xlu0 %1628
    %v1630 = vsel %vm75, %v1454, 0.0
    %1631 = vadd.xlane.f32.xlu0 %v1630
    %v1632 = vpop.xlane.xlu0 %1631
    %v1633 = vsel %vm75, %v1455, 0.0
    %1634 = vadd.xlane.f32.xlu0 %v1633
    %v1635 = vpop.xlane.xlu0 %1634
    %v1636 = vsel %vm75, %v1456, 0.0
    %1637 = vadd.xlane.f32.xlu0 %v1636
    %v1638 = vpop.xlane.xlu0 %1637
    %v1639 = vsel %vm75, %v1457, 0.0
    %1640 = vadd.xlane.f32.xlu0 %v1639
    %v1641 = vpop.xlane.xlu0 %1640
    %v1642 = vsel %vm75, %v1458, 0.0
    %1643 = vadd.xlane.f32.xlu0 %v1642
    %v1644 = vpop.xlane.xlu0 %1643
    %v1645 = vsel %vm75, %v1459, 0.0
    %1646 = vadd.xlane.f32.xlu0 %v1645
    %v1647 = vpop.xlane.xlu0 %1646
    %v1648 = vsel %vm75, %v1460, 0.0
    %1649 = vadd.xlane.f32.xlu0 %v1648
    %v1650 = vpop.xlane.xlu0 %1649
    %v1651 = vsel %vm75, %v1461, 0.0
    %1652 = vadd.xlane.f32.xlu0 %v1651
    %v1653 = vpop.xlane.xlu0 %1652
    %v1654 = vsel %vm75, %v1462, 0.0
    %1655 = vadd.xlane.f32.xlu0 %v1654
    %v1656 = vpop.xlane.xlu0 %1655
    %v1657 = vsel %vm75, %v1463, 0.0
    %1658 = vadd.xlane.f32.xlu0 %v1657
    %v1659 = vpop.xlane.xlu0 %1658
    %v1660 = vsel %vm75, %v1464, 0.0
    %1661 = vadd.xlane.f32.xlu0 %v1660
    %v1662 = vpop.xlane.xlu0 %1661
    %v1663 = vsel %vm75, %v1465, 0.0
    %1664 = vadd.xlane.f32.xlu0 %v1663
    %v1665 = vpop.xlane.xlu0 %1664
    %v1666 = vsel %vm75, %v1466, 0.0
    %1667 = vadd.xlane.f32.xlu0 %v1666
    %v1668 = vpop.xlane.xlu0 %1667
    %v1669 = vsel %vm75, %v1467, 0.0
    %1670 = vadd.xlane.f32.xlu0 %v1669
    %v1671 = vpop.xlane.xlu0 %1670
    %v1672 = vsel %vm75, %v1468, 0.0
    %1673 = vadd.xlane.f32.xlu0 %v1672
    %v1674 = vpop.xlane.xlu0 %1673
    %v1675 = vsel %vm75, %v1469, 0.0
    %1676 = vadd.xlane.f32.xlu0 %v1675
    %v1677 = vpop.xlane.xlu0 %1676
    %v1678 = vsel %vm75, %v1470, 0.0
    %1679 = vadd.xlane.f32.xlu0 %v1678
    %v1680 = vpop.xlane.xlu0 %1679
    %v1681 = vsel %vm75, %v1471, 0.0
    %1682 = vadd.xlane.f32.xlu0 %v1681
    %v1683 = vpop.xlane.xlu0 %1682
    %v1684 = vsel %vm75, %v1472, 0.0
    %1685 = vadd.xlane.f32.xlu0 %v1684
    %v1686 = vpop.xlane.xlu0 %1685
    %v1687 = vsel %vm75, %v1473, 0.0
    %1688 = vadd.xlane.f32.xlu0 %v1687
    %v1689 = vpop.xlane.xlu0 %1688
    %v1690 = vsel %vm75, %v1474, 0.0
    %1691 = vadd.xlane.f32.xlu0 %v1690
    %v1692 = vpop.xlane.xlu0 %1691
    %v1693 = vsel %vm75, %v1475, 0.0
    %1694 = vadd.xlane.f32.xlu0 %v1693
    %v1695 = vpop.xlane.xlu0 %1694
    %v1696 = vsel %vm75, %v1476, 0.0
    %1697 = vadd.xlane.f32.xlu0 %v1696
    %v1698 = vpop.xlane.xlu0 %1697
    %v1699 = vsel %vm75, %v1477, 0.0
    %1700 = vadd.xlane.f32.xlu0 %v1699
    %v1701 = vpop.xlane.xlu0 %1700
    %v1702 = vsel %vm75, %v1478, 0.0
    %1703 = vadd.xlane.f32.xlu0 %v1702
    %v1704 = vpop.xlane.xlu0 %1703
    %v1705 = vsel %vm75, %v1479, 0.0
    %1706 = vadd.xlane.f32.xlu0 %v1705
    %v1707 = vpop.xlane.xlu0 %1706
    %v1708 = vsel %vm75, %v1480, 0.0
    %1709 = vadd.xlane.f32.xlu0 %v1708
    %v1710 = vpop.xlane.xlu0 %1709
    %v1711 = vsel %vm75, %v1481, 0.0
    %1712 = vadd.xlane.f32.xlu0 %v1711
    %v1713 = vpop.xlane.xlu0 %1712
    %v1714 = vsel %vm75, %v1482, 0.0
    %1715 = vadd.xlane.f32.xlu0 %v1714
    %v1716 = vpop.xlane.xlu0 %1715
    %v1717 = vsel %vm75, %v1483, 0.0
    %1718 = vadd.xlane.f32.xlu0 %v1717
    %v1719 = vpop.xlane.xlu0 %1718
    %v1720 = vsel %vm75, %v1484, 0.0
    %1721 = vadd.xlane.f32.xlu0 %v1720
    %v1722 = vpop.xlane.xlu0 %1721
    %v1723 = vsel %vm75, %v1485, 0.0
    %1724 = vadd.xlane.f32.xlu0 %v1723
    %v1725 = vpop.xlane.xlu0 %1724
    %v1726 = vsel %vm75, %v1486, 0.0
    %1727 = vadd.xlane.f32.xlu0 %v1726
    %v1728 = vpop.xlane.xlu0 %1727
    %v1729 = vsel %vm75, %v1487, 0.0
    %1730 = vadd.xlane.f32.xlu0 %v1729
    %v1731 = vpop.xlane.xlu0 %1730
    %v1732 = vsel %vm75, %v1488, 0.0
    %1733 = vadd.xlane.f32.xlu0 %v1732
    %v1734 = vpop.xlane.xlu0 %1733
    %v1735 = vsel %vm75, %v1489, 0.0
    %1736 = vadd.xlane.f32.xlu0 %v1735
    %v1737 = vpop.xlane.xlu0 %1736
    %v1738 = vsel %vm75, %v1490, 0.0
    %1739 = vadd.xlane.f32.xlu0 %v1738
    %v1740 = vpop.xlane.xlu0 %1739
    %v1741 = vsel %vm75, %v1491, 0.0
    %1742 = vadd.xlane.f32.xlu0 %v1741
    %v1743 = vpop.xlane.xlu0 %1742
    %v1744 = vsel %vm75, %v1492, 0.0
    %1745 = vadd.xlane.f32.xlu0 %v1744
    %v1746 = vpop.xlane.xlu0 %1745
    %v1747 = vsel %vm75, %v1493, 0.0
    %1748 = vadd.xlane.f32.xlu0 %v1747
    %v1749 = vpop.xlane.xlu0 %1748
    %v1750 = vsel %vm75, %v1494, 0.0
    %1751 = vadd.xlane.f32.xlu0 %v1750
    %v1752 = vpop.xlane.xlu0 %1751
    %v1753 = vsel %vm75, %v1495, 0.0
    %1754 = vadd.xlane.f32.xlu0 %v1753
    %v1755 = vpop.xlane.xlu0 %1754
    %v1756 = vsel %vm75, %v1496, 0.0
    %1757 = vadd.xlane.f32.xlu0 %v1756
    %v1758 = vpop.xlane.xlu0 %1757
    %v1759 = vsel %vm75, %v1497, 0.0
    %1760 = vadd.xlane.f32.xlu0 %v1759
    %v1761 = vpop.xlane.xlu0 %1760
    %v1762 = vsel %vm75, %v1498, 0.0
    %1763 = vadd.xlane.f32.xlu0 %v1762
    %v1764 = vpop.xlane.xlu0 %1763
    %v1765 = vsel %vm75, %v1499, 0.0
    %1766 = vadd.xlane.f32.xlu0 %v1765
    %v1767 = vpop.xlane.xlu0 %1766
    %v1768 = vsel %vm75, %v1500, 0.0
    %1769 = vadd.xlane.f32.xlu0 %v1768
    %v1770 = vpop.xlane.xlu0 %1769
    %v1771 = vsel %vm75, %v1501, 0.0
    %1772 = vadd.xlane.f32.xlu0 %v1771
    %v1773 = vpop.xlane.xlu0 %1772
    %v1774 = vsel %vm75, %v1502, 0.0
    %1775 = vadd.xlane.f32.xlu0 %v1774
    %v1776 = vpop.xlane.xlu0 %1775
    %v1777 = vsel %vm75, %v1503, 0.0
    %1778 = vadd.xlane.f32.xlu0 %v1777
    %v1779 = vpop.xlane.xlu0 %1778
    %v1780 = vsel %vm75, %v1504, 0.0
    %1781 = vadd.xlane.f32.xlu0 %v1780
    %v1782 = vpop.xlane.xlu0 %1781
    %v1783 = vsel %vm75, %v1505, 0.0
    %1784 = vadd.xlane.f32.xlu0 %v1783
    %v1785 = vpop.xlane.xlu0 %1784
    %v1786 = vsel %vm75, %v1506, 0.0
    %1787 = vadd.xlane.f32.xlu0 %v1786
    %v1788 = vpop.xlane.xlu0 %1787
    %v1789 = vsel %vm75, %v1507, 0.0
    %1790 = vadd.xlane.f32.xlu0 %v1789
    %v1791 = vpop.xlane.xlu0 %1790
    %v1792 = vsel %vm75, %v1508, 0.0
    %1793 = vadd.xlane.f32.xlu0 %v1792
    %v1794 = vpop.xlane.xlu0 %1793
    %v1795 = vsel %vm75, %v1509, 0.0
    %1796 = vadd.xlane.f32.xlu0 %v1795
    %v1797 = vpop.xlane.xlu0 %1796
    %v1798 = vsel %vm75, %v1510, 0.0
    %1799 = vadd.xlane.f32.xlu0 %v1798
    %v1800 = vpop.xlane.xlu0 %1799
    %v1801 = vsel %vm75, %v1511, 0.0
    %1802 = vadd.xlane.f32.xlu0 %v1801
    %v1803 = vpop.xlane.xlu0 %1802
    %v1804 = vsel %vm75, %v1512, 0.0
    %1805 = vadd.xlane.f32.xlu0 %v1804
    %v1806 = vpop.xlane.xlu0 %1805
    %v1807 = vsel %vm75, %v1513, 0.0
    %1808 = vadd.xlane.f32.xlu0 %v1807
    %v1809 = vpop.xlane.xlu0 %1808
    %v1810 = vsel %vm75, %v1514, 0.0
    %1811 = vadd.xlane.f32.xlu0 %v1810
    %v1812 = vpop.xlane.xlu0 %1811
    %v1813 = vsel %vm75, %v1515, 0.0
    %1814 = vadd.xlane.f32.xlu0 %v1813
    %v1815 = vpop.xlane.xlu0 %1814
    %v1816 = vsel %vm75, %v1516, 0.0
    %1817 = vadd.xlane.f32.xlu0 %v1816
    %v1818 = vpop.xlane.xlu0 %1817
    %v1819 = vsel %vm75, %v1517, 0.0
    %1820 = vadd.xlane.f32.xlu0 %v1819
    %v1821 = vpop.xlane.xlu0 %1820
    %v1822 = vsel %vm75, %v1518, 0.0
    %1823 = vadd.xlane.f32.xlu0 %v1822
    %v1824 = vpop.xlane.xlu0 %1823
    %v1825 = vsel %vm75, %v1519, 0.0
    %1826 = vadd.xlane.f32.xlu0 %v1825
    %v1827 = vpop.xlane.xlu0 %1826
    %v1828 = vsel %vm75, %v1520, 0.0
    %1829 = vadd.xlane.f32.xlu0 %v1828
    %v1830 = vpop.xlane.xlu0 %1829
    %v1831 = vsel %vm75, %v1521, 0.0
    %1832 = vadd.xlane.f32.xlu0 %v1831
    %v1833 = vpop.xlane.xlu0 %1832
    %v1834 = vsel %vm75, %v1522, 0.0
    %1835 = vadd.xlane.f32.xlu0 %v1834
    %v1836 = vpop.xlane.xlu0 %1835
    %v1837 = vsel %vm75, %v1523, 0.0
    %1838 = vadd.xlane.f32.xlu0 %v1837
    %v1839 = vpop.xlane.xlu0 %1838
    %v1840 = vsel %vm75, %v1524, 0.0
    %1841 = vadd.xlane.f32.xlu0 %v1840
    %v1842 = vpop.xlane.xlu0 %1841
    %v1843 = vsel %vm75, %v1525, 0.0
    %1844 = vadd.xlane.f32.xlu0 %v1843
    %v1845 = vpop.xlane.xlu0 %1844
    %v1846 = vsel %vm75, %v1526, 0.0
    %1847 = vadd.xlane.f32.xlu0 %v1846
    %v1848 = vpop.xlane.xlu0 %1847
    %v1849 = vsel %vm75, %v1527, 0.0
    %1850 = vadd.xlane.f32.xlu0 %v1849
    %v1851 = vpop.xlane.xlu0 %1850
    %v1852 = vsel %vm75, %v1528, 0.0
    %1853 = vadd.xlane.f32.xlu0 %v1852
    %v1854 = vpop.xlane.xlu0 %1853
    %v1855 = vsel %vm75, %v1529, 0.0
    %1856 = vadd.xlane.f32.xlu0 %v1855
    %v1857 = vpop.xlane.xlu0 %1856
    %v1858 = vsel %vm75, %v1530, 0.0
    %1859 = vadd.xlane.f32.xlu0 %v1858
    %v1860 = vpop.xlane.xlu0 %1859
    %v1861 = vsel %vm75, %v1531, 0.0
    %1862 = vadd.xlane.f32.xlu0 %v1861
    %v1863 = vpop.xlane.xlu0 %1862
    %v1864 = vsel %vm75, %v1532, 0.0
    %1865 = vadd.xlane.f32.xlu0 %v1864
    %v1866 = vpop.xlane.xlu0 %1865
    %v1867 = vsel %vm75, %v1533, 0.0
    %1868 = vadd.xlane.f32.xlu0 %v1867
    %v1869 = vpop.xlane.xlu0 %1868
    %v1870 = vsel %vm75, %v1534, 0.0
    %1871 = vadd.xlane.f32.xlu0 %v1870
    %v1872 = vpop.xlane.xlu0 %1871
    %v1873 = vsel %vm75, %v1535, 0.0
    %1874 = vadd.xlane.f32.xlu0 %v1873
    %v1875 = vpop.xlane.xlu0 %1874
    %v1876 = vsel %vm75, %v1536, 0.0
    %1877 = vadd.xlane.f32.xlu0 %v1876
    %v1878 = vpop.xlane.xlu0 %1877
    %v1879 = vsel %vm75, %v1537, 0.0
    %1880 = vadd.xlane.f32.xlu0 %v1879
    %v1881 = vpop.xlane.xlu0 %1880
    %v1882 = vsel %vm75, %v1538, 0.0
    %1883 = vadd.xlane.f32.xlu0 %v1882
    %v1884 = vpop.xlane.xlu0 %1883
    %v1885 = vsel %vm75, %v1539, 0.0
    %1886 = vadd.xlane.f32.xlu0 %v1885
    %v1887 = vpop.xlane.xlu0 %1886
    %v1888 = vsel %vm75, %v1540, 0.0
    %1889 = vadd.xlane.f32.xlu0 %v1888
    %v1890 = vpop.xlane.xlu0 %1889
    %v1891 = vsel %vm75, %v1541, 0.0
    %1892 = vadd.xlane.f32.xlu0 %v1891
    %v1893 = vpop.xlane.xlu0 %1892
    %v1894 = vsel %vm75, %v1542, 0.0
    %1895 = vadd.xlane.f32.xlu0 %v1894
    %v1896 = vpop.xlane.xlu0 %1895
    %v1897 = vsel %vm75, %v1543, 0.0
    %1898 = vadd.xlane.f32.xlu0 %v1897
    %v1899 = vpop.xlane.xlu0 %1898
    %v1900 = vsel %vm75, %v1544, 0.0
    %1901 = vadd.xlane.f32.xlu0 %v1900
    %v1902 = vpop.xlane.xlu0 %1901
    %v1903 = vsel %vm75, %v1545, 0.0
    %1904 = vadd.xlane.f32.xlu0 %v1903
    %v1905 = vpop.xlane.xlu0 %1904
    %v1906 = vsel %vm75, %v1546, 0.0
    %1907 = vadd.xlane.f32.xlu0 %v1906
    %v1908 = vpop.xlane.xlu0 %1907
    %v1909 = vsel %vm75, %v1547, 0.0
    %1910 = vadd.xlane.f32.xlu0 %v1909
    %v1911 = vpop.xlane.xlu0 %1910
    %v1912 = vsel %vm75, %v1548, 0.0
    %1913 = vadd.xlane.f32.xlu0 %v1912
    %v1914 = vpop.xlane.xlu0 %1913
    %v1915 = vsel %vm75, %v1549, 0.0
    %1916 = vadd.xlane.f32.xlu0 %v1915
    %v1917 = vpop.xlane.xlu0 %1916
    %v1918 = vsel %vm75, %v1550, 0.0
    %1919 = vadd.xlane.f32.xlu0 %v1918
    %v1920 = vpop.xlane.xlu0 %1919
    %v1921 = vsel %vm75, %v1551, 0.0
    %1922 = vadd.xlane.f32.xlu0 %v1921
    %v1923 = vpop.xlane.xlu0 %1922
    %v1924 = vsel %vm75, %v1552, 0.0
    %1925 = vadd.xlane.f32.xlu0 %v1924
    %v1926 = vpop.xlane.xlu0 %1925
    %v1927 = vsel %vm75, %v1553, 0.0
    %1928 = vadd.xlane.f32.xlu0 %v1927
    %v1929 = vpop.xlane.xlu0 %1928
    %v1930 = vsel %vm75, %v1554, 0.0
    %1931 = vadd.xlane.f32.xlu0 %v1930
    %v1932 = vpop.xlane.xlu0 %1931
    %v1933 = vsel %vm75, %v1555, 0.0
    %1934 = vadd.xlane.f32.xlu0 %v1933
    %v1935 = vpop.xlane.xlu0 %1934
    %v1936 = vsel %vm75, %v1556, 0.0
    %1937 = vadd.xlane.f32.xlu0 %v1936
    %v1938 = vpop.xlane.xlu0 %1937
    %v1939 = vsel %vm75, %v1557, 0.0
    %1940 = vadd.xlane.f32.xlu0 %v1939
    %v1941 = vpop.xlane.xlu0 %1940
    %v2070 = vlaneseq
    %v2071 = vand.u32 %v2070, 127
    %v2072 = vlaneseq
    %v2073 = vshrl.u32 %v2072, 7
    %v2074 = vsub.s32 %v2071, %v2073
    %v2075 = vrot.slane %v1560, %v2074
    %v2076 = vadd.s32 %v2071, 4294967288
    %v2077 = vlaneseq
    %v2078 = vshrl.u32 %v2077, 7
    %v2079 = vsub.s32 %v2076, %v2078
    %v2080 = vrot.slane %v1563, %v2079
    %vm2081 = vcmask 130112
    %v2082 = vsel %vm2081, %v2080, %v2075
    %v2083 = vadd.s32 %v2071, 4294967280
    %v2084 = vlaneseq
    %v2085 = vshrl.u32 %v2084, 7
    %v2086 = vsub.s32 %v2083, %v2085
    %v2087 = vrot.slane %v1566, %v2086
    %vm2088 = vcmask 195712
    %v2089 = vsel %vm2088, %v2087, %v2082
    %v2090 = vadd.s32 %v2071, 4294967272
    %v2091 = vlaneseq
    %v2092 = vshrl.u32 %v2091, 7
    %v2093 = vsub.s32 %v2090, %v2092
    %v2094 = vrot.slane %v1569, %v2093
    %vm2095 = vcmask 261312
    %v2096 = vsel %vm2095, %v2094, %v2089
    %v2097 = vadd.s32 %v2071, 4294967264
    %v2098 = vlaneseq
    %v2099 = vshrl.u32 %v2098, 7
    %v2100 = vsub.s32 %v2097, %v2099
    %v2101 = vrot.slane %v1572, %v2100
    %vm2102 = vcmask 326912
    %v2103 = vsel %vm2102, %v2101, %v2096
    %v2104 = vadd.s32 %v2071, 4294967256
    %v2105 = vlaneseq
    %v2106 = vshrl.u32 %v2105, 7
    %v2107 = vsub.s32 %v2104, %v2106
    %v2108 = vrot.slane %v1575, %v2107
    %vm2109 = vcmask 392512
    %v2110 = vsel %vm2109, %v2108, %v2103
    %v2111 = vadd.s32 %v2071, 4294967248
    %v2112 = vlaneseq
    %v2113 = vshrl.u32 %v2112, 7
    %v2114 = vsub.s32 %v2111, %v2113
    %v2115 = vrot.slane %v1578, %v2114
    %vm2116 = vcmask 458112
    %v2117 = vsel %vm2116, %v2115, %v2110
    %v2118 = vadd.s32 %v2071, 4294967240
    %v2119 = vlaneseq
    %v2120 = vshrl.u32 %v2119, 7
    %v2121 = vsub.s32 %v2118, %v2120
    %v2122 = vrot.slane %v1581, %v2121
    %vm2123 = vcmask 523712
    %v2124 = vsel %vm2123, %v2122, %v2117
    %v2125 = vadd.s32 %v2071, 4294967232
    %v2126 = vlaneseq
    %v2127 = vshrl.u32 %v2126, 7
    %v2128 = vsub.s32 %v2125, %v2127
    %v2129 = vrot.slane %v1584, %v2128
    %vm2130 = vcmask 589312
    %v2131 = vsel %vm2130, %v2129, %v2124
    %v2132 = vadd.s32 %v2071, 4294967224
    %v2133 = vlaneseq
    %v2134 = vshrl.u32 %v2133, 7
    %v2135 = vsub.s32 %v2132, %v2134
    %v2136 = vrot.slane %v1587, %v2135
    %vm2137 = vcmask 654912
    %v2138 = vsel %vm2137, %v2136, %v2131
    %v2139 = vadd.s32 %v2071, 4294967216
    %v2140 = vlaneseq
    %v2141 = vshrl.u32 %v2140, 7
    %v2142 = vsub.s32 %v2139, %v2141
    %v2143 = vrot.slane %v1590, %v2142
    %vm2144 = vcmask 720512
    %v2145 = vsel %vm2144, %v2143, %v2138
    %v2146 = vadd.s32 %v2071, 4294967208
    %v2147 = vlaneseq
    %v2148 = vshrl.u32 %v2147, 7
    %v2149 = vsub.s32 %v2146, %v2148
    %v2150 = vrot.slane %v1593, %v2149
    %vm2151 = vcmask 786112
    %v2152 = vsel %vm2151, %v2150, %v2145
    %v2153 = vadd.s32 %v2071, 4294967200
    %v2154 = vlaneseq
    %v2155 = vshrl.u32 %v2154, 7
    %v2156 = vsub.s32 %v2153, %v2155
    %v2157 = vrot.slane %v1596, %v2156
    %vm2158 = vcmask 851712
    %v2159 = vsel %vm2158, %v2157, %v2152
    %v2160 = vadd.s32 %v2071, 4294967192
    %v2161 = vlaneseq
    %v2162 = vshrl.u32 %v2161, 7
    %v2163 = vsub.s32 %v2160, %v2162
    %v2164 = vrot.slane %v1599, %v2163
    %vm2165 = vcmask 917312
    %v2166 = vsel %vm2165, %v2164, %v2159
    %v2167 = vadd.s32 %v2071, 4294967184
    %v2168 = vlaneseq
    %v2169 = vshrl.u32 %v2168, 7
    %v2170 = vsub.s32 %v2167, %v2169
    %v2171 = vrot.slane %v1602, %v2170
    %vm2172 = vcmask 982912
    %v2173 = vsel %vm2172, %v2171, %v2166
    %v2174 = vadd.s32 %v2071, 4294967176
    %v2175 = vlaneseq
    %v2176 = vshrl.u32 %v2175, 7
    %v2177 = vsub.s32 %v2174, %v2176
    %v2178 = vrot.slane %v1605, %v2177
    %vm2179 = vcmask 1048512
    %v2180 = vsel %vm2179, %v2178, %v2173
    %v2181 = vlaneseq
    %v2182 = vshrl.u32 %v2181, 7
    %v2183 = vsub.s32 %v2071, %v2182
    %v2184 = vrot.slane %v1608, %v2183
    %v2185 = vlaneseq
    %v2186 = vshrl.u32 %v2185, 7
    %v2187 = vsub.s32 %v2076, %v2186
    %v2188 = vrot.slane %v1611, %v2187
    %v2189 = vsel %vm2081, %v2188, %v2184
    %v2190 = vlaneseq
    %v2191 = vshrl.u32 %v2190, 7
    %v2192 = vsub.s32 %v2083, %v2191
    %v2193 = vrot.slane %v1614, %v2192
    %v2194 = vsel %vm2088, %v2193, %v2189
    %v2195 = vlaneseq
    %v2196 = vshrl.u32 %v2195, 7
    %v2197 = vsub.s32 %v2090, %v2196
    %v2198 = vrot.slane %v1617, %v2197
    %v2199 = vsel %vm2095, %v2198, %v2194
    %v2200 = vlaneseq
    %v2201 = vshrl.u32 %v2200, 7
    %v2202 = vsub.s32 %v2097, %v2201
    %v2203 = vrot.slane %v1620, %v2202
    %v2204 = vsel %vm2102, %v2203, %v2199
    %v2205 = vlaneseq
    %v2206 = vshrl.u32 %v2205, 7
    %v2207 = vsub.s32 %v2104, %v2206
    %v2208 = vrot.slane %v1623, %v2207
    %v2209 = vsel %vm2109, %v2208, %v2204
    %v2210 = vlaneseq
    %v2211 = vshrl.u32 %v2210, 7
    %v2212 = vsub.s32 %v2111, %v2211
    %v2213 = vrot.slane %v1626, %v2212
    %v2214 = vsel %vm2116, %v2213, %v2209
    %v2215 = vlaneseq
    %v2216 = vshrl.u32 %v2215, 7
    %v2217 = vsub.s32 %v2118, %v2216
    %v2218 = vrot.slane %v1629, %v2217
    %v2219 = vsel %vm2123, %v2218, %v2214
    %v2220 = vlaneseq
    %v2221 = vshrl.u32 %v2220, 7
    %v2222 = vsub.s32 %v2125, %v2221
    %v2223 = vrot.slane %v1632, %v2222
    %v2224 = vsel %vm2130, %v2223, %v2219
    %v2225 = vlaneseq
    %v2226 = vshrl.u32 %v2225, 7
    %v2227 = vsub.s32 %v2132, %v2226
    %v2228 = vrot.slane %v1635, %v2227
    %v2229 = vsel %vm2137, %v2228, %v2224
    %v2230 = vlaneseq
    %v2231 = vshrl.u32 %v2230, 7
    %v2232 = vsub.s32 %v2139, %v2231
    %v2233 = vrot.slane %v1638, %v2232
    %v2234 = vsel %vm2144, %v2233, %v2229
    %v2235 = vlaneseq
    %v2236 = vshrl.u32 %v2235, 7
    %v2237 = vsub.s32 %v2146, %v2236
    %v2238 = vrot.slane %v1641, %v2237
    %v2239 = vsel %vm2151, %v2238, %v2234
    %v2240 = vlaneseq
    %v2241 = vshrl.u32 %v2240, 7
    %v2242 = vsub.s32 %v2153, %v2241
    %v2243 = vrot.slane %v1644, %v2242
    %v2244 = vsel %vm2158, %v2243, %v2239
    %v2245 = vlaneseq
    %v2246 = vshrl.u32 %v2245, 7
    %v2247 = vsub.s32 %v2160, %v2246
    %v2248 = vrot.slane %v1647, %v2247
    %v2249 = vsel %vm2165, %v2248, %v2244
    %v2250 = vlaneseq
    %v2251 = vshrl.u32 %v2250, 7
    %v2252 = vsub.s32 %v2167, %v2251
    %v2253 = vrot.slane %v1650, %v2252
    %v2254 = vsel %vm2172, %v2253, %v2249
    %v2255 = vlaneseq
    %v2256 = vshrl.u32 %v2255, 7
    %v2257 = vsub.s32 %v2174, %v2256
    %v2258 = vrot.slane %v1653, %v2257
    %v2259 = vsel %vm2179, %v2258, %v2254
    %v2260 = vlaneseq
    %v2261 = vshrl.u32 %v2260, 7
    %v2262 = vsub.s32 %v2071, %v2261
    %v2263 = vrot.slane %v1656, %v2262
    %v2264 = vlaneseq
    %v2265 = vshrl.u32 %v2264, 7
    %v2266 = vsub.s32 %v2076, %v2265
    %v2267 = vrot.slane %v1659, %v2266
    %v2268 = vsel %vm2081, %v2267, %v2263
    %v2269 = vlaneseq
    %v2270 = vshrl.u32 %v2269, 7
    %v2271 = vsub.s32 %v2083, %v2270
    %v2272 = vrot.slane %v1662, %v2271
    %v2273 = vsel %vm2088, %v2272, %v2268
    %v2274 = vlaneseq
    %v2275 = vshrl.u32 %v2274, 7
    %v2276 = vsub.s32 %v2090, %v2275
    %v2277 = vrot.slane %v1665, %v2276
    %v2278 = vsel %vm2095, %v2277, %v2273
    %v2279 = vlaneseq
    %v2280 = vshrl.u32 %v2279, 7
    %v2281 = vsub.s32 %v2097, %v2280
    %v2282 = vrot.slane %v1668, %v2281
    %v2283 = vsel %vm2102, %v2282, %v2278
    %v2284 = vlaneseq
    %v2285 = vshrl.u32 %v2284, 7
    %v2286 = vsub.s32 %v2104, %v2285
    %v2287 = vrot.slane %v1671, %v2286
    %v2288 = vsel %vm2109, %v2287, %v2283
    %v2289 = vlaneseq
    %v2290 = vshrl.u32 %v2289, 7
    %v2291 = vsub.s32 %v2111, %v2290
    %v2292 = vrot.slane %v1674, %v2291
    %v2293 = vsel %vm2116, %v2292, %v2288
    %v2294 = vlaneseq
    %v2295 = vshrl.u32 %v2294, 7
    %v2296 = vsub.s32 %v2118, %v2295
    %v2297 = vrot.slane %v1677, %v2296
    %v2298 = vsel %vm2123, %v2297, %v2293
    %v2299 = vlaneseq
    %v2300 = vshrl.u32 %v2299, 7
    %v2301 = vsub.s32 %v2125, %v2300
    %v2302 = vrot.slane %v1680, %v2301
    %v2303 = vsel %vm2130, %v2302, %v2298
    %v2304 = vlaneseq
    %v2305 = vshrl.u32 %v2304, 7
    %v2306 = vsub.s32 %v2132, %v2305
    %v2307 = vrot.slane %v1683, %v2306
    %v2308 = vsel %vm2137, %v2307, %v2303
    %v2309 = vlaneseq
    %v2310 = vshrl.u32 %v2309, 7
    %v2311 = vsub.s32 %v2139, %v2310
    %v2312 = vrot.slane %v1686, %v2311
    %v2313 = vsel %vm2144, %v2312, %v2308
    %v2314 = vlaneseq
    %v2315 = vshrl.u32 %v2314, 7
    %v2316 = vsub.s32 %v2146, %v2315
    %v2317 = vrot.slane %v1689, %v2316
    %v2318 = vsel %vm2151, %v2317, %v2313
    %v2319 = vlaneseq
    %v2320 = vshrl.u32 %v2319, 7
    %v2321 = vsub.s32 %v2153, %v2320
    %v2322 = vrot.slane %v1692, %v2321
    %v2323 = vsel %vm2158, %v2322, %v2318
    %v2324 = vlaneseq
    %v2325 = vshrl.u32 %v2324, 7
    %v2326 = vsub.s32 %v2160, %v2325
    %v2327 = vrot.slane %v1695, %v2326
    %v2328 = vsel %vm2165, %v2327, %v2323
    %v2329 = vlaneseq
    %v2330 = vshrl.u32 %v2329, 7
    %v2331 = vsub.s32 %v2167, %v2330
    %v2332 = vrot.slane %v1698, %v2331
    %v2333 = vsel %vm2172, %v2332, %v2328
    %v2334 = vlaneseq
    %v2335 = vshrl.u32 %v2334, 7
    %v2336 = vsub.s32 %v2174, %v2335
    %v2337 = vrot.slane %v1701, %v2336
    %v2338 = vsel %vm2179, %v2337, %v2333
    %v2339 = vlaneseq
    %v2340 = vshrl.u32 %v2339, 7
    %v2341 = vsub.s32 %v2071, %v2340
    %v2342 = vrot.slane %v1704, %v2341
    %v2343 = vlaneseq
    %v2344 = vshrl.u32 %v2343, 7
    %v2345 = vsub.s32 %v2076, %v2344
    %v2346 = vrot.slane %v1707, %v2345
    %v2347 = vsel %vm2081, %v2346, %v2342
    %v2348 = vlaneseq
    %v2349 = vshrl.u32 %v2348, 7
    %v2350 = vsub.s32 %v2083, %v2349
    %v2351 = vrot.slane %v1710, %v2350
    %v2352 = vsel %vm2088, %v2351, %v2347
    %v2353 = vlaneseq
    %v2354 = vshrl.u32 %v2353, 7
    %v2355 = vsub.s32 %v2090, %v2354
    %v2356 = vrot.slane %v1713, %v2355
    %v2357 = vsel %vm2095, %v2356, %v2352
    %v2358 = vlaneseq
    %v2359 = vshrl.u32 %v2358, 7
    %v2360 = vsub.s32 %v2097, %v2359
    %v2361 = vrot.slane %v1716, %v2360
    %v2362 = vsel %vm2102, %v2361, %v2357
    %v2363 = vlaneseq
    %v2364 = vshrl.u32 %v2363, 7
    %v2365 = vsub.s32 %v2104, %v2364
    %v2366 = vrot.slane %v1719, %v2365
    %v2367 = vsel %vm2109, %v2366, %v2362
    %v2368 = vlaneseq
    %v2369 = vshrl.u32 %v2368, 7
    %v2370 = vsub.s32 %v2111, %v2369
    %v2371 = vrot.slane %v1722, %v2370
    %v2372 = vsel %vm2116, %v2371, %v2367
    %v2373 = vlaneseq
    %v2374 = vshrl.u32 %v2373, 7
    %v2375 = vsub.s32 %v2118, %v2374
    %v2376 = vrot.slane %v1725, %v2375
    %v2377 = vsel %vm2123, %v2376, %v2372
    %v2378 = vlaneseq
    %v2379 = vshrl.u32 %v2378, 7
    %v2380 = vsub.s32 %v2125, %v2379
    %v2381 = vrot.slane %v1728, %v2380
    %v2382 = vsel %vm2130, %v2381, %v2377
    %v2383 = vlaneseq
    %v2384 = vshrl.u32 %v2383, 7
    %v2385 = vsub.s32 %v2132, %v2384
    %v2386 = vrot.slane %v1731, %v2385
    %v2387 = vsel %vm2137, %v2386, %v2382
    %v2388 = vlaneseq
    %v2389 = vshrl.u32 %v2388, 7
    %v2390 = vsub.s32 %v2139, %v2389
    %v2391 = vrot.slane %v1734, %v2390
    %v2392 = vsel %vm2144, %v2391, %v2387
    %v2393 = vlaneseq
    %v2394 = vshrl.u32 %v2393, 7
    %v2395 = vsub.s32 %v2146, %v2394
    %v2396 = vrot.slane %v1737, %v2395
    %v2397 = vsel %vm2151, %v2396, %v2392
    %v2398 = vlaneseq
    %v2399 = vshrl.u32 %v2398, 7
    %v2400 = vsub.s32 %v2153, %v2399
    %v2401 = vrot.slane %v1740, %v2400
    %v2402 = vsel %vm2158, %v2401, %v2397
    %v2403 = vlaneseq
    %v2404 = vshrl.u32 %v2403, 7
    %v2405 = vsub.s32 %v2160, %v2404
    %v2406 = vrot.slane %v1743, %v2405
    %v2407 = vsel %vm2165, %v2406, %v2402
    %v2408 = vlaneseq
    %v2409 = vshrl.u32 %v2408, 7
    %v2410 = vsub.s32 %v2167, %v2409
    %v2411 = vrot.slane %v1746, %v2410
    %v2412 = vsel %vm2172, %v2411, %v2407
    %v2413 = vlaneseq
    %v2414 = vshrl.u32 %v2413, 7
    %v2415 = vsub.s32 %v2174, %v2414
    %v2416 = vrot.slane %v1749, %v2415
    %v2417 = vsel %vm2179, %v2416, %v2412
    %v2418 = vlaneseq
    %v2419 = vshrl.u32 %v2418, 7
    %v2420 = vsub.s32 %v2071, %v2419
    %v2421 = vrot.slane %v1752, %v2420
    %v2422 = vlaneseq
    %v2423 = vshrl.u32 %v2422, 7
    %v2424 = vsub.s32 %v2076, %v2423
    %v2425 = vrot.slane %v1755, %v2424
    %v2426 = vsel %vm2081, %v2425, %v2421
    %v2427 = vlaneseq
    %v2428 = vshrl.u32 %v2427, 7
    %v2429 = vsub.s32 %v2083, %v2428
    %v2430 = vrot.slane %v1758, %v2429
    %v2431 = vsel %vm2088, %v2430, %v2426
    %v2432 = vlaneseq
    %v2433 = vshrl.u32 %v2432, 7
    %v2434 = vsub.s32 %v2090, %v2433
    %v2435 = vrot.slane %v1761, %v2434
    %v2436 = vsel %vm2095, %v2435, %v2431
    %v2437 = vlaneseq
    %v2438 = vshrl.u32 %v2437, 7
    %v2439 = vsub.s32 %v2097, %v2438
    %v2440 = vrot.slane %v1764, %v2439
    %v2441 = vsel %vm2102, %v2440, %v2436
    %v2442 = vlaneseq
    %v2443 = vshrl.u32 %v2442, 7
    %v2444 = vsub.s32 %v2104, %v2443
    %v2445 = vrot.slane %v1767, %v2444
    %v2446 = vsel %vm2109, %v2445, %v2441
    %v2447 = vlaneseq
    %v2448 = vshrl.u32 %v2447, 7
    %v2449 = vsub.s32 %v2111, %v2448
    %v2450 = vrot.slane %v1770, %v2449
    %v2451 = vsel %vm2116, %v2450, %v2446
    %v2452 = vlaneseq
    %v2453 = vshrl.u32 %v2452, 7
    %v2454 = vsub.s32 %v2118, %v2453
    %v2455 = vrot.slane %v1773, %v2454
    %v2456 = vsel %vm2123, %v2455, %v2451
    %v2457 = vlaneseq
    %v2458 = vshrl.u32 %v2457, 7
    %v2459 = vsub.s32 %v2125, %v2458
    %v2460 = vrot.slane %v1776, %v2459
    %v2461 = vsel %vm2130, %v2460, %v2456
    %v2462 = vlaneseq
    %v2463 = vshrl.u32 %v2462, 7
    %v2464 = vsub.s32 %v2132, %v2463
    %v2465 = vrot.slane %v1779, %v2464
    %v2466 = vsel %vm2137, %v2465, %v2461
    %v2467 = vlaneseq
    %v2468 = vshrl.u32 %v2467, 7
    %v2469 = vsub.s32 %v2139, %v2468
    %v2470 = vrot.slane %v1782, %v2469
    %v2471 = vsel %vm2144, %v2470, %v2466
    %v2472 = vlaneseq
    %v2473 = vshrl.u32 %v2472, 7
    %v2474 = vsub.s32 %v2146, %v2473
    %v2475 = vrot.slane %v1785, %v2474
    %v2476 = vsel %vm2151, %v2475, %v2471
    %v2477 = vlaneseq
    %v2478 = vshrl.u32 %v2477, 7
    %v2479 = vsub.s32 %v2153, %v2478
    %v2480 = vrot.slane %v1788, %v2479
    %v2481 = vsel %vm2158, %v2480, %v2476
    %v2482 = vlaneseq
    %v2483 = vshrl.u32 %v2482, 7
    %v2484 = vsub.s32 %v2160, %v2483
    %v2485 = vrot.slane %v1791, %v2484
    %v2486 = vsel %vm2165, %v2485, %v2481
    %v2487 = vlaneseq
    %v2488 = vshrl.u32 %v2487, 7
    %v2489 = vsub.s32 %v2167, %v2488
    %v2490 = vrot.slane %v1794, %v2489
    %v2491 = vsel %vm2172, %v2490, %v2486
    %v2492 = vlaneseq
    %v2493 = vshrl.u32 %v2492, 7
    %v2494 = vsub.s32 %v2174, %v2493
    %v2495 = vrot.slane %v1797, %v2494
    %v2496 = vsel %vm2179, %v2495, %v2491
    %v2497 = vlaneseq
    %v2498 = vshrl.u32 %v2497, 7
    %v2499 = vsub.s32 %v2071, %v2498
    %v2500 = vrot.slane %v1800, %v2499
    %v2501 = vlaneseq
    %v2502 = vshrl.u32 %v2501, 7
    %v2503 = vsub.s32 %v2076, %v2502
    %v2504 = vrot.slane %v1803, %v2503
    %v2505 = vsel %vm2081, %v2504, %v2500
    %v2506 = vlaneseq
    %v2507 = vshrl.u32 %v2506, 7
    %v2508 = vsub.s32 %v2083, %v2507
    %v2509 = vrot.slane %v1806, %v2508
    %v2510 = vsel %vm2088, %v2509, %v2505
    %v2511 = vlaneseq
    %v2512 = vshrl.u32 %v2511, 7
    %v2513 = vsub.s32 %v2090, %v2512
    %v2514 = vrot.slane %v1809, %v2513
    %v2515 = vsel %vm2095, %v2514, %v2510
    %v2516 = vlaneseq
    %v2517 = vshrl.u32 %v2516, 7
    %v2518 = vsub.s32 %v2097, %v2517
    %v2519 = vrot.slane %v1812, %v2518
    %v2520 = vsel %vm2102, %v2519, %v2515
    %v2521 = vlaneseq
    %v2522 = vshrl.u32 %v2521, 7
    %v2523 = vsub.s32 %v2104, %v2522
    %v2524 = vrot.slane %v1815, %v2523
    %v2525 = vsel %vm2109, %v2524, %v2520
    %v2526 = vlaneseq
    %v2527 = vshrl.u32 %v2526, 7
    %v2528 = vsub.s32 %v2111, %v2527
    %v2529 = vrot.slane %v1818, %v2528
    %v2530 = vsel %vm2116, %v2529, %v2525
    %v2531 = vlaneseq
    %v2532 = vshrl.u32 %v2531, 7
    %v2533 = vsub.s32 %v2118, %v2532
    %v2534 = vrot.slane %v1821, %v2533
    %v2535 = vsel %vm2123, %v2534, %v2530
    %v2536 = vlaneseq
    %v2537 = vshrl.u32 %v2536, 7
    %v2538 = vsub.s32 %v2125, %v2537
    %v2539 = vrot.slane %v1824, %v2538
    %v2540 = vsel %vm2130, %v2539, %v2535
    %v2541 = vlaneseq
    %v2542 = vshrl.u32 %v2541, 7
    %v2543 = vsub.s32 %v2132, %v2542
    %v2544 = vrot.slane %v1827, %v2543
    %v2545 = vsel %vm2137, %v2544, %v2540
    %v2546 = vlaneseq
    %v2547 = vshrl.u32 %v2546, 7
    %v2548 = vsub.s32 %v2139, %v2547
    %v2549 = vrot.slane %v1830, %v2548
    %v2550 = vsel %vm2144, %v2549, %v2545
    %v2551 = vlaneseq
    %v2552 = vshrl.u32 %v2551, 7
    %v2553 = vsub.s32 %v2146, %v2552
    %v2554 = vrot.slane %v1833, %v2553
    %v2555 = vsel %vm2151, %v2554, %v2550
    %v2556 = vlaneseq
    %v2557 = vshrl.u32 %v2556, 7
    %v2558 = vsub.s32 %v2153, %v2557
    %v2559 = vrot.slane %v1836, %v2558
    %v2560 = vsel %vm2158, %v2559, %v2555
    %v2561 = vlaneseq
    %v2562 = vshrl.u32 %v2561, 7
    %v2563 = vsub.s32 %v2160, %v2562
    %v2564 = vrot.slane %v1839, %v2563
    %v2565 = vsel %vm2165, %v2564, %v2560
    %v2566 = vlaneseq
    %v2567 = vshrl.u32 %v2566, 7
    %v2568 = vsub.s32 %v2167, %v2567
    %v2569 = vrot.slane %v1842, %v2568
    %v2570 = vsel %vm2172, %v2569, %v2565
    %v2571 = vlaneseq
    %v2572 = vshrl.u32 %v2571, 7
    %v2573 = vsub.s32 %v2174, %v2572
    %v2574 = vrot.slane %v1845, %v2573
    %v2575 = vsel %vm2179, %v2574, %v2570
    %v2576 = vlaneseq
    %v2577 = vshrl.u32 %v2576, 7
    %v2578 = vsub.s32 %v2071, %v2577
    %v2579 = vrot.slane %v1848, %v2578
    %v2580 = vlaneseq
    %v2581 = vshrl.u32 %v2580, 7
    %v2582 = vsub.s32 %v2076, %v2581
    %v2583 = vrot.slane %v1851, %v2582
    %v2584 = vsel %vm2081, %v2583, %v2579
    %v2585 = vlaneseq
    %v2586 = vshrl.u32 %v2585, 7
    %v2587 = vsub.s32 %v2083, %v2586
    %v2588 = vrot.slane %v1854, %v2587
    %v2589 = vsel %vm2088, %v2588, %v2584
    %v2590 = vlaneseq
    %v2591 = vshrl.u32 %v2590, 7
    %v2592 = vsub.s32 %v2090, %v2591
    %v2593 = vrot.slane %v1857, %v2592
    %v2594 = vsel %vm2095, %v2593, %v2589
    %v2595 = vlaneseq
    %v2596 = vshrl.u32 %v2595, 7
    %v2597 = vsub.s32 %v2097, %v2596
    %v2598 = vrot.slane %v1860, %v2597
    %v2599 = vsel %vm2102, %v2598, %v2594
    %v2600 = vlaneseq
    %v2601 = vshrl.u32 %v2600, 7
    %v2602 = vsub.s32 %v2104, %v2601
    %v2603 = vrot.slane %v1863, %v2602
    %v2604 = vsel %vm2109, %v2603, %v2599
    %v2605 = vlaneseq
    %v2606 = vshrl.u32 %v2605, 7
    %v2607 = vsub.s32 %v2111, %v2606
    %v2608 = vrot.slane %v1866, %v2607
    %v2609 = vsel %vm2116, %v2608, %v2604
    %v2610 = vlaneseq
    %v2611 = vshrl.u32 %v2610, 7
    %v2612 = vsub.s32 %v2118, %v2611
    %v2613 = vrot.slane %v1869, %v2612
    %v2614 = vsel %vm2123, %v2613, %v2609
    %v2615 = vlaneseq
    %v2616 = vshrl.u32 %v2615, 7
    %v2617 = vsub.s32 %v2125, %v2616
    %v2618 = vrot.slane %v1872, %v2617
    %v2619 = vsel %vm2130, %v2618, %v2614
    %v2620 = vlaneseq
    %v2621 = vshrl.u32 %v2620, 7
    %v2622 = vsub.s32 %v2132, %v2621
    %v2623 = vrot.slane %v1875, %v2622
    %v2624 = vsel %vm2137, %v2623, %v2619
    %v2625 = vlaneseq
    %v2626 = vshrl.u32 %v2625, 7
    %v2627 = vsub.s32 %v2139, %v2626
    %v2628 = vrot.slane %v1878, %v2627
    %v2629 = vsel %vm2144, %v2628, %v2624
    %v2630 = vlaneseq
    %v2631 = vshrl.u32 %v2630, 7
    %v2632 = vsub.s32 %v2146, %v2631
    %v2633 = vrot.slane %v1881, %v2632
    %v2634 = vsel %vm2151, %v2633, %v2629
    %v2635 = vlaneseq
    %v2636 = vshrl.u32 %v2635, 7
    %v2637 = vsub.s32 %v2153, %v2636
    %v2638 = vrot.slane %v1884, %v2637
    %v2639 = vsel %vm2158, %v2638, %v2634
    %v2640 = vlaneseq
    %v2641 = vshrl.u32 %v2640, 7
    %v2642 = vsub.s32 %v2160, %v2641
    %v2643 = vrot.slane %v1887, %v2642
    %v2644 = vsel %vm2165, %v2643, %v2639
    %v2645 = vlaneseq
    %v2646 = vshrl.u32 %v2645, 7
    %v2647 = vsub.s32 %v2167, %v2646
    %v2648 = vrot.slane %v1890, %v2647
    %v2649 = vsel %vm2172, %v2648, %v2644
    %v2650 = vlaneseq
    %v2651 = vshrl.u32 %v2650, 7
    %v2652 = vsub.s32 %v2174, %v2651
    %v2653 = vrot.slane %v1893, %v2652
    %v2654 = vsel %vm2179, %v2653, %v2649
    %v2655 = vlaneseq
    %v2656 = vshrl.u32 %v2655, 7
    %v2657 = vsub.s32 %v2071, %v2656
    %v2658 = vrot.slane %v1896, %v2657
    %v2659 = vlaneseq
    %v2660 = vshrl.u32 %v2659, 7
    %v2661 = vsub.s32 %v2076, %v2660
    %v2662 = vrot.slane %v1899, %v2661
    %v2663 = vsel %vm2081, %v2662, %v2658
    %v2664 = vlaneseq
    %v2665 = vshrl.u32 %v2664, 7
    %v2666 = vsub.s32 %v2083, %v2665
    %v2667 = vrot.slane %v1902, %v2666
    %v2668 = vsel %vm2088, %v2667, %v2663
    %v2669 = vlaneseq
    %v2670 = vshrl.u32 %v2669, 7
    %v2671 = vsub.s32 %v2090, %v2670
    %v2672 = vrot.slane %v1905, %v2671
    %v2673 = vsel %vm2095, %v2672, %v2668
    %v2674 = vlaneseq
    %v2675 = vshrl.u32 %v2674, 7
    %v2676 = vsub.s32 %v2097, %v2675
    %v2677 = vrot.slane %v1908, %v2676
    %v2678 = vsel %vm2102, %v2677, %v2673
    %v2679 = vlaneseq
    %v2680 = vshrl.u32 %v2679, 7
    %v2681 = vsub.s32 %v2104, %v2680
    %v2682 = vrot.slane %v1911, %v2681
    %v2683 = vsel %vm2109, %v2682, %v2678
    %v2684 = vlaneseq
    %v2685 = vshrl.u32 %v2684, 7
    %v2686 = vsub.s32 %v2111, %v2685
    %v2687 = vrot.slane %v1914, %v2686
    %v2688 = vsel %vm2116, %v2687, %v2683
    %v2689 = vlaneseq
    %v2690 = vshrl.u32 %v2689, 7
    %v2691 = vsub.s32 %v2118, %v2690
    %v2692 = vrot.slane %v1917, %v2691
    %v2693 = vsel %vm2123, %v2692, %v2688
    %v2694 = vlaneseq
    %v2695 = vshrl.u32 %v2694, 7
    %v2696 = vsub.s32 %v2125, %v2695
    %v2697 = vrot.slane %v1920, %v2696
    %v2698 = vsel %vm2130, %v2697, %v2693
    %v2699 = vlaneseq
    %v2700 = vshrl.u32 %v2699, 7
    %v2701 = vsub.s32 %v2132, %v2700
    %v2702 = vrot.slane %v1923, %v2701
    %v2703 = vsel %vm2137, %v2702, %v2698
    %v2704 = vlaneseq
    %v2705 = vshrl.u32 %v2704, 7
    %v2706 = vsub.s32 %v2139, %v2705
    %v2707 = vrot.slane %v1926, %v2706
    %v2708 = vsel %vm2144, %v2707, %v2703
    %v2709 = vlaneseq
    %v2710 = vshrl.u32 %v2709, 7
    %v2711 = vsub.s32 %v2146, %v2710
    %v2712 = vrot.slane %v1929, %v2711
    %v2713 = vsel %vm2151, %v2712, %v2708
    %v2714 = vlaneseq
    %v2715 = vshrl.u32 %v2714, 7
    %v2716 = vsub.s32 %v2153, %v2715
    %v2717 = vrot.slane %v1932, %v2716
    %v2718 = vsel %vm2158, %v2717, %v2713
    %v2719 = vlaneseq
    %v2720 = vshrl.u32 %v2719, 7
    %v2721 = vsub.s32 %v2160, %v2720
    %v2722 = vrot.slane %v1935, %v2721
    %v2723 = vsel %vm2165, %v2722, %v2718
    %v2724 = vlaneseq
    %v2725 = vshrl.u32 %v2724, 7
    %v2726 = vsub.s32 %v2167, %v2725
    %v2727 = vrot.slane %v1938, %v2726
    %v2728 = vsel %vm2172, %v2727, %v2723
    %v2729 = vlaneseq
    %v2730 = vshrl.u32 %v2729, 7
    %v2731 = vsub.s32 %v2174, %v2730
    %v2732 = vrot.slane %v1941, %v2731
    %v2733 = vsel %vm2179, %v2732, %v2728
    %vm2734 = vcmask 1041409
    %v2735 = vsel %vm2734, %v2259, %v2180
    %vm2736 = vcmask 1042434
    %v2737 = vsel %vm2736, %v2338, %v2735
    %vm2738 = vcmask 1043459
    %v2739 = vsel %vm2738, %v2417, %v2737
    %vm2740 = vcmask 1044484
    %v2741 = vsel %vm2740, %v2496, %v2739
    %vm2742 = vcmask 1045509
    %v2743 = vsel %vm2742, %v2575, %v2741
    %vm2744 = vcmask 1046534
    %v2745 = vsel %vm2744, %v2654, %v2743
    %vm2746 = vcmask 1047559
    %v2747 = vsel %vm2746, %v2733, %v2745
    %2749 = vst [vmem:[%s10] sm:$0xff] %v2747
    %v2750 = vld [vmem:[%s10] sm:$0xff]
    %2751 = vmax.xlane.f32.xlu0 %v2750
    %v2752 = vpop.xlane.xlu0 %2751
    %v2753 = vsub.f32 %v2750, %v2752
    %v2754 = vmul.f32 %v2753, 1.442695
    %v2755 = vpow.pop %v2754
    %v2756 = vld [vmem:[%s3] sm:$0xff]
    %v2757 = vmul.f32 %v2755, %v2756
    %2758 = vadd.xlane.f32.xlu0 %v2757
    %v2759 = vpop.xlane.xlu0 %2758
    %v2760 = vrcp.pop %v2759
    %v2761 = vmul.f32 %v2757, %v2760
    %2762 = vst [vmem:[%s10] sm:$0xff] %v2761
    %2763 = vst.msk [vmem:[%s9] sm:$0xff] %vm75, 0.0
    %v2764 = vld [vmem:[%s10] sm:$0xff]
    %v2765 = vlaneseq
    %v2766 = vshrl.u32 %v2765, 7
    %v2767 = vsub.s32 0, %v2766
    %v2768 = vrot.slane %v2764, %v2767
    %2770 = vbcast.lane.b32.xlu0 %v2768, 256
    %v2771 = vpop.permute.xlu0 %2770
    %s2773 = sor.u32 256, 8
    %2774 = vbcast.lane.b32.xlu0 %v2768, %s2773
    %v2775 = vpop.permute.xlu0 %2774
    %s2777 = sor.u32 256, 16
    %2778 = vbcast.lane.b32.xlu0 %v2768, %s2777
    %v2779 = vpop.permute.xlu0 %2778
    %s2781 = sor.u32 256, 24
    %2782 = vbcast.lane.b32.xlu0 %v2768, %s2781
    %v2783 = vpop.permute.xlu0 %2782
    %s2785 = sor.u32 256, 32
    %2786 = vbcast.lane.b32.xlu0 %v2768, %s2785
    %v2787 = vpop.permute.xlu0 %2786
    %s2789 = sor.u32 256, 40
    %2790 = vbcast.lane.b32.xlu0 %v2768, %s2789
    %v2791 = vpop.permute.xlu0 %2790
    %s2793 = sor.u32 256, 48
    %2794 = vbcast.lane.b32.xlu0 %v2768, %s2793
    %v2795 = vpop.permute.xlu0 %2794
    %s2797 = sor.u32 256, 56
    %2798 = vbcast.lane.b32.xlu0 %v2768, %s2797
    %v2799 = vpop.permute.xlu0 %2798
    %s2801 = sor.u32 256, 64
    %2802 = vbcast.lane.b32.xlu0 %v2768, %s2801
    %v2803 = vpop.permute.xlu0 %2802
    %s2805 = sor.u32 256, 72
    %2806 = vbcast.lane.b32.xlu0 %v2768, %s2805
    %v2807 = vpop.permute.xlu0 %2806
    %s2809 = sor.u32 256, 80
    %2810 = vbcast.lane.b32.xlu0 %v2768, %s2809
    %v2811 = vpop.permute.xlu0 %2810
    %s2813 = sor.u32 256, 88
    %2814 = vbcast.lane.b32.xlu0 %v2768, %s2813
    %v2815 = vpop.permute.xlu0 %2814
    %s2817 = sor.u32 256, 96
    %2818 = vbcast.lane.b32.xlu0 %v2768, %s2817
    %v2819 = vpop.permute.xlu0 %2818
    %s2821 = sor.u32 256, 104
    %2822 = vbcast.lane.b32.xlu0 %v2768, %s2821
    %v2823 = vpop.permute.xlu0 %2822
    %s2825 = sor.u32 256, 112
    %2826 = vbcast.lane.b32.xlu0 %v2768, %s2825
    %v2827 = vpop.permute.xlu0 %2826
    %s2829 = sor.u32 256, 120
    %2830 = vbcast.lane.b32.xlu0 %v2768, %s2829
    %v2831 = vpop.permute.xlu0 %2830
    %v2832 = vlaneseq
    %v2833 = vshrl.u32 %v2832, 7
    %v2834 = vsub.s32 1, %v2833
    %v2835 = vrot.slane %v2764, %v2834
    %2837 = vbcast.lane.b32.xlu0 %v2835, 256
    %v2838 = vpop.permute.xlu0 %2837
    %s2840 = sor.u32 256, 8
    %2841 = vbcast.lane.b32.xlu0 %v2835, %s2840
    %v2842 = vpop.permute.xlu0 %2841
    %s2844 = sor.u32 256, 16
    %2845 = vbcast.lane.b32.xlu0 %v2835, %s2844
    %v2846 = vpop.permute.xlu0 %2845
    %s2848 = sor.u32 256, 24
    %2849 = vbcast.lane.b32.xlu0 %v2835, %s2848
    %v2850 = vpop.permute.xlu0 %2849
    %s2852 = sor.u32 256, 32
    %2853 = vbcast.lane.b32.xlu0 %v2835, %s2852
    %v2854 = vpop.permute.xlu0 %2853
    %s2856 = sor.u32 256, 40
    %2857 = vbcast.lane.b32.xlu0 %v2835, %s2856
    %v2858 = vpop.permute.xlu0 %2857
    %s2860 = sor.u32 256, 48
    %2861 = vbcast.lane.b32.xlu0 %v2835, %s2860
    %v2862 = vpop.permute.xlu0 %2861
    %s2864 = sor.u32 256, 56
    %2865 = vbcast.lane.b32.xlu0 %v2835, %s2864
    %v2866 = vpop.permute.xlu0 %2865
    %s2868 = sor.u32 256, 64
    %2869 = vbcast.lane.b32.xlu0 %v2835, %s2868
    %v2870 = vpop.permute.xlu0 %2869
    %s2872 = sor.u32 256, 72
    %2873 = vbcast.lane.b32.xlu0 %v2835, %s2872
    %v2874 = vpop.permute.xlu0 %2873
    %s2876 = sor.u32 256, 80
    %2877 = vbcast.lane.b32.xlu0 %v2835, %s2876
    %v2878 = vpop.permute.xlu0 %2877
    %s2880 = sor.u32 256, 88
    %2881 = vbcast.lane.b32.xlu0 %v2835, %s2880
    %v2882 = vpop.permute.xlu0 %2881
    %s2884 = sor.u32 256, 96
    %2885 = vbcast.lane.b32.xlu0 %v2835, %s2884
    %v2886 = vpop.permute.xlu0 %2885
    %s2888 = sor.u32 256, 104
    %2889 = vbcast.lane.b32.xlu0 %v2835, %s2888
    %v2890 = vpop.permute.xlu0 %2889
    %s2892 = sor.u32 256, 112
    %2893 = vbcast.lane.b32.xlu0 %v2835, %s2892
    %v2894 = vpop.permute.xlu0 %2893
    %s2896 = sor.u32 256, 120
    %2897 = vbcast.lane.b32.xlu0 %v2835, %s2896
    %v2898 = vpop.permute.xlu0 %2897
    %v2899 = vlaneseq
    %v2900 = vshrl.u32 %v2899, 7
    %v2901 = vsub.s32 2, %v2900
    %v2902 = vrot.slane %v2764, %v2901
    %2904 = vbcast.lane.b32.xlu0 %v2902, 256
    %v2905 = vpop.permute.xlu0 %2904
    %s2907 = sor.u32 256, 8
    %2908 = vbcast.lane.b32.xlu0 %v2902, %s2907
    %v2909 = vpop.permute.xlu0 %2908
    %s2911 = sor.u32 256, 16
    %2912 = vbcast.lane.b32.xlu0 %v2902, %s2911
    %v2913 = vpop.permute.xlu0 %2912
    %s2915 = sor.u32 256, 24
    %2916 = vbcast.lane.b32.xlu0 %v2902, %s2915
    %v2917 = vpop.permute.xlu0 %2916
    %s2919 = sor.u32 256, 32
    %2920 = vbcast.lane.b32.xlu0 %v2902, %s2919
    %v2921 = vpop.permute.xlu0 %2920
    %s2923 = sor.u32 256, 40
    %2924 = vbcast.lane.b32.xlu0 %v2902, %s2923
    %v2925 = vpop.permute.xlu0 %2924
    %s2927 = sor.u32 256, 48
    %2928 = vbcast.lane.b32.xlu0 %v2902, %s2927
    %v2929 = vpop.permute.xlu0 %2928
    %s2931 = sor.u32 256, 56
    %2932 = vbcast.lane.b32.xlu0 %v2902, %s2931
    %v2933 = vpop.permute.xlu0 %2932
    %s2935 = sor.u32 256, 64
    %2936 = vbcast.lane.b32.xlu0 %v2902, %s2935
    %v2937 = vpop.permute.xlu0 %2936
    %s2939 = sor.u32 256, 72
    %2940 = vbcast.lane.b32.xlu0 %v2902, %s2939
    %v2941 = vpop.permute.xlu0 %2940
    %s2943 = sor.u32 256, 80
    %2944 = vbcast.lane.b32.xlu0 %v2902, %s2943
    %v2945 = vpop.permute.xlu0 %2944
    %s2947 = sor.u32 256, 88
    %2948 = vbcast.lane.b32.xlu0 %v2902, %s2947
    %v2949 = vpop.permute.xlu0 %2948
    %s2951 = sor.u32 256, 96
    %2952 = vbcast.lane.b32.xlu0 %v2902, %s2951
    %v2953 = vpop.permute.xlu0 %2952
    %s2955 = sor.u32 256, 104
    %2956 = vbcast.lane.b32.xlu0 %v2902, %s2955
    %v2957 = vpop.permute.xlu0 %2956
    %s2959 = sor.u32 256, 112
    %2960 = vbcast.lane.b32.xlu0 %v2902, %s2959
    %v2961 = vpop.permute.xlu0 %2960
    %s2963 = sor.u32 256, 120
    %2964 = vbcast.lane.b32.xlu0 %v2902, %s2963
    %v2965 = vpop.permute.xlu0 %2964
    %v2966 = vlaneseq
    %v2967 = vshrl.u32 %v2966, 7
    %v2968 = vsub.s32 3, %v2967
    %v2969 = vrot.slane %v2764, %v2968
    %2971 = vbcast.lane.b32.xlu0 %v2969, 256
    %v2972 = vpop.permute.xlu0 %2971
    %s2974 = sor.u32 256, 8
    %2975 = vbcast.lane.b32.xlu0 %v2969, %s2974
    %v2976 = vpop.permute.xlu0 %2975
    %s2978 = sor.u32 256, 16
    %2979 = vbcast.lane.b32.xlu0 %v2969, %s2978
    %v2980 = vpop.permute.xlu0 %2979
    %s2982 = sor.u32 256, 24
    %2983 = vbcast.lane.b32.xlu0 %v2969, %s2982
    %v2984 = vpop.permute.xlu0 %2983
    %s2986 = sor.u32 256, 32
    %2987 = vbcast.lane.b32.xlu0 %v2969, %s2986
    %v2988 = vpop.permute.xlu0 %2987
    %s2990 = sor.u32 256, 40
    %2991 = vbcast.lane.b32.xlu0 %v2969, %s2990
    %v2992 = vpop.permute.xlu0 %2991
    %s2994 = sor.u32 256, 48
    %2995 = vbcast.lane.b32.xlu0 %v2969, %s2994
    %v2996 = vpop.permute.xlu0 %2995
    %s2998 = sor.u32 256, 56
    %2999 = vbcast.lane.b32.xlu0 %v2969, %s2998
    %v3000 = vpop.permute.xlu0 %2999
    %s3002 = sor.u32 256, 64
    %3003 = vbcast.lane.b32.xlu0 %v2969, %s3002
    %v3004 = vpop.permute.xlu0 %3003
    %s3006 = sor.u32 256, 72
    %3007 = vbcast.lane.b32.xlu0 %v2969, %s3006
    %v3008 = vpop.permute.xlu0 %3007
    %s3010 = sor.u32 256, 80
    %3011 = vbcast.lane.b32.xlu0 %v2969, %s3010
    %v3012 = vpop.permute.xlu0 %3011
    %s3014 = sor.u32 256, 88
    %3015 = vbcast.lane.b32.xlu0 %v2969, %s3014
    %v3016 = vpop.permute.xlu0 %3015
    %s3018 = sor.u32 256, 96
    %3019 = vbcast.lane.b32.xlu0 %v2969, %s3018
    %v3020 = vpop.permute.xlu0 %3019
    %s3022 = sor.u32 256, 104
    %3023 = vbcast.lane.b32.xlu0 %v2969, %s3022
    %v3024 = vpop.permute.xlu0 %3023
    %s3026 = sor.u32 256, 112
    %3027 = vbcast.lane.b32.xlu0 %v2969, %s3026
    %v3028 = vpop.permute.xlu0 %3027
    %s3030 = sor.u32 256, 120
    %3031 = vbcast.lane.b32.xlu0 %v2969, %s3030
    %v3032 = vpop.permute.xlu0 %3031
    %v3033 = vlaneseq
    %v3034 = vshrl.u32 %v3033, 7
    %v3035 = vsub.s32 4, %v3034
    %v3036 = vrot.slane %v2764, %v3035
    %3038 = vbcast.lane.b32.xlu0 %v3036, 256
    %v3039 = vpop.permute.xlu0 %3038
    %s3041 = sor.u32 256, 8
    %3042 = vbcast.lane.b32.xlu0 %v3036, %s3041
    %v3043 = vpop.permute.xlu0 %3042
    %s3045 = sor.u32 256, 16
    %3046 = vbcast.lane.b32.xlu0 %v3036, %s3045
    %v3047 = vpop.permute.xlu0 %3046
    %s3049 = sor.u32 256, 24
    %3050 = vbcast.lane.b32.xlu0 %v3036, %s3049
    %v3051 = vpop.permute.xlu0 %3050
    %s3053 = sor.u32 256, 32
    %3054 = vbcast.lane.b32.xlu0 %v3036, %s3053
    %v3055 = vpop.permute.xlu0 %3054
    %s3057 = sor.u32 256, 40
    %3058 = vbcast.lane.b32.xlu0 %v3036, %s3057
    %v3059 = vpop.permute.xlu0 %3058
    %s3061 = sor.u32 256, 48
    %3062 = vbcast.lane.b32.xlu0 %v3036, %s3061
    %v3063 = vpop.permute.xlu0 %3062
    %s3065 = sor.u32 256, 56
    %3066 = vbcast.lane.b32.xlu0 %v3036, %s3065
    %v3067 = vpop.permute.xlu0 %3066
    %s3069 = sor.u32 256, 64
    %3070 = vbcast.lane.b32.xlu0 %v3036, %s3069
    %v3071 = vpop.permute.xlu0 %3070
    %s3073 = sor.u32 256, 72
    %3074 = vbcast.lane.b32.xlu0 %v3036, %s3073
    %v3075 = vpop.permute.xlu0 %3074
    %s3077 = sor.u32 256, 80
    %3078 = vbcast.lane.b32.xlu0 %v3036, %s3077
    %v3079 = vpop.permute.xlu0 %3078
    %s3081 = sor.u32 256, 88
    %3082 = vbcast.lane.b32.xlu0 %v3036, %s3081
    %v3083 = vpop.permute.xlu0 %3082
    %s3085 = sor.u32 256, 96
    %3086 = vbcast.lane.b32.xlu0 %v3036, %s3085
    %v3087 = vpop.permute.xlu0 %3086
    %s3089 = sor.u32 256, 104
    %3090 = vbcast.lane.b32.xlu0 %v3036, %s3089
    %v3091 = vpop.permute.xlu0 %3090
    %s3093 = sor.u32 256, 112
    %3094 = vbcast.lane.b32.xlu0 %v3036, %s3093
    %v3095 = vpop.permute.xlu0 %3094
    %s3097 = sor.u32 256, 120
    %3098 = vbcast.lane.b32.xlu0 %v3036, %s3097
    %v3099 = vpop.permute.xlu0 %3098
    %v3100 = vlaneseq
    %v3101 = vshrl.u32 %v3100, 7
    %v3102 = vsub.s32 5, %v3101
    %v3103 = vrot.slane %v2764, %v3102
    %3105 = vbcast.lane.b32.xlu0 %v3103, 256
    %v3106 = vpop.permute.xlu0 %3105
    %s3108 = sor.u32 256, 8
    %3109 = vbcast.lane.b32.xlu0 %v3103, %s3108
    %v3110 = vpop.permute.xlu0 %3109
    %s3112 = sor.u32 256, 16
    %3113 = vbcast.lane.b32.xlu0 %v3103, %s3112
    %v3114 = vpop.permute.xlu0 %3113
    %s3116 = sor.u32 256, 24
    %3117 = vbcast.lane.b32.xlu0 %v3103, %s3116
    %v3118 = vpop.permute.xlu0 %3117
    %s3120 = sor.u32 256, 32
    %3121 = vbcast.lane.b32.xlu0 %v3103, %s3120
    %v3122 = vpop.permute.xlu0 %3121
    %s3124 = sor.u32 256, 40
    %3125 = vbcast.lane.b32.xlu0 %v3103, %s3124
    %v3126 = vpop.permute.xlu0 %3125
    %s3128 = sor.u32 256, 48
    %3129 = vbcast.lane.b32.xlu0 %v3103, %s3128
    %v3130 = vpop.permute.xlu0 %3129
    %s3132 = sor.u32 256, 56
    %3133 = vbcast.lane.b32.xlu0 %v3103, %s3132
    %v3134 = vpop.permute.xlu0 %3133
    %s3136 = sor.u32 256, 64
    %3137 = vbcast.lane.b32.xlu0 %v3103, %s3136
    %v3138 = vpop.permute.xlu0 %3137
    %s3140 = sor.u32 256, 72
    %3141 = vbcast.lane.b32.xlu0 %v3103, %s3140
    %v3142 = vpop.permute.xlu0 %3141
    %s3144 = sor.u32 256, 80
    %3145 = vbcast.lane.b32.xlu0 %v3103, %s3144
    %v3146 = vpop.permute.xlu0 %3145
    %s3148 = sor.u32 256, 88
    %3149 = vbcast.lane.b32.xlu0 %v3103, %s3148
    %v3150 = vpop.permute.xlu0 %3149
    %s3152 = sor.u32 256, 96
    %3153 = vbcast.lane.b32.xlu0 %v3103, %s3152
    %v3154 = vpop.permute.xlu0 %3153
    %s3156 = sor.u32 256, 104
    %3157 = vbcast.lane.b32.xlu0 %v3103, %s3156
    %v3158 = vpop.permute.xlu0 %3157
    %s3160 = sor.u32 256, 112
    %3161 = vbcast.lane.b32.xlu0 %v3103, %s3160
    %v3162 = vpop.permute.xlu0 %3161
    %s3164 = sor.u32 256, 120
    %3165 = vbcast.lane.b32.xlu0 %v3103, %s3164
    %v3166 = vpop.permute.xlu0 %3165
    %v3167 = vlaneseq
    %v3168 = vshrl.u32 %v3167, 7
    %v3169 = vsub.s32 6, %v3168
    %v3170 = vrot.slane %v2764, %v3169
    %3172 = vbcast.lane.b32.xlu0 %v3170, 256
    %v3173 = vpop.permute.xlu0 %3172
    %s3175 = sor.u32 256, 8
    %3176 = vbcast.lane.b32.xlu0 %v3170, %s3175
    %v3177 = vpop.permute.xlu0 %3176
    %s3179 = sor.u32 256, 16
    %3180 = vbcast.lane.b32.xlu0 %v3170, %s3179
    %v3181 = vpop.permute.xlu0 %3180
    %s3183 = sor.u32 256, 24
    %3184 = vbcast.lane.b32.xlu0 %v3170, %s3183
    %v3185 = vpop.permute.xlu0 %3184
    %s3187 = sor.u32 256, 32
    %3188 = vbcast.lane.b32.xlu0 %v3170, %s3187
    %v3189 = vpop.permute.xlu0 %3188
    %s3191 = sor.u32 256, 40
    %3192 = vbcast.lane.b32.xlu0 %v3170, %s3191
    %v3193 = vpop.permute.xlu0 %3192
    %s3195 = sor.u32 256, 48
    %3196 = vbcast.lane.b32.xlu0 %v3170, %s3195
    %v3197 = vpop.permute.xlu0 %3196
    %s3199 = sor.u32 256, 56
    %3200 = vbcast.lane.b32.xlu0 %v3170, %s3199
    %v3201 = vpop.permute.xlu0 %3200
    %s3203 = sor.u32 256, 64
    %3204 = vbcast.lane.b32.xlu0 %v3170, %s3203
    %v3205 = vpop.permute.xlu0 %3204
    %s3207 = sor.u32 256, 72
    %3208 = vbcast.lane.b32.xlu0 %v3170, %s3207
    %v3209 = vpop.permute.xlu0 %3208
    %s3211 = sor.u32 256, 80
    %3212 = vbcast.lane.b32.xlu0 %v3170, %s3211
    %v3213 = vpop.permute.xlu0 %3212
    %s3215 = sor.u32 256, 88
    %3216 = vbcast.lane.b32.xlu0 %v3170, %s3215
    %v3217 = vpop.permute.xlu0 %3216
    %s3219 = sor.u32 256, 96
    %3220 = vbcast.lane.b32.xlu0 %v3170, %s3219
    %v3221 = vpop.permute.xlu0 %3220
    %s3223 = sor.u32 256, 104
    %3224 = vbcast.lane.b32.xlu0 %v3170, %s3223
    %v3225 = vpop.permute.xlu0 %3224
    %s3227 = sor.u32 256, 112
    %3228 = vbcast.lane.b32.xlu0 %v3170, %s3227
    %v3229 = vpop.permute.xlu0 %3228
    %s3231 = sor.u32 256, 120
    %3232 = vbcast.lane.b32.xlu0 %v3170, %s3231
    %v3233 = vpop.permute.xlu0 %3232
    %v3234 = vlaneseq
    %v3235 = vshrl.u32 %v3234, 7
    %v3236 = vsub.s32 7, %v3235
    %v3237 = vrot.slane %v2764, %v3236
    %3239 = vbcast.lane.b32.xlu0 %v3237, 256
    %v3240 = vpop.permute.xlu0 %3239
    %s3242 = sor.u32 256, 8
    %3243 = vbcast.lane.b32.xlu0 %v3237, %s3242
    %v3244 = vpop.permute.xlu0 %3243
    %s3246 = sor.u32 256, 16
    %3247 = vbcast.lane.b32.xlu0 %v3237, %s3246
    %v3248 = vpop.permute.xlu0 %3247
    %s3250 = sor.u32 256, 24
    %3251 = vbcast.lane.b32.xlu0 %v3237, %s3250
    %v3252 = vpop.permute.xlu0 %3251
    %s3254 = sor.u32 256, 32
    %3255 = vbcast.lane.b32.xlu0 %v3237, %s3254
    %v3256 = vpop.permute.xlu0 %3255
    %s3258 = sor.u32 256, 40
    %3259 = vbcast.lane.b32.xlu0 %v3237, %s3258
    %v3260 = vpop.permute.xlu0 %3259
    %s3262 = sor.u32 256, 48
    %3263 = vbcast.lane.b32.xlu0 %v3237, %s3262
    %v3264 = vpop.permute.xlu0 %3263
    %s3266 = sor.u32 256, 56
    %3267 = vbcast.lane.b32.xlu0 %v3237, %s3266
    %v3268 = vpop.permute.xlu0 %3267
    %s3270 = sor.u32 256, 64
    %3271 = vbcast.lane.b32.xlu0 %v3237, %s3270
    %v3272 = vpop.permute.xlu0 %3271
    %s3274 = sor.u32 256, 72
    %3275 = vbcast.lane.b32.xlu0 %v3237, %s3274
    %v3276 = vpop.permute.xlu0 %3275
    %s3278 = sor.u32 256, 80
    %3279 = vbcast.lane.b32.xlu0 %v3237, %s3278
    %v3280 = vpop.permute.xlu0 %3279
    %s3282 = sor.u32 256, 88
    %3283 = vbcast.lane.b32.xlu0 %v3237, %s3282
    %v3284 = vpop.permute.xlu0 %3283
    %s3286 = sor.u32 256, 96
    %3287 = vbcast.lane.b32.xlu0 %v3237, %s3286
    %v3288 = vpop.permute.xlu0 %3287
    %s3290 = sor.u32 256, 104
    %3291 = vbcast.lane.b32.xlu0 %v3237, %s3290
    %v3292 = vpop.permute.xlu0 %3291
    %s3294 = sor.u32 256, 112
    %3295 = vbcast.lane.b32.xlu0 %v3237, %s3294
    %v3296 = vpop.permute.xlu0 %3295
    %s3298 = sor.u32 256, 120
    %3299 = vbcast.lane.b32.xlu0 %v3237, %s3298
    %v3300 = vpop.permute.xlu0 %3299
    %v3301 = vld [vmem:[#allocation2] sm:$0xff]
    %v3302 = vld [vmem:[#allocation2 + $0x8] sm:$0xff]
    %v3303 = vld [vmem:[#allocation2 + $0x10] sm:$0xff]
    %v3304 = vld [vmem:[#allocation2 + $0x18] sm:$0xff]
    %v3305 = vld [vmem:[#allocation2 + $0x20] sm:$0xff]
    %v3306 = vld [vmem:[#allocation2 + $0x28] sm:$0xff]
    %v3307 = vld [vmem:[#allocation2 + $0x30] sm:$0xff]
    %v3308 = vld [vmem:[#allocation2 + $0x38] sm:$0xff]
    %v3309 = vld [vmem:[#allocation2 + $0x40] sm:$0xff]
    %v3310 = vld [vmem:[#allocation2 + $0x48] sm:$0xff]
    %v3311 = vld [vmem:[#allocation2 + $0x50] sm:$0xff]
    %v3312 = vld [vmem:[#allocation2 + $0x58] sm:$0xff]
    %v3313 = vld [vmem:[#allocation2 + $0x60] sm:$0xff]
    %v3314 = vld [vmem:[#allocation2 + $0x68] sm:$0xff]
    %v3315 = vld [vmem:[#allocation2 + $0x70] sm:$0xff]
    %v3316 = vld [vmem:[#allocation2 + $0x78] sm:$0xff]
    %v3317 = vld [vmem:[#allocation2 + $0x80] sm:$0xff]
    %v3318 = vld [vmem:[#allocation2 + $0x88] sm:$0xff]
    %v3319 = vld [vmem:[#allocation2 + $0x90] sm:$0xff]
    %v3320 = vld [vmem:[#allocation2 + $0x98] sm:$0xff]
    %v3321 = vld [vmem:[#allocation2 + $0xa0] sm:$0xff]
    %v3322 = vld [vmem:[#allocation2 + $0xa8] sm:$0xff]
    %v3323 = vld [vmem:[#allocation2 + $0xb0] sm:$0xff]
    %v3324 = vld [vmem:[#allocation2 + $0xb8] sm:$0xff]
    %v3325 = vld [vmem:[#allocation2 + $0xc0] sm:$0xff]
    %v3326 = vld [vmem:[#allocation2 + $0xc8] sm:$0xff]
    %v3327 = vld [vmem:[#allocation2 + $0xd0] sm:$0xff]
    %v3328 = vld [vmem:[#allocation2 + $0xd8] sm:$0xff]
    %v3329 = vld [vmem:[#allocation2 + $0xe0] sm:$0xff]
    %v3330 = vld [vmem:[#allocation2 + $0xe8] sm:$0xff]
    %v3331 = vld [vmem:[#allocation2 + $0xf0] sm:$0xff]
    %v3332 = vld [vmem:[#allocation2 + $0xf8] sm:$0xff]
    %v3333 = vld [vmem:[#allocation2 + $0x100] sm:$0xff]
    %v3334 = vld [vmem:[#allocation2 + $0x108] sm:$0xff]
    %v3335 = vld [vmem:[#allocation2 + $0x110] sm:$0xff]
    %v3336 = vld [vmem:[#allocation2 + $0x118] sm:$0xff]
    %v3337 = vld [vmem:[#allocation2 + $0x120] sm:$0xff]
    %v3338 = vld [vmem:[#allocation2 + $0x128] sm:$0xff]
    %v3339 = vld [vmem:[#allocation2 + $0x130] sm:$0xff]
    %v3340 = vld [vmem:[#allocation2 + $0x138] sm:$0xff]
    %v3341 = vld [vmem:[#allocation2 + $0x140] sm:$0xff]
    %v3342 = vld [vmem:[#allocation2 + $0x148] sm:$0xff]
    %v3343 = vld [vmem:[#allocation2 + $0x150] sm:$0xff]
    %v3344 = vld [vmem:[#allocation2 + $0x158] sm:$0xff]
    %v3345 = vld [vmem:[#allocation2 + $0x160] sm:$0xff]
    %v3346 = vld [vmem:[#allocation2 + $0x168] sm:$0xff]
    %v3347 = vld [vmem:[#allocation2 + $0x170] sm:$0xff]
    %v3348 = vld [vmem:[#allocation2 + $0x178] sm:$0xff]
    %v3349 = vld [vmem:[#allocation2 + $0x180] sm:$0xff]
    %v3350 = vld [vmem:[#allocation2 + $0x188] sm:$0xff]
    %v3351 = vld [vmem:[#allocation2 + $0x190] sm:$0xff]
    %v3352 = vld [vmem:[#allocation2 + $0x198] sm:$0xff]
    %v3353 = vld [vmem:[#allocation2 + $0x1a0] sm:$0xff]
    %v3354 = vld [vmem:[#allocation2 + $0x1a8] sm:$0xff]
    %v3355 = vld [vmem:[#allocation2 + $0x1b0] sm:$0xff]
    %v3356 = vld [vmem:[#allocation2 + $0x1b8] sm:$0xff]
    %v3357 = vld [vmem:[#allocation2 + $0x1c0] sm:$0xff]
    %v3358 = vld [vmem:[#allocation2 + $0x1c8] sm:$0xff]
    %v3359 = vld [vmem:[#allocation2 + $0x1d0] sm:$0xff]
    %v3360 = vld [vmem:[#allocation2 + $0x1d8] sm:$0xff]
    %v3361 = vld [vmem:[#allocation2 + $0x1e0] sm:$0xff]
    %v3362 = vld [vmem:[#allocation2 + $0x1e8] sm:$0xff]
    %v3363 = vld [vmem:[#allocation2 + $0x1f0] sm:$0xff]
    %v3364 = vld [vmem:[#allocation2 + $0x1f8] sm:$0xff]
    %v3365 = vld [vmem:[#allocation2 + $0x200] sm:$0xff]
    %v3366 = vld [vmem:[#allocation2 + $0x208] sm:$0xff]
    %v3367 = vld [vmem:[#allocation2 + $0x210] sm:$0xff]
    %v3368 = vld [vmem:[#allocation2 + $0x218] sm:$0xff]
    %v3369 = vld [vmem:[#allocation2 + $0x220] sm:$0xff]
    %v3370 = vld [vmem:[#allocation2 + $0x228] sm:$0xff]
    %v3371 = vld [vmem:[#allocation2 + $0x230] sm:$0xff]
    %v3372 = vld [vmem:[#allocation2 + $0x238] sm:$0xff]
    %v3373 = vld [vmem:[#allocation2 + $0x240] sm:$0xff]
    %v3374 = vld [vmem:[#allocation2 + $0x248] sm:$0xff]
    %v3375 = vld [vmem:[#allocation2 + $0x250] sm:$0xff]
    %v3376 = vld [vmem:[#allocation2 + $0x258] sm:$0xff]
    %v3377 = vld [vmem:[#allocation2 + $0x260] sm:$0xff]
    %v3378 = vld [vmem:[#allocation2 + $0x268] sm:$0xff]
    %v3379 = vld [vmem:[#allocation2 + $0x270] sm:$0xff]
    %v3380 = vld [vmem:[#allocation2 + $0x278] sm:$0xff]
    %v3381 = vld [vmem:[#allocation2 + $0x280] sm:$0xff]
    %v3382 = vld [vmem:[#allocation2 + $0x288] sm:$0xff]
    %v3383 = vld [vmem:[#allocation2 + $0x290] sm:$0xff]
    %v3384 = vld [vmem:[#allocation2 + $0x298] sm:$0xff]
    %v3385 = vld [vmem:[#allocation2 + $0x2a0] sm:$0xff]
    %v3386 = vld [vmem:[#allocation2 + $0x2a8] sm:$0xff]
    %v3387 = vld [vmem:[#allocation2 + $0x2b0] sm:$0xff]
    %v3388 = vld [vmem:[#allocation2 + $0x2b8] sm:$0xff]
    %v3389 = vld [vmem:[#allocation2 + $0x2c0] sm:$0xff]
    %v3390 = vld [vmem:[#allocation2 + $0x2c8] sm:$0xff]
    %v3391 = vld [vmem:[#allocation2 + $0x2d0] sm:$0xff]
    %v3392 = vld [vmem:[#allocation2 + $0x2d8] sm:$0xff]
    %v3393 = vld [vmem:[#allocation2 + $0x2e0] sm:$0xff]
    %v3394 = vld [vmem:[#allocation2 + $0x2e8] sm:$0xff]
    %v3395 = vld [vmem:[#allocation2 + $0x2f0] sm:$0xff]
    %v3396 = vld [vmem:[#allocation2 + $0x2f8] sm:$0xff]
    %v3397 = vld [vmem:[#allocation2 + $0x300] sm:$0xff]
    %v3398 = vld [vmem:[#allocation2 + $0x308] sm:$0xff]
    %v3399 = vld [vmem:[#allocation2 + $0x310] sm:$0xff]
    %v3400 = vld [vmem:[#allocation2 + $0x318] sm:$0xff]
    %v3401 = vld [vmem:[#allocation2 + $0x320] sm:$0xff]
    %v3402 = vld [vmem:[#allocation2 + $0x328] sm:$0xff]
    %v3403 = vld [vmem:[#allocation2 + $0x330] sm:$0xff]
    %v3404 = vld [vmem:[#allocation2 + $0x338] sm:$0xff]
    %v3405 = vld [vmem:[#allocation2 + $0x340] sm:$0xff]
    %v3406 = vld [vmem:[#allocation2 + $0x348] sm:$0xff]
    %v3407 = vld [vmem:[#allocation2 + $0x350] sm:$0xff]
    %v3408 = vld [vmem:[#allocation2 + $0x358] sm:$0xff]
    %v3409 = vld [vmem:[#allocation2 + $0x360] sm:$0xff]
    %v3410 = vld [vmem:[#allocation2 + $0x368] sm:$0xff]
    %v3411 = vld [vmem:[#allocation2 + $0x370] sm:$0xff]
    %v3412 = vld [vmem:[#allocation2 + $0x378] sm:$0xff]
    %v3413 = vld [vmem:[#allocation2 + $0x380] sm:$0xff]
    %v3414 = vld [vmem:[#allocation2 + $0x388] sm:$0xff]
    %v3415 = vld [vmem:[#allocation2 + $0x390] sm:$0xff]
    %v3416 = vld [vmem:[#allocation2 + $0x398] sm:$0xff]
    %v3417 = vld [vmem:[#allocation2 + $0x3a0] sm:$0xff]
    %v3418 = vld [vmem:[#allocation2 + $0x3a8] sm:$0xff]
    %v3419 = vld [vmem:[#allocation2 + $0x3b0] sm:$0xff]
    %v3420 = vld [vmem:[#allocation2 + $0x3b8] sm:$0xff]
    %v3421 = vld [vmem:[#allocation2 + $0x3c0] sm:$0xff]
    %v3422 = vld [vmem:[#allocation2 + $0x3c8] sm:$0xff]
    %v3423 = vld [vmem:[#allocation2 + $0x3d0] sm:$0xff]
    %v3424 = vld [vmem:[#allocation2 + $0x3d8] sm:$0xff]
    %v3425 = vld [vmem:[#allocation2 + $0x3e0] sm:$0xff]
    %v3426 = vld [vmem:[#allocation2 + $0x3e8] sm:$0xff]
    %v3427 = vld [vmem:[#allocation2 + $0x3f0] sm:$0xff]
    %v3428 = vld [vmem:[#allocation2 + $0x3f8] sm:$0xff]
    %v3429 = vmul.f32 %v2771, %v3301
    %v3430 = vmul.f32 %v2775, %v3302
    %v3431 = vmul.f32 %v2779, %v3303
    %v3432 = vmul.f32 %v2783, %v3304
    %v3433 = vmul.f32 %v2787, %v3305
    %v3434 = vmul.f32 %v2791, %v3306
    %v3435 = vmul.f32 %v2795, %v3307
    %v3436 = vmul.f32 %v2799, %v3308
    %v3437 = vmul.f32 %v2803, %v3309
    %v3438 = vmul.f32 %v2807, %v3310
    %v3439 = vmul.f32 %v2811, %v3311
    %v3440 = vmul.f32 %v2815, %v3312
    %v3441 = vmul.f32 %v2819, %v3313
    %v3442 = vmul.f32 %v2823, %v3314
    %v3443 = vmul.f32 %v2827, %v3315
    %v3444 = vmul.f32 %v2831, %v3316
    %v3445 = vmul.f32 %v2838, %v3317
    %v3446 = vmul.f32 %v2842, %v3318
    %v3447 = vmul.f32 %v2846, %v3319
    %v3448 = vmul.f32 %v2850, %v3320
    %v3449 = vmul.f32 %v2854, %v3321
    %v3450 = vmul.f32 %v2858, %v3322
    %v3451 = vmul.f32 %v2862, %v3323
    %v3452 = vmul.f32 %v2866, %v3324
    %v3453 = vmul.f32 %v2870, %v3325
    %v3454 = vmul.f32 %v2874, %v3326
    %v3455 = vmul.f32 %v2878, %v3327
    %v3456 = vmul.f32 %v2882, %v3328
    %v3457 = vmul.f32 %v2886, %v3329
    %v3458 = vmul.f32 %v2890, %v3330
    %v3459 = vmul.f32 %v2894, %v3331
    %v3460 = vmul.f32 %v2898, %v3332
    %v3461 = vmul.f32 %v2905, %v3333
    %v3462 = vmul.f32 %v2909, %v3334
    %v3463 = vmul.f32 %v2913, %v3335
    %v3464 = vmul.f32 %v2917, %v3336
    %v3465 = vmul.f32 %v2921, %v3337
    %v3466 = vmul.f32 %v2925, %v3338
    %v3467 = vmul.f32 %v2929, %v3339
    %v3468 = vmul.f32 %v2933, %v3340
    %v3469 = vmul.f32 %v2937, %v3341
    %v3470 = vmul.f32 %v2941, %v3342
    %v3471 = vmul.f32 %v2945, %v3343
    %v3472 = vmul.f32 %v2949, %v3344
    %v3473 = vmul.f32 %v2953, %v3345
    %v3474 = vmul.f32 %v2957, %v3346
    %v3475 = vmul.f32 %v2961, %v3347
    %v3476 = vmul.f32 %v2965, %v3348
    %v3477 = vmul.f32 %v2972, %v3349
    %v3478 = vmul.f32 %v2976, %v3350
    %v3479 = vmul.f32 %v2980, %v3351
    %v3480 = vmul.f32 %v2984, %v3352
    %v3481 = vmul.f32 %v2988, %v3353
    %v3482 = vmul.f32 %v2992, %v3354
    %v3483 = vmul.f32 %v2996, %v3355
    %v3484 = vmul.f32 %v3000, %v3356
    %v3485 = vmul.f32 %v3004, %v3357
    %v3486 = vmul.f32 %v3008, %v3358
    %v3487 = vmul.f32 %v3012, %v3359
    %v3488 = vmul.f32 %v3016, %v3360
    %v3489 = vmul.f32 %v3020, %v3361
    %v3490 = vmul.f32 %v3024, %v3362
    %v3491 = vmul.f32 %v3028, %v3363
    %v3492 = vmul.f32 %v3032, %v3364
    %v3493 = vmul.f32 %v3039, %v3365
    %v3494 = vmul.f32 %v3043, %v3366
    %v3495 = vmul.f32 %v3047, %v3367
    %v3496 = vmul.f32 %v3051, %v3368
    %v3497 = vmul.f32 %v3055, %v3369
    %v3498 = vmul.f32 %v3059, %v3370
    %v3499 = vmul.f32 %v3063, %v3371
    %v3500 = vmul.f32 %v3067, %v3372
    %v3501 = vmul.f32 %v3071, %v3373
    %v3502 = vmul.f32 %v3075, %v3374
    %v3503 = vmul.f32 %v3079, %v3375
    %v3504 = vmul.f32 %v3083, %v3376
    %v3505 = vmul.f32 %v3087, %v3377
    %v3506 = vmul.f32 %v3091, %v3378
    %v3507 = vmul.f32 %v3095, %v3379
    %v3508 = vmul.f32 %v3099, %v3380
    %v3509 = vmul.f32 %v3106, %v3381
    %v3510 = vmul.f32 %v3110, %v3382
    %v3511 = vmul.f32 %v3114, %v3383
    %v3512 = vmul.f32 %v3118, %v3384
    %v3513 = vmul.f32 %v3122, %v3385
    %v3514 = vmul.f32 %v3126, %v3386
    %v3515 = vmul.f32 %v3130, %v3387
    %v3516 = vmul.f32 %v3134, %v3388
    %v3517 = vmul.f32 %v3138, %v3389
    %v3518 = vmul.f32 %v3142, %v3390
    %v3519 = vmul.f32 %v3146, %v3391
    %v3520 = vmul.f32 %v3150, %v3392
    %v3521 = vmul.f32 %v3154, %v3393
    %v3522 = vmul.f32 %v3158, %v3394
    %v3523 = vmul.f32 %v3162, %v3395
    %v3524 = vmul.f32 %v3166, %v3396
    %v3525 = vmul.f32 %v3173, %v3397
    %v3526 = vmul.f32 %v3177, %v3398
    %v3527 = vmul.f32 %v3181, %v3399
    %v3528 = vmul.f32 %v3185, %v3400
    %v3529 = vmul.f32 %v3189, %v3401
    %v3530 = vmul.f32 %v3193, %v3402
    %v3531 = vmul.f32 %v3197, %v3403
    %v3532 = vmul.f32 %v3201, %v3404
    %v3533 = vmul.f32 %v3205, %v3405
    %v3534 = vmul.f32 %v3209, %v3406
    %v3535 = vmul.f32 %v3213, %v3407
    %v3536 = vmul.f32 %v3217, %v3408
    %v3537 = vmul.f32 %v3221, %v3409
    %v3538 = vmul.f32 %v3225, %v3410
    %v3539 = vmul.f32 %v3229, %v3411
    %v3540 = vmul.f32 %v3233, %v3412
    %v3541 = vmul.f32 %v3240, %v3413
    %v3542 = vmul.f32 %v3244, %v3414
    %v3543 = vmul.f32 %v3248, %v3415
    %v3544 = vmul.f32 %v3252, %v3416
    %v3545 = vmul.f32 %v3256, %v3417
    %v3546 = vmul.f32 %v3260, %v3418
    %v3547 = vmul.f32 %v3264, %v3419
    %v3548 = vmul.f32 %v3268, %v3420
    %v3549 = vmul.f32 %v3272, %v3421
    %v3550 = vmul.f32 %v3276, %v3422
    %v3551 = vmul.f32 %v3280, %v3423
    %v3552 = vmul.f32 %v3284, %v3424
    %v3553 = vmul.f32 %v3288, %v3425
    %v3554 = vmul.f32 %v3292, %v3426
    %v3555 = vmul.f32 %v3296, %v3427
    %v3556 = vmul.f32 %v3300, %v3428
    %v3557 = vld [vmem:[%s9] sm:$0xff]
    %v3558 = vsel %vm75, %v3429, 0.0
    %v3559 = vsel %vm75, %v3430, 0.0
    %v3560 = vadd.f32 %v3558, %v3559
    %v3561 = vsel %vm75, %v3431, 0.0
    %v3562 = vadd.f32 %v3560, %v3561
    %v3563 = vsel %vm75, %v3432, 0.0
    %v3564 = vadd.f32 %v3562, %v3563
    %v3565 = vsel %vm75, %v3433, 0.0
    %v3566 = vadd.f32 %v3564, %v3565
    %v3567 = vsel %vm75, %v3434, 0.0
    %v3568 = vadd.f32 %v3566, %v3567
    %v3569 = vsel %vm75, %v3435, 0.0
    %v3570 = vadd.f32 %v3568, %v3569
    %v3571 = vsel %vm75, %v3436, 0.0
    %v3572 = vadd.f32 %v3570, %v3571
    %v3573 = vsel %vm75, %v3437, 0.0
    %v3574 = vadd.f32 %v3572, %v3573
    %v3575 = vsel %vm75, %v3438, 0.0
    %v3576 = vadd.f32 %v3574, %v3575
    %v3577 = vsel %vm75, %v3439, 0.0
    %v3578 = vadd.f32 %v3576, %v3577
    %v3579 = vsel %vm75, %v3440, 0.0
    %v3580 = vadd.f32 %v3578, %v3579
    %v3581 = vsel %vm75, %v3441, 0.0
    %v3582 = vadd.f32 %v3580, %v3581
    %v3583 = vsel %vm75, %v3442, 0.0
    %v3584 = vadd.f32 %v3582, %v3583
    %v3585 = vsel %vm75, %v3443, 0.0
    %v3586 = vadd.f32 %v3584, %v3585
    %v3587 = vsel %vm75, %v3444, 0.0
    %v3588 = vadd.f32 %v3586, %v3587
    %v3589 = vrot.slane %v3588, 4
    %v3590 = vadd.f32 %v3588, %v3589
    %v3591 = vrot.slane %v3590, 2
    %v3592 = vadd.f32 %v3590, %v3591
    %v3593 = vrot.slane %v3592, 1
    %v3594 = vadd.f32 %v3592, %v3593
    %v3595 = vsel %vm75, %v3445, 0.0
    %v3596 = vsel %vm75, %v3446, 0.0
    %v3597 = vadd.f32 %v3595, %v3596
    %v3598 = vsel %vm75, %v3447, 0.0
    %v3599 = vadd.f32 %v3597, %v3598
    %v3600 = vsel %vm75, %v3448, 0.0
    %v3601 = vadd.f32 %v3599, %v3600
    %v3602 = vsel %vm75, %v3449, 0.0
    %v3603 = vadd.f32 %v3601, %v3602
    %v3604 = vsel %vm75, %v3450, 0.0
    %v3605 = vadd.f32 %v3603, %v3604
    %v3606 = vsel %vm75, %v3451, 0.0
    %v3607 = vadd.f32 %v3605, %v3606
    %v3608 = vsel %vm75, %v3452, 0.0
    %v3609 = vadd.f32 %v3607, %v3608
    %v3610 = vsel %vm75, %v3453, 0.0
    %v3611 = vadd.f32 %v3609, %v3610
    %v3612 = vsel %vm75, %v3454, 0.0
    %v3613 = vadd.f32 %v3611, %v3612
    %v3614 = vsel %vm75, %v3455, 0.0
    %v3615 = vadd.f32 %v3613, %v3614
    %v3616 = vsel %vm75, %v3456, 0.0
    %v3617 = vadd.f32 %v3615, %v3616
    %v3618 = vsel %vm75, %v3457, 0.0
    %v3619 = vadd.f32 %v3617, %v3618
    %v3620 = vsel %vm75, %v3458, 0.0
    %v3621 = vadd.f32 %v3619, %v3620
    %v3622 = vsel %vm75, %v3459, 0.0
    %v3623 = vadd.f32 %v3621, %v3622
    %v3624 = vsel %vm75, %v3460, 0.0
    %v3625 = vadd.f32 %v3623, %v3624
    %v3626 = vrot.slane %v3625, 4
    %v3627 = vadd.f32 %v3625, %v3626
    %v3628 = vrot.slane %v3627, 2
    %v3629 = vadd.f32 %v3627, %v3628
    %v3630 = vrot.slane %v3629, 1
    %v3631 = vadd.f32 %v3629, %v3630
    %v3632 = vsel %vm75, %v3461, 0.0
    %v3633 = vsel %vm75, %v3462, 0.0
    %v3634 = vadd.f32 %v3632, %v3633
    %v3635 = vsel %vm75, %v3463, 0.0
    %v3636 = vadd.f32 %v3634, %v3635
    %v3637 = vsel %vm75, %v3464, 0.0
    %v3638 = vadd.f32 %v3636, %v3637
    %v3639 = vsel %vm75, %v3465, 0.0
    %v3640 = vadd.f32 %v3638, %v3639
    %v3641 = vsel %vm75, %v3466, 0.0
    %v3642 = vadd.f32 %v3640, %v3641
    %v3643 = vsel %vm75, %v3467, 0.0
    %v3644 = vadd.f32 %v3642, %v3643
    %v3645 = vsel %vm75, %v3468, 0.0
    %v3646 = vadd.f32 %v3644, %v3645
    %v3647 = vsel %vm75, %v3469, 0.0
    %v3648 = vadd.f32 %v3646, %v3647
    %v3649 = vsel %vm75, %v3470, 0.0
    %v3650 = vadd.f32 %v3648, %v3649
    %v3651 = vsel %vm75, %v3471, 0.0
    %v3652 = vadd.f32 %v3650, %v3651
    %v3653 = vsel %vm75, %v3472, 0.0
    %v3654 = vadd.f32 %v3652, %v3653
    %v3655 = vsel %vm75, %v3473, 0.0
    %v3656 = vadd.f32 %v3654, %v3655
    %v3657 = vsel %vm75, %v3474, 0.0
    %v3658 = vadd.f32 %v3656, %v3657
    %v3659 = vsel %vm75, %v3475, 0.0
    %v3660 = vadd.f32 %v3658, %v3659
    %v3661 = vsel %vm75, %v3476, 0.0
    %v3662 = vadd.f32 %v3660, %v3661
    %v3663 = vrot.slane %v3662, 4
    %v3664 = vadd.f32 %v3662, %v3663
    %v3665 = vrot.slane %v3664, 2
    %v3666 = vadd.f32 %v3664, %v3665
    %v3667 = vrot.slane %v3666, 1
    %v3668 = vadd.f32 %v3666, %v3667
    %v3669 = vsel %vm75, %v3477, 0.0
    %v3670 = vsel %vm75, %v3478, 0.0
    %v3671 = vadd.f32 %v3669, %v3670
    %v3672 = vsel %vm75, %v3479, 0.0
    %v3673 = vadd.f32 %v3671, %v3672
    %v3674 = vsel %vm75, %v3480, 0.0
    %v3675 = vadd.f32 %v3673, %v3674
    %v3676 = vsel %vm75, %v3481, 0.0
    %v3677 = vadd.f32 %v3675, %v3676
    %v3678 = vsel %vm75, %v3482, 0.0
    %v3679 = vadd.f32 %v3677, %v3678
    %v3680 = vsel %vm75, %v3483, 0.0
    %v3681 = vadd.f32 %v3679, %v3680
    %v3682 = vsel %vm75, %v3484, 0.0
    %v3683 = vadd.f32 %v3681, %v3682
    %v3684 = vsel %vm75, %v3485, 0.0
    %v3685 = vadd.f32 %v3683, %v3684
    %v3686 = vsel %vm75, %v3486, 0.0
    %v3687 = vadd.f32 %v3685, %v3686
    %v3688 = vsel %vm75, %v3487, 0.0
    %v3689 = vadd.f32 %v3687, %v3688
    %v3690 = vsel %vm75, %v3488, 0.0
    %v3691 = vadd.f32 %v3689, %v3690
    %v3692 = vsel %vm75, %v3489, 0.0
    %v3693 = vadd.f32 %v3691, %v3692
    %v3694 = vsel %vm75, %v3490, 0.0
    %v3695 = vadd.f32 %v3693, %v3694
    %v3696 = vsel %vm75, %v3491, 0.0
    %v3697 = vadd.f32 %v3695, %v3696
    %v3698 = vsel %vm75, %v3492, 0.0
    %v3699 = vadd.f32 %v3697, %v3698
    %v3700 = vrot.slane %v3699, 4
    %v3701 = vadd.f32 %v3699, %v3700
    %v3702 = vrot.slane %v3701, 2
    %v3703 = vadd.f32 %v3701, %v3702
    %v3704 = vrot.slane %v3703, 1
    %v3705 = vadd.f32 %v3703, %v3704
    %v3706 = vsel %vm75, %v3493, 0.0
    %v3707 = vsel %vm75, %v3494, 0.0
    %v3708 = vadd.f32 %v3706, %v3707
    %v3709 = vsel %vm75, %v3495, 0.0
    %v3710 = vadd.f32 %v3708, %v3709
    %v3711 = vsel %vm75, %v3496, 0.0
    %v3712 = vadd.f32 %v3710, %v3711
    %v3713 = vsel %vm75, %v3497, 0.0
    %v3714 = vadd.f32 %v3712, %v3713
    %v3715 = vsel %vm75, %v3498, 0.0
    %v3716 = vadd.f32 %v3714, %v3715
    %v3717 = vsel %vm75, %v3499, 0.0
    %v3718 = vadd.f32 %v3716, %v3717
    %v3719 = vsel %vm75, %v3500, 0.0
    %v3720 = vadd.f32 %v3718, %v3719
    %v3721 = vsel %vm75, %v3501, 0.0
    %v3722 = vadd.f32 %v3720, %v3721
    %v3723 = vsel %vm75, %v3502, 0.0
    %v3724 = vadd.f32 %v3722, %v3723
    %v3725 = vsel %vm75, %v3503, 0.0
    %v3726 = vadd.f32 %v3724, %v3725
    %v3727 = vsel %vm75, %v3504, 0.0
    %v3728 = vadd.f32 %v3726, %v3727
    %v3729 = vsel %vm75, %v3505, 0.0
    %v3730 = vadd.f32 %v3728, %v3729
    %v3731 = vsel %vm75, %v3506, 0.0
    %v3732 = vadd.f32 %v3730, %v3731
    %v3733 = vsel %vm75, %v3507, 0.0
    %v3734 = vadd.f32 %v3732, %v3733
    %v3735 = vsel %vm75, %v3508, 0.0
    %v3736 = vadd.f32 %v3734, %v3735
    %v3737 = vrot.slane %v3736, 4
    %v3738 = vadd.f32 %v3736, %v3737
    %v3739 = vrot.slane %v3738, 2
    %v3740 = vadd.f32 %v3738, %v3739
    %v3741 = vrot.slane %v3740, 1
    %v3742 = vadd.f32 %v3740, %v3741
    %v3743 = vsel %vm75, %v3509, 0.0
    %v3744 = vsel %vm75, %v3510, 0.0
    %v3745 = vadd.f32 %v3743, %v3744
    %v3746 = vsel %vm75, %v3511, 0.0
    %v3747 = vadd.f32 %v3745, %v3746
    %v3748 = vsel %vm75, %v3512, 0.0
    %v3749 = vadd.f32 %v3747, %v3748
    %v3750 = vsel %vm75, %v3513, 0.0
    %v3751 = vadd.f32 %v3749, %v3750
    %v3752 = vsel %vm75, %v3514, 0.0
    %v3753 = vadd.f32 %v3751, %v3752
    %v3754 = vsel %vm75, %v3515, 0.0
    %v3755 = vadd.f32 %v3753, %v3754
    %v3756 = vsel %vm75, %v3516, 0.0
    %v3757 = vadd.f32 %v3755, %v3756
    %v3758 = vsel %vm75, %v3517, 0.0
    %v3759 = vadd.f32 %v3757, %v3758
    %v3760 = vsel %vm75, %v3518, 0.0
    %v3761 = vadd.f32 %v3759, %v3760
    %v3762 = vsel %vm75, %v3519, 0.0
    %v3763 = vadd.f32 %v3761, %v3762
    %v3764 = vsel %vm75, %v3520, 0.0
    %v3765 = vadd.f32 %v3763, %v3764
    %v3766 = vsel %vm75, %v3521, 0.0
    %v3767 = vadd.f32 %v3765, %v3766
    %v3768 = vsel %vm75, %v3522, 0.0
    %v3769 = vadd.f32 %v3767, %v3768
    %v3770 = vsel %vm75, %v3523, 0.0
    %v3771 = vadd.f32 %v3769, %v3770
    %v3772 = vsel %vm75, %v3524, 0.0
    %v3773 = vadd.f32 %v3771, %v3772
    %v3774 = vrot.slane %v3773, 4
    %v3775 = vadd.f32 %v3773, %v3774
    %v3776 = vrot.slane %v3775, 2
    %v3777 = vadd.f32 %v3775, %v3776
    %v3778 = vrot.slane %v3777, 1
    %v3779 = vadd.f32 %v3777, %v3778
    %v3780 = vsel %vm75, %v3525, 0.0
    %v3781 = vsel %vm75, %v3526, 0.0
    %v3782 = vadd.f32 %v3780, %v3781
    %v3783 = vsel %vm75, %v3527, 0.0
    %v3784 = vadd.f32 %v3782, %v3783
    %v3785 = vsel %vm75, %v3528, 0.0
    %v3786 = vadd.f32 %v3784, %v3785
    %v3787 = vsel %vm75, %v3529, 0.0
    %v3788 = vadd.f32 %v3786, %v3787
    %v3789 = vsel %vm75, %v3530, 0.0
    %v3790 = vadd.f32 %v3788, %v3789
    %v3791 = vsel %vm75, %v3531, 0.0
    %v3792 = vadd.f32 %v3790, %v3791
    %v3793 = vsel %vm75, %v3532, 0.0
    %v3794 = vadd.f32 %v3792, %v3793
    %v3795 = vsel %vm75, %v3533, 0.0
    %v3796 = vadd.f32 %v3794, %v3795
    %v3797 = vsel %vm75, %v3534, 0.0
    %v3798 = vadd.f32 %v3796, %v3797
    %v3799 = vsel %vm75, %v3535, 0.0
    %v3800 = vadd.f32 %v3798, %v3799
    %v3801 = vsel %vm75, %v3536, 0.0
    %v3802 = vadd.f32 %v3800, %v3801
    %v3803 = vsel %vm75, %v3537, 0.0
    %v3804 = vadd.f32 %v3802, %v3803
    %v3805 = vsel %vm75, %v3538, 0.0
    %v3806 = vadd.f32 %v3804, %v3805
    %v3807 = vsel %vm75, %v3539, 0.0
    %v3808 = vadd.f32 %v3806, %v3807
    %v3809 = vsel %vm75, %v3540, 0.0
    %v3810 = vadd.f32 %v3808, %v3809
    %v3811 = vrot.slane %v3810, 4
    %v3812 = vadd.f32 %v3810, %v3811
    %v3813 = vrot.slane %v3812, 2
    %v3814 = vadd.f32 %v3812, %v3813
    %v3815 = vrot.slane %v3814, 1
    %v3816 = vadd.f32 %v3814, %v3815
    %v3817 = vsel %vm75, %v3541, 0.0
    %v3818 = vsel %vm75, %v3542, 0.0
    %v3819 = vadd.f32 %v3817, %v3818
    %v3820 = vsel %vm75, %v3543, 0.0
    %v3821 = vadd.f32 %v3819, %v3820
    %v3822 = vsel %vm75, %v3544, 0.0
    %v3823 = vadd.f32 %v3821, %v3822
    %v3824 = vsel %vm75, %v3545, 0.0
    %v3825 = vadd.f32 %v3823, %v3824
    %v3826 = vsel %vm75, %v3546, 0.0
    %v3827 = vadd.f32 %v3825, %v3826
    %v3828 = vsel %vm75, %v3547, 0.0
    %v3829 = vadd.f32 %v3827, %v3828
    %v3830 = vsel %vm75, %v3548, 0.0
    %v3831 = vadd.f32 %v3829, %v3830
    %v3832 = vsel %vm75, %v3549, 0.0
    %v3833 = vadd.f32 %v3831, %v3832
    %v3834 = vsel %vm75, %v3550, 0.0
    %v3835 = vadd.f32 %v3833, %v3834
    %v3836 = vsel %vm75, %v3551, 0.0
    %v3837 = vadd.f32 %v3835, %v3836
    %v3838 = vsel %vm75, %v3552, 0.0
    %v3839 = vadd.f32 %v3837, %v3838
    %v3840 = vsel %vm75, %v3553, 0.0
    %v3841 = vadd.f32 %v3839, %v3840
    %v3842 = vsel %vm75, %v3554, 0.0
    %v3843 = vadd.f32 %v3841, %v3842
    %v3844 = vsel %vm75, %v3555, 0.0
    %v3845 = vadd.f32 %v3843, %v3844
    %v3846 = vsel %vm75, %v3556, 0.0
    %v3847 = vadd.f32 %v3845, %v3846
    %v3848 = vrot.slane %v3847, 4
    %v3849 = vadd.f32 %v3847, %v3848
    %v3850 = vrot.slane %v3849, 2
    %v3851 = vadd.f32 %v3849, %v3850
    %v3852 = vrot.slane %v3851, 1
    %v3853 = vadd.f32 %v3851, %v3852
    %v3862 = vsel %vm2734, %v3631, %v3594
    %v3863 = vsel %vm2736, %v3668, %v3862
    %v3864 = vsel %vm2738, %v3705, %v3863
    %v3865 = vsel %vm2740, %v3742, %v3864
    %v3866 = vsel %vm2742, %v3779, %v3865
    %v3867 = vsel %vm2744, %v3816, %v3866
    %v3868 = vsel %vm2746, %v3853, %v3867
    %v3870 = vadd.f32 %v3557, %v3868
    %3871 = vst.msk [vmem:[%s9] sm:$0xff] %vm75, %v3870
    %v3872 = vld [vmem:[%s4] sm:$0xff]
    %v3873 = vld [vmem:[%s10] sm:$0xff]
    %v3874 = vadd.f32 %v3872, %v3873
    %3875 = vst [vmem:[%s11] sm:$0xff] %v3874
    // Predicated region
    $region46: #{step.1} parent=1 // pred_check
      _
    $region47: #{step.1} parent=1 // pred_check_branch
      %3877 = sbr.rel (0) target = $region49
    $region48: #{step.1} parent=1 // pred_region
      _
    $region49: #{step.1} parent=1 // pred_fallthru
      _
    // Predicated region
    $region50: #{step.1} parent=1 // pred_check
      _
    $region51: #{step.1} parent=1 // pred_check_branch
      %3879 = sbr.rel (0) target = $region53
    $region52: #{step.1} parent=1 // pred_region
      _
    $region53: #{step.1} parent=1 // pred_fallthru
      _
    // Predicated region
    $region54: #{step.1} parent=1 // pred_check
      _
    $region55: #{step.1} parent=1 // pred_check_branch
      %3881 = sbr.rel (0) target = $region57
    $region56: #{step.1} parent=1 // pred_region
      _
    $region57: #{step.1} parent=1 // pred_fallthru
      _
    // Predicated region
    $region58: #{step.1} parent=1 // pred_check
      _
    $region59: #{step.1} parent=1 // pred_check_branch
      %3883 = sbr.rel (0) target = $region61
    $region60: #{step.1} parent=1 // pred_region
      _
    $region61: #{step.1} parent=1 // pred_fallthru
      _
    // Predicated region
    $region62: #{step.1} parent=1 // pred_check
      _
    $region63: #{step.1} parent=1 // pred_check_branch
      %3885 = sbr.rel (0) target = $region65
    $region64: #{step.1} parent=1 // pred_region
      _
    $region65: #{step.1} parent=1 // pred_fallthru
      _
    // Predicated region
    $region66: #{step.1} parent=1 // pred_check
      _
    $region67: #{step.1} parent=1 // pred_check_branch
      %3887 = sbr.rel (0) target = $region69
    $region68: #{step.1} parent=1 // pred_region
      _
    $region69: #{step.1} parent=1 // pred_fallthru
      _
    %3888 = vsyncpa [#allocation3], 1
    %3889 = vsyncpa [#allocation5], 1

</llo_original>
